<compile_context>
chip_gen: v6e
topology: v6e:2x2x1
jax: 0.10.0
libtpu: 0.0.40
codegen_flags: <defaults>
</compile_context>

<pallas_src>
import functools
import math

import jax
import jax.numpy as jnp
from jax.experimental import pallas as pl
from jax.experimental.pallas import tpu as pltpu


# --------------------------------------------------------------------------------------
# In-kernel math helpers (f32, guaranteed-lowering ops only)
# --------------------------------------------------------------------------------------

def _bf16(x):
    return x.astype(jnp.bfloat16)


def _layer_norm(x, g, b, eps):
    mu = jnp.mean(x, axis=-1, keepdims=True)
    xc = x - mu
    var = jnp.mean(xc * xc, axis=-1, keepdims=True)
    return xc * jax.lax.rsqrt(var + eps) * g + b


def _erf_approx(x):
    # Abramowitz & Stegun 7.1.26 polynomial, |err| < 1.5e-7 (exp/VPU only -> safe lowering).
    a1, a2, a3, a4, a5 = 0.254829592, -0.284496736, 1.421413741, -1.453152027, 1.061405429
    p = 0.3275911
    sgn = jnp.where(x >= 0.0, 1.0, -1.0)
    ax = jnp.abs(x)
    t = 1.0 / (1.0 + p * ax)
    poly = ((((a5 * t + a4) * t + a3) * t + a2) * t + a1) * t
    return sgn * (1.0 - poly * jnp.exp(-ax * ax))


def _gelu_exact(x):
    # Matches PyTorch nn.GELU() default (erf formulation), not the tanh approximation.
    return 0.5 * x * (1.0 + _erf_approx(x * 0.7071067811865476))


# --------------------------------------------------------------------------------------
# Single fused forward kernel (per batch element): conv embedding + PE + encoder + head
# --------------------------------------------------------------------------------------
# TODO(synk): the convEncoder backbone's TransformerBlock source was not provided; a
# standard pre-LN MHA + exact-GELU FFN block with residuals and query/key masking is used.
# TODO(synk): PhaseDistComposer.process_phases source is unavailable; replaced by a
# deterministic global Gaussian composition (masked time-average of mean/var, no
# stochastic sampling; gt_actions and temperature unused).

def _aqa_forward_kernel(*refs, n_conv, ksize, n_layers, n_heads, eps, num_samples, dh):
    n_in = 4 + 2 * n_conv + 12 * n_layers + 10
    x_ref, mcol_ref, mrow_ref, pe_ref = refs[0:4]
    conv_refs = refs[4:4 + 2 * n_conv]
    enc_refs = refs[4 + 2 * n_conv:4 + 2 * n_conv + 12 * n_layers]
    head_refs = refs[4 + 2 * n_conv + 12 * n_layers:n_in]
    mv_out_ref, gsv_ref, score_ref = refs[n_in:n_in + 3]

    T = x_ref.shape[1]
    pad = ksize // 2
    mcol = mcol_ref[0]                                          # (T, 1) f32
    mrow = mrow_ref[0]                                          # (1, T) f32
    row_ids = jax.lax.broadcasted_iota(jnp.int32, (T, 1), 0)    # conv boundary bookkeeping

    # ---------------- embedding stack: MaskedConv1D + ReLU, 'same' padding ----------------
    # MaskedConv1D semantics: zero masked timesteps before the conv, re-mask after.
    xv = x_ref[0] * mcol                                        # (T, Cin) f32
    for li in range(n_conv):
        w_ref = conv_refs[2 * li]                               # (K, Cin_i, Cout) bf16
        bias = conv_refs[2 * li + 1][...]                       # (1, Cout) f32
        cout = w_ref.shape[2]
        acc = jnp.zeros((T, cout), jnp.float32)
        # y[t] = sum_k x[t + k - pad] @ w[k]; rows shifted via XLU roll, wrap masked off.
        for k in range(ksize):
            off = k - pad
            if off == 0:
                xk = xv
            else:
                xk = pltpu.roll(xv, (-off) % T, axis=0)
                valid = jnp.logical_and(row_ids + off >= 0, row_ids + off < T)
                xk = jnp.where(valid, xk, 0.0)
            acc = acc + jnp.dot(_bf16(xk), w_ref[k], preferred_element_type=jnp.float32)
        xv = jnp.maximum(acc + bias, 0.0) * mcol

    # abs positional embedding (already /sqrt(D) wrapper-side), then re-mask
    xv = (xv + pe_ref[...]) * mcol                              # (T, D)

    D = xv.shape[1]
    hd = D // n_heads                                           # per-head attention dim
    scale = 1.0 / math.sqrt(hd)
    key_valid = mrow > 0.0                                      # (1, T) bool, reused per head

    # ---------------- transformer encoder layers (pre-LN MHA + GELU FFN) ----------------
    x = xv
    for li in range(n_layers):
        (ln1g, ln1b, wqkv, bqkv, wo, bo,
         ln2g, ln2b, w1, b1, w2, b2) = enc_refs[12 * li:12 * (li + 1)]

        h = _layer_norm(x, ln1g[...], ln1b[...], eps)
        # fused QKV projection: one (T,D)x(D,3D) MXU push
        qkv = jnp.dot(_bf16(h), wqkv[...], preferred_element_type=jnp.float32) + bqkv[...]
        wo_v = wo[...]                                          # (D, D) bf16

        attn = jnp.zeros((T, D), jnp.float32)
        for hh in range(n_heads):
            q = qkv[:, hh * hd:(hh + 1) * hd]
            k = qkv[:, D + hh * hd:D + (hh + 1) * hd]
            v = qkv[:, 2 * D + hh * hd:2 * D + (hh + 1) * hd]
            # q @ k^T with the transpose folded into the MXU feed (no XLU transpose)
            s = jax.lax.dot_general(_bf16(q), _bf16(k), (((1,), (1,)), ((), ())),
                                    preferred_element_type=jnp.float32) * scale
            s = jnp.where(key_valid, s, -1e30)
            s = s - jnp.max(s, axis=-1, keepdims=True)
            p = jnp.exp(s)
            # fold softmax normalisation AFTER the PV matmul (EUP reciprocal, O(T) work)
            inv = pl.reciprocal(jnp.sum(p, axis=-1, keepdims=True), approx=True)
            o_h = jnp.dot(_bf16(p), _bf16(v), preferred_element_type=jnp.float32) * inv
            # concat(heads) @ wo == sum_h o_h @ wo_h  (per-head row slice of wo)
            attn = attn + jnp.dot(_bf16(o_h), wo_v[hh * hd:(hh + 1) * hd, :],
                                  preferred_element_type=jnp.float32)
        x = x + (attn + bo[...]) * mcol

        h2 = _layer_norm(x, ln2g[...], ln2b[...], eps)
        f = jnp.dot(_bf16(h2), w1[...], preferred_element_type=jnp.float32) + b1[...]
        f = _gelu_exact(f)
        f = jnp.dot(_bf16(f), w2[...], preferred_element_type=jnp.float32) + b2[...]
        x = x + f * mcol

    # ---------------- Quality_Score_Head ----------------
    (cb_w, cb_b, mv_w1, mv_b1, mv_w2, mv_b2,
     sh_w1, sh_b1, sh_w2, sh_b2) = head_refs

    common = jnp.maximum(
        jnp.dot(_bf16(x), cb_w[...], preferred_element_type=jnp.float32) + cb_b[...], 0.0)
    h1 = jnp.maximum(
        jnp.dot(_bf16(common), mv_w1[...], preferred_element_type=jnp.float32) + mv_b1[...], 0.0)
    # single matmul producing [mean | log-var]; exp the var half in place (no column split)
    mv = jnp.dot(_bf16(h1), mv_w2[...], preferred_element_type=jnp.float32) + mv_b2[...]  # (T, 2*dh)
    col = jax.lax.broadcasted_iota(jnp.int32, mv.shape, 1)
    mv_out = jnp.where(col < dh, mv, jnp.exp(mv))               # mean || var, lane-dense
    mv_out_ref[0] = mv_out.astype(mv_out_ref.dtype)

    # global composition: masked time-average over valid frames only
    nvalid = jnp.maximum(jnp.sum(mcol, axis=0, keepdims=True), 1.0)          # (1, 1)
    gvec = jnp.sum(mv_out * mcol, axis=0, keepdims=True) / nvalid            # (1, 2*dh)
    gmean = gvec[:, :dh]
    gvar = gvec[:, dh:]
    gsv_ref[0] = jnp.sqrt(gvar).astype(gsv_ref.dtype)

    # scoring head on the (deterministic) composed embedding
    smp = jnp.broadcast_to(gmean, (num_samples, dh))
    s1 = jnp.maximum(
        jnp.dot(_bf16(smp), sh_w1[...], preferred_element_type=jnp.float32) + sh_b1[...], 0.0)
    s2 = jnp.dot(_bf16(s1), sh_w2[...], preferred_element_type=jnp.float32) + sh_b2[...]
    score_ref[0] = s2.astype(score_ref.dtype)


# --------------------------------------------------------------------------------------
# Forward wrapper: ONE pallas_call over the whole model, grid=(B,)
# --------------------------------------------------------------------------------------

def aqa_forward(prep, batched_inputs, batched_masks, batched_gt_actions, cfg):
    """batched_inputs: (B, C_in, T) [NCT, like PyTorch]; batched_masks: (B, 1, T) bool."""
    x = jnp.transpose(batched_inputs, (0, 2, 1)).astype(jnp.float32)   # (B, T, Cin)
    mrow = batched_masks.astype(jnp.float32)                           # (B, 1, T)
    mcol = jnp.transpose(mrow, (0, 2, 1))                              # (B, T, 1)
    B, T, Cin = x.shape

    D = cfg["embed_dim"]
    Dh = D // 2
    SB = cfg["score_bins"]
    S = cfg["num_samples"]
    L = cfg["n_encoder_layers"]
    NC = cfg["n_conv_layers"]
    K = cfg["conv_kernel_size"]

    pe = prep["pos_embd"][:T]                                          # (T, D)

    arrays = [x, mcol, mrow, pe]
    specs = [
        pl.BlockSpec((1, T, Cin), lambda b: (b, 0, 0)),
        pl.BlockSpec((1, T, 1), lambda b: (b, 0, 0)),
        pl.BlockSpec((1, 1, T), lambda b: (b, 0, 0)),
        pl.BlockSpec((T, D), lambda b: (0, 0)),
    ]

    def _add_weight(a):
        arrays.append(a)
        if a.ndim == 2:
            specs.append(pl.BlockSpec(a.shape, lambda b: (0, 0)))
        else:
            specs.append(pl.BlockSpec(a.shape, lambda b: (0, 0, 0)))

    for (w, bias) in prep["convs"]:
        _add_weight(w)
        _add_weight(bias)
    for lyr in prep["enc"]:
        for a in lyr:
            _add_weight(a)
    for a in prep["head"]:
        _add_weight(a)

    kernel = functools.partial(
        _aqa_forward_kernel,
        n_conv=NC, ksize=K, n_layers=L, n_heads=cfg["n_heads"],
        eps=1e-5, num_samples=S, dh=Dh)

    mv_out, gsv, scores = pl.pallas_call(
        kernel,
        out_shape=(jax.ShapeDtypeStruct((B, T, D), jnp.float32),   # mean || var  (lane-dense)
                   jax.ShapeDtypeStruct((B, 1, Dh), jnp.float32),  # global sqrt var
                   jax.ShapeDtypeStruct((B, S, SB), jnp.float32)), # per-sample scores
        grid=(B,),
        in_specs=specs,
        out_specs=(pl.BlockSpec((1, T, D), lambda b: (b, 0, 0)),
                   pl.BlockSpec((1, 1, Dh), lambda b: (b, 0, 0)),
                   pl.BlockSpec((1, S, SB), lambda b: (b, 0, 0))),
        compiler_params=pltpu.CompilerParams(dimension_semantics=("parallel",)),
    )(*arrays)

    phase_mean_emb = mv_out[:, :, :Dh]
    phase_var_emb = mv_out[:, :, Dh:]
    global_sqrt_var_emb = gsv[:, 0, :]
    all_sample_outputs = jnp.transpose(scores, (1, 0, 2))              # permute(1, 0, 2)

    out_dict = {
        "all_sample_outputs": all_sample_outputs,
        "gt_actions": batched_gt_actions,
        "cross_attn": None,                  # neck is None
        "phase_mean_emb": phase_mean_emb,
        "phase_var_emb": phase_var_emb,
        "global_sqrt_var_emb": global_sqrt_var_emb,
    }
    losses = None                            # criterion_args is None
    return out_dict, losses


# --------------------------------------------------------------------------------------
# One-time parameter preparation (bf16 casts, QKV concat, bias reshapes) -- outside jit
# --------------------------------------------------------------------------------------

def prepare_params(raw):
    convs = []
    for (w, b) in raw["convs"]:
        convs.append((w.astype(jnp.bfloat16), b.reshape(1, -1).astype(jnp.float32)))

    enc = []
    for lyr in raw["enc_layers"]:
        D = lyr["wq"].shape[0]
        wqkv = jnp.concatenate([lyr["wq"], lyr["wk"], lyr["wv"]], axis=1).astype(jnp.bfloat16)
        bqkv = jnp.concatenate([lyr["bq"], lyr["bk"], lyr["bv"]]).reshape(1, 3 * D)
        enc.append([
            lyr["ln1_g"].reshape(1, D), lyr["ln1_b"].reshape(1, D),
            wqkv, bqkv,
            lyr["wo"].astype(jnp.bfloat16), lyr["bo"].reshape(1, D),
            lyr["ln2_g"].reshape(1, D), lyr["ln2_b"].reshape(1, D),
            lyr["ffn_w1"].astype(jnp.bfloat16), lyr["ffn_b1"].reshape(1, -1),
            lyr["ffn_w2"].astype(jnp.bfloat16), lyr["ffn_b2"].reshape(1, D),
        ])

    qh = raw["qh"]
    Dh = qh["cb_w"].shape[1]
    head = [
        qh["cb_w"].astype(jnp.bfloat16), qh["cb_b"].reshape(1, Dh),
        qh["mv_w1"].astype(jnp.bfloat16), qh["mv_b1"].reshape(1, Dh),
        qh["mv_w2"].astype(jnp.bfloat16), qh["mv_b2"].reshape(1, -1),
        qh["sh_w1"].astype(jnp.bfloat16), qh["sh_b1"].reshape(1, Dh),
        qh["sh_w2"].astype(jnp.bfloat16), qh["sh_b2"].reshape(1, -1),
    ]

    return {"pos_embd": raw["pos_embd"].astype(jnp.float32),
            "convs": convs, "enc": enc, "head": head}


# --------------------------------------------------------------------------------------
# Parameter construction (deterministic xavier-uniform, zero biases)
# --------------------------------------------------------------------------------------

def _xavier(key, shape, fan_in, fan_out):
    bound = math.sqrt(6.0 / (fan_in + fan_out))
    return jax.random.uniform(key, shape, jnp.float32, -bound, bound)


def sinusoid_encoding(n_pos, d):
    pos = jnp.arange(n_pos, dtype=jnp.float32)[:, None]
    i = jnp.arange(d, dtype=jnp.float32)[None, :]
    angle = pos / jnp.power(10000.0, (2.0 * jnp.floor(i / 2.0)) / d)
    return jnp.where((jnp.arange(d) % 2)[None, :] == 0, jnp.sin(angle), jnp.cos(angle))


def init_params(key, *, input_feat_dim, embed_dim, conv_kernel_size,
                n_conv_layers, n_encoder_layers, score_bins, max_seq_len):
    keys = iter(jax.random.split(key, 64))
    D, K = embed_dim, conv_kernel_size
    Dh = D // 2
    p = {}

    convs = []
    cin = input_feat_dim
    for _ in range(n_conv_layers):
        w = _xavier(next(keys), (K, cin, D), cin * K, D * K)
        convs.append((w, jnp.zeros((D,), jnp.float32)))
        cin = D
    p["convs"] = convs

    p["pos_embd"] = sinusoid_encoding(max_seq_len, D) / math.sqrt(D)

    enc = []
    for _ in range(n_encoder_layers):
        enc.append({
            "ln1_g": jnp.ones((D,), jnp.float32), "ln1_b": jnp.zeros((D,), jnp.float32),
            "wq": _xavier(next(keys), (D, D), D, D), "bq": jnp.zeros((D,), jnp.float32),
            "wk": _xavier(next(keys), (D, D), D, D), "bk": jnp.zeros((D,), jnp.float32),
            "wv": _xavier(next(keys), (D, D), D, D), "bv": jnp.zeros((D,), jnp.float32),
            "wo": _xavier(next(keys), (D, D), D, D), "bo": jnp.zeros((D,), jnp.float32),
            "ln2_g": jnp.ones((D,), jnp.float32), "ln2_b": jnp.zeros((D,), jnp.float32),
            "ffn_w1": _xavier(next(keys), (D, 4 * D), D, 4 * D),
            "ffn_b1": jnp.zeros((4 * D,), jnp.float32),
            "ffn_w2": _xavier(next(keys), (4 * D, D), 4 * D, D),
            "ffn_b2": jnp.zeros((D,), jnp.float32),
        })
    p["enc_layers"] = enc

    p["qh"] = {
        "cb_w": _xavier(next(keys), (D, Dh), D, Dh), "cb_b": jnp.zeros((Dh,), jnp.float32),
        "mv_w1": _xavier(next(keys), (Dh, Dh), Dh, Dh), "mv_b1": jnp.zeros((Dh,), jnp.float32),
        "mv_w2": _xavier(next(keys), (Dh, D), Dh, D), "mv_b2": jnp.zeros((D,), jnp.float32),
        "sh_w1": _xavier(next(keys), (Dh, Dh), Dh, Dh), "sh_b1": jnp.zeros((Dh,), jnp.float32),
        "sh_w2": _xavier(next(keys), (Dh, score_bins), Dh, score_bins),
        "sh_b2": jnp.zeros((score_bins,), jnp.float32),
        "temperature": jnp.ones((1,), jnp.float32) * 2.0,   # defined but unused in forward()
    }
    return p


# --------------------------------------------------------------------------------------
# Main
# --------------------------------------------------------------------------------------

if __name__ == "__main__":
    B, Cin, T = 2, 48, 16
    embed_dim = 32
    conv_kernel_size = 3
    n_conv_layers = 2
    n_encoder_layers = 2
    n_heads = 4
    num_phases = 4
    score_bins = 8
    max_seq_len = 16
    num_samples = 1

    # static configuration: plain Python ints, passed via closure (never traced)
    cfg = dict(embed_dim=embed_dim, conv_kernel_size=conv_kernel_size,
               n_conv_layers=n_conv_layers, n_encoder_layers=n_encoder_layers,
               n_heads=n_heads, score_bins=score_bins, num_samples=num_samples)

    root = jax.random.PRNGKey(0)
    k_param, k_in, k_act = jax.random.split(root, 3)

    raw_params = init_params(
        k_param,
        input_feat_dim=Cin, embed_dim=embed_dim, conv_kernel_size=conv_kernel_size,
        n_conv_layers=n_conv_layers, n_encoder_layers=n_encoder_layers,
        score_bins=score_bins, max_seq_len=max_seq_len,
    )
    prep = prepare_params(raw_params)    # one-time: bf16 casts / QKV concat / reshapes

    batched_inputs = jax.random.normal(k_in, (B, Cin, T), jnp.float32)
    batched_masks = jnp.ones((B, 1, T), jnp.bool_)
    batched_masks = batched_masks.at[1, 0, 12:].set(False)   # exercise the mask path
    batched_gt_actions = jax.random.randint(k_act, (B, T), 0, num_phases, jnp.int32)

    def fwd_fn(prep_, inputs_, masks_, gts_):
        return aqa_forward(prep_, inputs_, masks_, gts_, cfg)

    fwd = jax.jit(fwd_fn)
    out_dict, losses = fwd(prep, batched_inputs, batched_masks, batched_gt_actions)
    jax.block_until_ready(out_dict["all_sample_outputs"])

    assert out_dict["all_sample_outputs"].shape == (num_samples, B, score_bins)
    assert out_dict["phase_mean_emb"].shape == (B, T, embed_dim // 2)
    assert out_dict["phase_var_emb"].shape == (B, T, embed_dim // 2)
    assert out_dict["global_sqrt_var_emb"].shape == (B, embed_dim // 2)
    assert losses is None
    assert bool(jnp.all(jnp.isfinite(out_dict["all_sample_outputs"])))
    assert bool(jnp.all(jnp.isfinite(out_dict["phase_mean_emb"])))
    assert bool(jnp.all(jnp.isfinite(out_dict["phase_var_emb"])))
    assert bool(jnp.all(jnp.isfinite(out_dict["global_sqrt_var_emb"])))
    print("KERNEL_OK")
</pallas_src>

<mosaic_0001>
module attributes {stable_mosaic.version = 11 : i64} {
  func.func @_aqa_forward_kernel(%arg0: i32, %arg1: memref<1x16x48xf32, #tpu.memory_space<vmem>>, %arg2: memref<1x16x1xf32, #tpu.memory_space<vmem>>, %arg3: memref<1x1x16xf32, #tpu.memory_space<vmem>>, %arg4: memref<16x32xf32, #tpu.memory_space<vmem>>, %arg5: memref<3x48x32xbf16, #tpu.memory_space<vmem>>, %arg6: memref<1x32xf32, #tpu.memory_space<vmem>>, %arg7: memref<3x32x32xbf16, #tpu.memory_space<vmem>>, %arg8: memref<1x32xf32, #tpu.memory_space<vmem>>, %arg9: memref<1x32xf32, #tpu.memory_space<vmem>>, %arg10: memref<1x32xf32, #tpu.memory_space<vmem>>, %arg11: memref<32x96xbf16, #tpu.memory_space<vmem>>, %arg12: memref<1x96xf32, #tpu.memory_space<vmem>>, %arg13: memref<32x32xbf16, #tpu.memory_space<vmem>>, %arg14: memref<1x32xf32, #tpu.memory_space<vmem>>, %arg15: memref<1x32xf32, #tpu.memory_space<vmem>>, %arg16: memref<1x32xf32, #tpu.memory_space<vmem>>, %arg17: memref<32x128xbf16, #tpu.memory_space<vmem>>, %arg18: memref<1x128xf32, #tpu.memory_space<vmem>>, %arg19: memref<128x32xbf16, #tpu.memory_space<vmem>>, %arg20: memref<1x32xf32, #tpu.memory_space<vmem>>, %arg21: memref<1x32xf32, #tpu.memory_space<vmem>>, %arg22: memref<1x32xf32, #tpu.memory_space<vmem>>, %arg23: memref<32x96xbf16, #tpu.memory_space<vmem>>, %arg24: memref<1x96xf32, #tpu.memory_space<vmem>>, %arg25: memref<32x32xbf16, #tpu.memory_space<vmem>>, %arg26: memref<1x32xf32, #tpu.memory_space<vmem>>, %arg27: memref<1x32xf32, #tpu.memory_space<vmem>>, %arg28: memref<1x32xf32, #tpu.memory_space<vmem>>, %arg29: memref<32x128xbf16, #tpu.memory_space<vmem>>, %arg30: memref<1x128xf32, #tpu.memory_space<vmem>>, %arg31: memref<128x32xbf16, #tpu.memory_space<vmem>>, %arg32: memref<1x32xf32, #tpu.memory_space<vmem>>, %arg33: memref<32x16xbf16, #tpu.memory_space<vmem>>, %arg34: memref<1x16xf32, #tpu.memory_space<vmem>>, %arg35: memref<16x16xbf16, #tpu.memory_space<vmem>>, %arg36: memref<1x16xf32, #tpu.memory_space<vmem>>, %arg37: memref<16x32xbf16, #tpu.memory_space<vmem>>, %arg38: memref<1x32xf32, #tpu.memory_space<vmem>>, %arg39: memref<16x16xbf16, #tpu.memory_space<vmem>>, %arg40: memref<1x16xf32, #tpu.memory_space<vmem>>, %arg41: memref<16x8xbf16, #tpu.memory_space<vmem>>, %arg42: memref<1x8xf32, #tpu.memory_space<vmem>>, %arg43: memref<1x16x32xf32, #tpu.memory_space<vmem>>, %arg44: memref<1x1x16xf32, #tpu.memory_space<vmem>>, %arg45: memref<1x1x8xf32, #tpu.memory_space<vmem>>) attributes {dimension_semantics = [#tpu.dimension_semantics<parallel>], iteration_bounds = array<i64: 2>, scalar_prefetch = 0 : i64, scratch_operands = 0 : i64, tpu.core_type = #tpu.core_type<tc>, window_params = [{transform_indices = @transform_0, window_bounds = array<i64: 1, 16, 48>}, {transform_indices = @transform_1, window_bounds = array<i64: 1, 16, 1>}, {transform_indices = @transform_2, window_bounds = array<i64: 1, 1, 16>}, {pipeline_mode = #tpu.pipeline_mode<synchronous>, transform_indices = @transform_3, window_bounds = array<i64: 16, 32>}, {pipeline_mode = #tpu.pipeline_mode<synchronous>, transform_indices = @transform_4, window_bounds = array<i64: 3, 48, 32>}, {pipeline_mode = #tpu.pipeline_mode<synchronous>, transform_indices = @transform_5, window_bounds = array<i64: 1, 32>}, {pipeline_mode = #tpu.pipeline_mode<synchronous>, transform_indices = @transform_6, window_bounds = array<i64: 3, 32, 32>}, {pipeline_mode = #tpu.pipeline_mode<synchronous>, transform_indices = @transform_7, window_bounds = array<i64: 1, 32>}, {pipeline_mode = #tpu.pipeline_mode<synchronous>, transform_indices = @transform_8, window_bounds = array<i64: 1, 32>}, {pipeline_mode = #tpu.pipeline_mode<synchronous>, transform_indices = @transform_9, window_bounds = array<i64: 1, 32>}, {pipeline_mode = #tpu.pipeline_mode<synchronous>, transform_indices = @transform_10, window_bounds = array<i64: 32, 96>}, {pipeline_mode = #tpu.pipeline_mode<synchronous>, transform_indices = @transform_11, window_bounds = array<i64: 1, 96>}, {pipeline_mode = #tpu.pipeline_mode<synchronous>, transform_indices = @transform_12, window_bounds = array<i64: 32, 32>}, {pipeline_mode = #tpu.pipeline_mode<synchronous>, transform_indices = @transform_13, window_bounds = array<i64: 1, 32>}, {pipeline_mode = #tpu.pipeline_mode<synchronous>, transform_indices = @transform_14, window_bounds = array<i64: 1, 32>}, {pipeline_mode = #tpu.pipeline_mode<synchronous>, transform_indices = @transform_15, window_bounds = array<i64: 1, 32>}, {pipeline_mode = #tpu.pipeline_mode<synchronous>, transform_indices = @transform_16, window_bounds = array<i64: 32, 128>}, {pipeline_mode = #tpu.pipeline_mode<synchronous>, transform_indices = @transform_17, window_bounds = array<i64: 1, 128>}, {pipeline_mode = #tpu.pipeline_mode<synchronous>, transform_indices = @transform_18, window_bounds = array<i64: 128, 32>}, {pipeline_mode = #tpu.pipeline_mode<synchronous>, transform_indices = @transform_19, window_bounds = array<i64: 1, 32>}, {pipeline_mode = #tpu.pipeline_mode<synchronous>, transform_indices = @transform_20, window_bounds = array<i64: 1, 32>}, {pipeline_mode = #tpu.pipeline_mode<synchronous>, transform_indices = @transform_21, window_bounds = array<i64: 1, 32>}, {pipeline_mode = #tpu.pipeline_mode<synchronous>, transform_indices = @transform_22, window_bounds = array<i64: 32, 96>}, {pipeline_mode = #tpu.pipeline_mode<synchronous>, transform_indices = @transform_23, window_bounds = array<i64: 1, 96>}, {pipeline_mode = #tpu.pipeline_mode<synchronous>, transform_indices = @transform_24, window_bounds = array<i64: 32, 32>}, {pipeline_mode = #tpu.pipeline_mode<synchronous>, transform_indices = @transform_25, window_bounds = array<i64: 1, 32>}, {pipeline_mode = #tpu.pipeline_mode<synchronous>, transform_indices = @transform_26, window_bounds = array<i64: 1, 32>}, {pipeline_mode = #tpu.pipeline_mode<synchronous>, transform_indices = @transform_27, window_bounds = array<i64: 1, 32>}, {pipeline_mode = #tpu.pipeline_mode<synchronous>, transform_indices = @transform_28, window_bounds = array<i64: 32, 128>}, {pipeline_mode = #tpu.pipeline_mode<synchronous>, transform_indices = @transform_29, window_bounds = array<i64: 1, 128>}, {pipeline_mode = #tpu.pipeline_mode<synchronous>, transform_indices = @transform_30, window_bounds = array<i64: 128, 32>}, {pipeline_mode = #tpu.pipeline_mode<synchronous>, transform_indices = @transform_31, window_bounds = array<i64: 1, 32>}, {pipeline_mode = #tpu.pipeline_mode<synchronous>, transform_indices = @transform_32, window_bounds = array<i64: 32, 16>}, {pipeline_mode = #tpu.pipeline_mode<synchronous>, transform_indices = @transform_33, window_bounds = array<i64: 1, 16>}, {pipeline_mode = #tpu.pipeline_mode<synchronous>, transform_indices = @transform_34, window_bounds = array<i64: 16, 16>}, {pipeline_mode = #tpu.pipeline_mode<synchronous>, transform_indices = @transform_35, window_bounds = array<i64: 1, 16>}, {pipeline_mode = #tpu.pipeline_mode<synchronous>, transform_indices = @transform_36, window_bounds = array<i64: 16, 32>}, {pipeline_mode = #tpu.pipeline_mode<synchronous>, transform_indices = @transform_37, window_bounds = array<i64: 1, 32>}, {pipeline_mode = #tpu.pipeline_mode<synchronous>, transform_indices = @transform_38, window_bounds = array<i64: 16, 16>}, {pipeline_mode = #tpu.pipeline_mode<synchronous>, transform_indices = @transform_39, window_bounds = array<i64: 1, 16>}, {pipeline_mode = #tpu.pipeline_mode<synchronous>, transform_indices = @transform_40, window_bounds = array<i64: 16, 8>}, {pipeline_mode = #tpu.pipeline_mode<synchronous>, transform_indices = @transform_41, window_bounds = array<i64: 1, 8>}, {transform_indices = @transform_42, window_bounds = array<i64: 1, 16, 32>}, {transform_indices = @transform_43, window_bounds = array<i64: 1, 1, 16>}, {transform_indices = @transform_44, window_bounds = array<i64: 1, 1, 8>}]} {
    %c0 = arith.constant 0 : index
    %c0_0 = arith.constant 0 : index
    %c0_1 = arith.constant 0 : index
    %0 = vector.load %arg2[%c0, %c0_0, %c0_1] : memref<1x16x1xf32, #tpu.memory_space<vmem>>, vector<1x16x1xf32>
    %1 = vector.shape_cast %0 : vector<1x16x1xf32> to vector<16x1xf32>
    %c0_2 = arith.constant 0 : index
    %c0_3 = arith.constant 0 : index
    %c0_4 = arith.constant 0 : index
    %2 = vector.load %arg3[%c0_2, %c0_3, %c0_4] : memref<1x1x16xf32, #tpu.memory_space<vmem>>, vector<1x1x16xf32>
    %3 = vector.shape_cast %2 : vector<1x1x16xf32> to vector<1x16xf32>
    %4 = tpu.iota {dimensions = array<i32: 0>} : vector<16x1xi32>
    %c0_5 = arith.constant 0 : index
    %c0_6 = arith.constant 0 : index
    %c0_7 = arith.constant 0 : index
    %5 = vector.load %arg1[%c0_5, %c0_6, %c0_7] : memref<1x16x48xf32, #tpu.memory_space<vmem>>, vector<1x16x48xf32>
    %6 = vector.shape_cast %5 : vector<1x16x48xf32> to vector<16x48xf32>
    %7 = vector.broadcast %1 : vector<16x1xf32> to vector<16x48xf32>
    %8 = arith.mulf %6, %7 : vector<16x48xf32>
    %c0_8 = arith.constant 0 : index
    %c0_9 = arith.constant 0 : index
    %9 = vector.load %arg6[%c0_8, %c0_9] : memref<1x32xf32, #tpu.memory_space<vmem>>, vector<1x32xf32>
    %cst = arith.constant 0.000000e+00 : f32
    %10 = vector.broadcast %cst : f32 to vector<16x32xf32>
    %c1_i32 = arith.constant 1 : i32
    %11 = tpu.dynamic_rotate %8 by %c1_i32 dim 0 : vector<16x48xf32>, i32 -> vector<16x48xf32>
    %c-1_i32 = arith.constant -1 : i32
    %12 = vector.broadcast %c-1_i32 : i32 to vector<16x1xi32>
    %13 = arith.addi %4, %12 : vector<16x1xi32>
    %c0_i32 = arith.constant 0 : i32
    %14 = vector.broadcast %c0_i32 : i32 to vector<16x1xi32>
    %15 = arith.cmpi sge, %13, %14 : vector<16x1xi32>
    %c-1_i32_10 = arith.constant -1 : i32
    %16 = vector.broadcast %c-1_i32_10 : i32 to vector<16x1xi32>
    %17 = arith.addi %4, %16 : vector<16x1xi32>
    %c16_i32 = arith.constant 16 : i32
    %18 = vector.broadcast %c16_i32 : i32 to vector<16x1xi32>
    %19 = arith.cmpi slt, %17, %18 : vector<16x1xi32>
    %20 = arith.andi %15, %19 : vector<16x1xi1>
    %cst_11 = arith.constant 0.000000e+00 : f32
    %21 = vector.shape_cast %20 : vector<16x1xi1> to vector<16x1xi1>
    %22 = vector.broadcast %21 : vector<16x1xi1> to vector<16x48xi1>
    %23 = vector.broadcast %cst_11 : f32 to vector<16x48xf32>
    %24 = arith.select %22, %11, %23 : vector<16x48xi1>, vector<16x48xf32>
    %25 = arith.truncf %24 : vector<16x48xf32> to vector<16x48xbf16>
    %c0_12 = arith.constant 0 : index
    %c0_13 = arith.constant 0 : index
    %c0_14 = arith.constant 0 : index
    %26 = vector.load %arg5[%c0_12, %c0_13, %c0_14] : memref<3x48x32xbf16, #tpu.memory_space<vmem>>, vector<1x48x32xbf16>
    %27 = vector.shape_cast %26 : vector<1x48x32xbf16> to vector<48x32xbf16>
    %cst_15 = arith.constant dense<0.000000e+00> : vector<16x32xf32>
    %28 = tpu.matmul %25, %27, %cst_15 {dimension_numbers = #tpu.dot_dimension_numbers<[1], [0], [0], [1], [0, 0, 1, 1], [], []>} : vector<16x48xbf16>, vector<48x32xbf16>, vector<16x32xf32> -> vector<16x32xf32>
    %29 = arith.addf %10, %28 : vector<16x32xf32>
    %30 = arith.truncf %8 : vector<16x48xf32> to vector<16x48xbf16>
    %c1 = arith.constant 1 : index
    %c0_16 = arith.constant 0 : index
    %c0_17 = arith.constant 0 : index
    %31 = vector.load %arg5[%c1, %c0_16, %c0_17] : memref<3x48x32xbf16, #tpu.memory_space<vmem>>, vector<1x48x32xbf16>
    %32 = vector.shape_cast %31 : vector<1x48x32xbf16> to vector<48x32xbf16>
    %cst_18 = arith.constant dense<0.000000e+00> : vector<16x32xf32>
    %33 = tpu.matmul %30, %32, %cst_18 {dimension_numbers = #tpu.dot_dimension_numbers<[1], [0], [0], [1], [0, 0, 1, 1], [], []>} : vector<16x48xbf16>, vector<48x32xbf16>, vector<16x32xf32> -> vector<16x32xf32>
    %34 = arith.addf %29, %33 : vector<16x32xf32>
    %c15_i32 = arith.constant 15 : i32
    %35 = tpu.dynamic_rotate %8 by %c15_i32 dim 0 : vector<16x48xf32>, i32 -> vector<16x48xf32>
    %c1_i32_19 = arith.constant 1 : i32
    %36 = vector.broadcast %c1_i32_19 : i32 to vector<16x1xi32>
    %37 = arith.addi %4, %36 : vector<16x1xi32>
    %c0_i32_20 = arith.constant 0 : i32
    %38 = vector.broadcast %c0_i32_20 : i32 to vector<16x1xi32>
    %39 = arith.cmpi sge, %37, %38 : vector<16x1xi32>
    %c1_i32_21 = arith.constant 1 : i32
    %40 = vector.broadcast %c1_i32_21 : i32 to vector<16x1xi32>
    %41 = arith.addi %4, %40 : vector<16x1xi32>
    %c16_i32_22 = arith.constant 16 : i32
    %42 = vector.broadcast %c16_i32_22 : i32 to vector<16x1xi32>
    %43 = arith.cmpi slt, %41, %42 : vector<16x1xi32>
    %44 = arith.andi %39, %43 : vector<16x1xi1>
    %cst_23 = arith.constant 0.000000e+00 : f32
    %45 = vector.shape_cast %44 : vector<16x1xi1> to vector<16x1xi1>
    %46 = vector.broadcast %45 : vector<16x1xi1> to vector<16x48xi1>
    %47 = vector.broadcast %cst_23 : f32 to vector<16x48xf32>
    %48 = arith.select %46, %35, %47 : vector<16x48xi1>, vector<16x48xf32>
    %49 = arith.truncf %48 : vector<16x48xf32> to vector<16x48xbf16>
    %c2 = arith.constant 2 : index
    %c0_24 = arith.constant 0 : index
    %c0_25 = arith.constant 0 : index
    %50 = vector.load %arg5[%c2, %c0_24, %c0_25] : memref<3x48x32xbf16, #tpu.memory_space<vmem>>, vector<1x48x32xbf16>
    %51 = vector.shape_cast %50 : vector<1x48x32xbf16> to vector<48x32xbf16>
    %cst_26 = arith.constant dense<0.000000e+00> : vector<16x32xf32>
    %52 = tpu.matmul %49, %51, %cst_26 {dimension_numbers = #tpu.dot_dimension_numbers<[1], [0], [0], [1], [0, 0, 1, 1], [], []>} : vector<16x48xbf16>, vector<48x32xbf16>, vector<16x32xf32> -> vector<16x32xf32>
    %53 = arith.addf %34, %52 : vector<16x32xf32>
    %54 = vector.broadcast %9 : vector<1x32xf32> to vector<16x32xf32>
    %55 = arith.addf %53, %54 : vector<16x32xf32>
    %cst_27 = arith.constant 0.000000e+00 : f32
    %56 = vector.broadcast %cst_27 : f32 to vector<16x32xf32>
    %57 = arith.maximumf %55, %56 : vector<16x32xf32>
    %58 = vector.broadcast %1 : vector<16x1xf32> to vector<16x32xf32>
    %59 = arith.mulf %57, %58 : vector<16x32xf32>
    %c0_28 = arith.constant 0 : index
    %c0_29 = arith.constant 0 : index
    %60 = vector.load %arg8[%c0_28, %c0_29] : memref<1x32xf32, #tpu.memory_space<vmem>>, vector<1x32xf32>
    %cst_30 = arith.constant 0.000000e+00 : f32
    %61 = vector.broadcast %cst_30 : f32 to vector<16x32xf32>
    %c1_i32_31 = arith.constant 1 : i32
    %62 = tpu.dynamic_rotate %59 by %c1_i32_31 dim 0 : vector<16x32xf32>, i32 -> vector<16x32xf32>
    %c-1_i32_32 = arith.constant -1 : i32
    %63 = vector.broadcast %c-1_i32_32 : i32 to vector<16x1xi32>
    %64 = arith.addi %4, %63 : vector<16x1xi32>
    %c0_i32_33 = arith.constant 0 : i32
    %65 = vector.broadcast %c0_i32_33 : i32 to vector<16x1xi32>
    %66 = arith.cmpi sge, %64, %65 : vector<16x1xi32>
    %c-1_i32_34 = arith.constant -1 : i32
    %67 = vector.broadcast %c-1_i32_34 : i32 to vector<16x1xi32>
    %68 = arith.addi %4, %67 : vector<16x1xi32>
    %c16_i32_35 = arith.constant 16 : i32
    %69 = vector.broadcast %c16_i32_35 : i32 to vector<16x1xi32>
    %70 = arith.cmpi slt, %68, %69 : vector<16x1xi32>
    %71 = arith.andi %66, %70 : vector<16x1xi1>
    %cst_36 = arith.constant 0.000000e+00 : f32
    %72 = vector.shape_cast %71 : vector<16x1xi1> to vector<16x1xi1>
    %73 = vector.broadcast %72 : vector<16x1xi1> to vector<16x32xi1>
    %74 = vector.broadcast %cst_36 : f32 to vector<16x32xf32>
    %75 = arith.select %73, %62, %74 : vector<16x32xi1>, vector<16x32xf32>
    %76 = arith.truncf %75 : vector<16x32xf32> to vector<16x32xbf16>
    %c0_37 = arith.constant 0 : index
    %c0_38 = arith.constant 0 : index
    %c0_39 = arith.constant 0 : index
    %77 = vector.load %arg7[%c0_37, %c0_38, %c0_39] : memref<3x32x32xbf16, #tpu.memory_space<vmem>>, vector<1x32x32xbf16>
    %78 = vector.shape_cast %77 : vector<1x32x32xbf16> to vector<32x32xbf16>
    %cst_40 = arith.constant dense<0.000000e+00> : vector<16x32xf32>
    %79 = tpu.matmul %76, %78, %cst_40 {dimension_numbers = #tpu.dot_dimension_numbers<[1], [0], [0], [1], [0, 0, 1, 1], [], []>} : vector<16x32xbf16>, vector<32x32xbf16>, vector<16x32xf32> -> vector<16x32xf32>
    %80 = arith.addf %61, %79 : vector<16x32xf32>
    %81 = arith.truncf %59 : vector<16x32xf32> to vector<16x32xbf16>
    %c1_41 = arith.constant 1 : index
    %c0_42 = arith.constant 0 : index
    %c0_43 = arith.constant 0 : index
    %82 = vector.load %arg7[%c1_41, %c0_42, %c0_43] : memref<3x32x32xbf16, #tpu.memory_space<vmem>>, vector<1x32x32xbf16>
    %83 = vector.shape_cast %82 : vector<1x32x32xbf16> to vector<32x32xbf16>
    %cst_44 = arith.constant dense<0.000000e+00> : vector<16x32xf32>
    %84 = tpu.matmul %81, %83, %cst_44 {dimension_numbers = #tpu.dot_dimension_numbers<[1], [0], [0], [1], [0, 0, 1, 1], [], []>} : vector<16x32xbf16>, vector<32x32xbf16>, vector<16x32xf32> -> vector<16x32xf32>
    %85 = arith.addf %80, %84 : vector<16x32xf32>
    %c15_i32_45 = arith.constant 15 : i32
    %86 = tpu.dynamic_rotate %59 by %c15_i32_45 dim 0 : vector<16x32xf32>, i32 -> vector<16x32xf32>
    %c1_i32_46 = arith.constant 1 : i32
    %87 = vector.broadcast %c1_i32_46 : i32 to vector<16x1xi32>
    %88 = arith.addi %4, %87 : vector<16x1xi32>
    %c0_i32_47 = arith.constant 0 : i32
    %89 = vector.broadcast %c0_i32_47 : i32 to vector<16x1xi32>
    %90 = arith.cmpi sge, %88, %89 : vector<16x1xi32>
    %c1_i32_48 = arith.constant 1 : i32
    %91 = vector.broadcast %c1_i32_48 : i32 to vector<16x1xi32>
    %92 = arith.addi %4, %91 : vector<16x1xi32>
    %c16_i32_49 = arith.constant 16 : i32
    %93 = vector.broadcast %c16_i32_49 : i32 to vector<16x1xi32>
    %94 = arith.cmpi slt, %92, %93 : vector<16x1xi32>
    %95 = arith.andi %90, %94 : vector<16x1xi1>
    %cst_50 = arith.constant 0.000000e+00 : f32
    %96 = vector.shape_cast %95 : vector<16x1xi1> to vector<16x1xi1>
    %97 = vector.broadcast %96 : vector<16x1xi1> to vector<16x32xi1>
    %98 = vector.broadcast %cst_50 : f32 to vector<16x32xf32>
    %99 = arith.select %97, %86, %98 : vector<16x32xi1>, vector<16x32xf32>
    %100 = arith.truncf %99 : vector<16x32xf32> to vector<16x32xbf16>
    %c2_51 = arith.constant 2 : index
    %c0_52 = arith.constant 0 : index
    %c0_53 = arith.constant 0 : index
    %101 = vector.load %arg7[%c2_51, %c0_52, %c0_53] : memref<3x32x32xbf16, #tpu.memory_space<vmem>>, vector<1x32x32xbf16>
    %102 = vector.shape_cast %101 : vector<1x32x32xbf16> to vector<32x32xbf16>
    %cst_54 = arith.constant dense<0.000000e+00> : vector<16x32xf32>
    %103 = tpu.matmul %100, %102, %cst_54 {dimension_numbers = #tpu.dot_dimension_numbers<[1], [0], [0], [1], [0, 0, 1, 1], [], []>} : vector<16x32xbf16>, vector<32x32xbf16>, vector<16x32xf32> -> vector<16x32xf32>
    %104 = arith.addf %85, %103 : vector<16x32xf32>
    %105 = vector.broadcast %60 : vector<1x32xf32> to vector<16x32xf32>
    %106 = arith.addf %104, %105 : vector<16x32xf32>
    %cst_55 = arith.constant 0.000000e+00 : f32
    %107 = vector.broadcast %cst_55 : f32 to vector<16x32xf32>
    %108 = arith.maximumf %106, %107 : vector<16x32xf32>
    %109 = vector.broadcast %1 : vector<16x1xf32> to vector<16x32xf32>
    %110 = arith.mulf %108, %109 : vector<16x32xf32>
    %c0_56 = arith.constant 0 : index
    %c0_57 = arith.constant 0 : index
    %111 = vector.load %arg4[%c0_56, %c0_57] : memref<16x32xf32, #tpu.memory_space<vmem>>, vector<16x32xf32>
    %112 = arith.addf %110, %111 : vector<16x32xf32>
    %113 = vector.broadcast %1 : vector<16x1xf32> to vector<16x32xf32>
    %114 = arith.mulf %112, %113 : vector<16x32xf32>
    %cst_58 = arith.constant 0.000000e+00 : f32
    %115 = vector.broadcast %cst_58 : f32 to vector<1x16xf32>
    %116 = arith.cmpf ogt, %3, %115 : vector<1x16xf32>
    %c0_59 = arith.constant 0 : index
    %c0_60 = arith.constant 0 : index
    %117 = vector.load %arg9[%c0_59, %c0_60] : memref<1x32xf32, #tpu.memory_space<vmem>>, vector<1x32xf32>
    %c0_61 = arith.constant 0 : index
    %c0_62 = arith.constant 0 : index
    %118 = vector.load %arg10[%c0_61, %c0_62] : memref<1x32xf32, #tpu.memory_space<vmem>>, vector<1x32xf32>
    %cst_63 = arith.constant dense<0.000000e+00> : vector<16xf32>
    %119 = vector.multi_reduction <add>, %114, %cst_63 [1] : vector<16x32xf32> to vector<16xf32>
    %120 = vector.shape_cast %119 : vector<16xf32> to vector<16x1xf32>
    %cst_64 = arith.constant 3.200000e+01 : f32
    %121 = vector.broadcast %cst_64 : f32 to vector<16x1xf32>
    %122 = arith.divf %120, %121 : vector<16x1xf32>
    %123 = vector.broadcast %122 : vector<16x1xf32> to vector<16x32xf32>
    %124 = arith.subf %114, %123 : vector<16x32xf32>
    %125 = arith.mulf %124, %124 : vector<16x32xf32>
    %cst_65 = arith.constant dense<0.000000e+00> : vector<16xf32>
    %126 = vector.multi_reduction <add>, %125, %cst_65 [1] : vector<16x32xf32> to vector<16xf32>
    %127 = vector.shape_cast %126 : vector<16xf32> to vector<16x1xf32>
    %cst_66 = arith.constant 3.200000e+01 : f32
    %128 = vector.broadcast %cst_66 : f32 to vector<16x1xf32>
    %129 = arith.divf %127, %128 : vector<16x1xf32>
    %cst_67 = arith.constant 9.99999974E-6 : f32
    %130 = vector.broadcast %cst_67 : f32 to vector<16x1xf32>
    %131 = arith.addf %129, %130 : vector<16x1xf32>
    %132 = math.rsqrt %131 : vector<16x1xf32>
    %133 = vector.broadcast %132 : vector<16x1xf32> to vector<16x32xf32>
    %134 = arith.mulf %124, %133 : vector<16x32xf32>
    %135 = vector.broadcast %117 : vector<1x32xf32> to vector<16x32xf32>
    %136 = arith.mulf %134, %135 : vector<16x32xf32>
    %137 = vector.broadcast %118 : vector<1x32xf32> to vector<16x32xf32>
    %138 = arith.addf %136, %137 : vector<16x32xf32>
    %139 = arith.truncf %138 : vector<16x32xf32> to vector<16x32xbf16>
    %c0_68 = arith.constant 0 : index
    %c0_69 = arith.constant 0 : index
    %140 = vector.load %arg11[%c0_68, %c0_69] : memref<32x96xbf16, #tpu.memory_space<vmem>>, vector<32x96xbf16>
    %cst_70 = arith.constant dense<0.000000e+00> : vector<16x96xf32>
    %141 = tpu.matmul %139, %140, %cst_70 {dimension_numbers = #tpu.dot_dimension_numbers<[1], [0], [0], [1], [0, 0, 1, 1], [], []>} : vector<16x32xbf16>, vector<32x96xbf16>, vector<16x96xf32> -> vector<16x96xf32>
    %c0_71 = arith.constant 0 : index
    %c0_72 = arith.constant 0 : index
    %142 = vector.load %arg12[%c0_71, %c0_72] : memref<1x96xf32, #tpu.memory_space<vmem>>, vector<1x96xf32>
    %143 = vector.broadcast %142 : vector<1x96xf32> to vector<16x96xf32>
    %144 = arith.addf %141, %143 : vector<16x96xf32>
    %c0_73 = arith.constant 0 : index
    %c0_74 = arith.constant 0 : index
    %145 = vector.load %arg13[%c0_73, %c0_74] : memref<32x32xbf16, #tpu.memory_space<vmem>>, vector<32x32xbf16>
    %cst_75 = arith.constant 0.000000e+00 : f32
    %146 = vector.broadcast %cst_75 : f32 to vector<16x32xf32>
    %147 = vector.extract_strided_slice %144 {offsets = [0, 0], sizes = [16, 8], strides = [1, 1]} : vector<16x96xf32> to vector<16x8xf32>
    %148 = vector.extract_strided_slice %144 {offsets = [0, 32], sizes = [16, 8], strides = [1, 1]} : vector<16x96xf32> to vector<16x8xf32>
    %149 = vector.extract_strided_slice %144 {offsets = [0, 64], sizes = [16, 8], strides = [1, 1]} : vector<16x96xf32> to vector<16x8xf32>
    %150 = arith.truncf %147 : vector<16x8xf32> to vector<16x8xbf16>
    %151 = arith.truncf %148 : vector<16x8xf32> to vector<16x8xbf16>
    %cst_76 = arith.constant dense<0.000000e+00> : vector<16x16xf32>
    %152 = tpu.matmul %150, %151, %cst_76 {dimension_numbers = #tpu.dot_dimension_numbers<[1], [1], [0], [0], [0, 0, 1, 0], [], []>} : vector<16x8xbf16>, vector<16x8xbf16>, vector<16x16xf32> -> vector<16x16xf32>
    %cst_77 = arith.constant 0.353553385 : f32
    %153 = vector.broadcast %cst_77 : f32 to vector<16x16xf32>
    %154 = arith.mulf %152, %153 : vector<16x16xf32>
    %cst_78 = arith.constant -1.000000e+30 : f32
    %155 = vector.shape_cast %116 : vector<1x16xi1> to vector<1x16xi1>
    %156 = vector.broadcast %155 : vector<1x16xi1> to vector<16x16xi1>
    %157 = vector.broadcast %cst_78 : f32 to vector<16x16xf32>
    %158 = arith.select %156, %154, %157 : vector<16x16xi1>, vector<16x16xf32>
    %cst_79 = arith.constant dense<0xFF800000> : vector<16xf32>
    %159 = vector.multi_reduction <maximumf>, %158, %cst_79 [1] : vector<16x16xf32> to vector<16xf32>
    %160 = vector.shape_cast %159 : vector<16xf32> to vector<16x1xf32>
    %161 = vector.broadcast %160 : vector<16x1xf32> to vector<16x16xf32>
    %162 = arith.subf %158, %161 : vector<16x16xf32>
    %163 = math.exp %162 : vector<16x16xf32>
    %cst_80 = arith.constant dense<0.000000e+00> : vector<16xf32>
    %164 = vector.multi_reduction <add>, %163, %cst_80 [1] : vector<16x16xf32> to vector<16xf32>
    %165 = vector.shape_cast %164 : vector<16xf32> to vector<16x1xf32>
    %166 = tpu.reciprocal %165 {approx = true} : vector<16x1xf32> -> vector<16x1xf32>
    %167 = arith.truncf %163 : vector<16x16xf32> to vector<16x16xbf16>
    %168 = arith.truncf %149 : vector<16x8xf32> to vector<16x8xbf16>
    %cst_81 = arith.constant dense<0.000000e+00> : vector<16x8xf32>
    %169 = tpu.matmul %167, %168, %cst_81 {dimension_numbers = #tpu.dot_dimension_numbers<[1], [0], [0], [1], [0, 0, 1, 1], [], []>} : vector<16x16xbf16>, vector<16x8xbf16>, vector<16x8xf32> -> vector<16x8xf32>
    %170 = vector.broadcast %166 : vector<16x1xf32> to vector<16x8xf32>
    %171 = arith.mulf %169, %170 : vector<16x8xf32>
    %172 = arith.truncf %171 : vector<16x8xf32> to vector<16x8xbf16>
    %173 = vector.extract_strided_slice %145 {offsets = [0, 0], sizes = [8, 32], strides = [1, 1]} : vector<32x32xbf16> to vector<8x32xbf16>
    %cst_82 = arith.constant dense<0.000000e+00> : vector<16x32xf32>
    %174 = tpu.matmul %172, %173, %cst_82 {dimension_numbers = #tpu.dot_dimension_numbers<[1], [0], [0], [1], [0, 0, 1, 1], [], []>} : vector<16x8xbf16>, vector<8x32xbf16>, vector<16x32xf32> -> vector<16x32xf32>
    %175 = arith.addf %146, %174 : vector<16x32xf32>
    %176 = vector.extract_strided_slice %144 {offsets = [0, 8], sizes = [16, 8], strides = [1, 1]} : vector<16x96xf32> to vector<16x8xf32>
    %177 = vector.extract_strided_slice %144 {offsets = [0, 40], sizes = [16, 8], strides = [1, 1]} : vector<16x96xf32> to vector<16x8xf32>
    %178 = vector.extract_strided_slice %144 {offsets = [0, 72], sizes = [16, 8], strides = [1, 1]} : vector<16x96xf32> to vector<16x8xf32>
    %179 = arith.truncf %176 : vector<16x8xf32> to vector<16x8xbf16>
    %180 = arith.truncf %177 : vector<16x8xf32> to vector<16x8xbf16>
    %cst_83 = arith.constant dense<0.000000e+00> : vector<16x16xf32>
    %181 = tpu.matmul %179, %180, %cst_83 {dimension_numbers = #tpu.dot_dimension_numbers<[1], [1], [0], [0], [0, 0, 1, 0], [], []>} : vector<16x8xbf16>, vector<16x8xbf16>, vector<16x16xf32> -> vector<16x16xf32>
    %cst_84 = arith.constant 0.353553385 : f32
    %182 = vector.broadcast %cst_84 : f32 to vector<16x16xf32>
    %183 = arith.mulf %181, %182 : vector<16x16xf32>
    %cst_85 = arith.constant -1.000000e+30 : f32
    %184 = vector.shape_cast %116 : vector<1x16xi1> to vector<1x16xi1>
    %185 = vector.broadcast %184 : vector<1x16xi1> to vector<16x16xi1>
    %186 = vector.broadcast %cst_85 : f32 to vector<16x16xf32>
    %187 = arith.select %185, %183, %186 : vector<16x16xi1>, vector<16x16xf32>
    %cst_86 = arith.constant dense<0xFF800000> : vector<16xf32>
    %188 = vector.multi_reduction <maximumf>, %187, %cst_86 [1] : vector<16x16xf32> to vector<16xf32>
    %189 = vector.shape_cast %188 : vector<16xf32> to vector<16x1xf32>
    %190 = vector.broadcast %189 : vector<16x1xf32> to vector<16x16xf32>
    %191 = arith.subf %187, %190 : vector<16x16xf32>
    %192 = math.exp %191 : vector<16x16xf32>
    %cst_87 = arith.constant dense<0.000000e+00> : vector<16xf32>
    %193 = vector.multi_reduction <add>, %192, %cst_87 [1] : vector<16x16xf32> to vector<16xf32>
    %194 = vector.shape_cast %193 : vector<16xf32> to vector<16x1xf32>
    %195 = tpu.reciprocal %194 {approx = true} : vector<16x1xf32> -> vector<16x1xf32>
    %196 = arith.truncf %192 : vector<16x16xf32> to vector<16x16xbf16>
    %197 = arith.truncf %178 : vector<16x8xf32> to vector<16x8xbf16>
    %cst_88 = arith.constant dense<0.000000e+00> : vector<16x8xf32>
    %198 = tpu.matmul %196, %197, %cst_88 {dimension_numbers = #tpu.dot_dimension_numbers<[1], [0], [0], [1], [0, 0, 1, 1], [], []>} : vector<16x16xbf16>, vector<16x8xbf16>, vector<16x8xf32> -> vector<16x8xf32>
    %199 = vector.broadcast %195 : vector<16x1xf32> to vector<16x8xf32>
    %200 = arith.mulf %198, %199 : vector<16x8xf32>
    %201 = arith.truncf %200 : vector<16x8xf32> to vector<16x8xbf16>
    %202 = vector.extract_strided_slice %145 {offsets = [8, 0], sizes = [8, 32], strides = [1, 1]} : vector<32x32xbf16> to vector<8x32xbf16>
    %cst_89 = arith.constant dense<0.000000e+00> : vector<16x32xf32>
    %203 = tpu.matmul %201, %202, %cst_89 {dimension_numbers = #tpu.dot_dimension_numbers<[1], [0], [0], [1], [0, 0, 1, 1], [], []>} : vector<16x8xbf16>, vector<8x32xbf16>, vector<16x32xf32> -> vector<16x32xf32>
    %204 = arith.addf %175, %203 : vector<16x32xf32>
    %205 = vector.extract_strided_slice %144 {offsets = [0, 16], sizes = [16, 8], strides = [1, 1]} : vector<16x96xf32> to vector<16x8xf32>
    %206 = vector.extract_strided_slice %144 {offsets = [0, 48], sizes = [16, 8], strides = [1, 1]} : vector<16x96xf32> to vector<16x8xf32>
    %207 = vector.extract_strided_slice %144 {offsets = [0, 80], sizes = [16, 8], strides = [1, 1]} : vector<16x96xf32> to vector<16x8xf32>
    %208 = arith.truncf %205 : vector<16x8xf32> to vector<16x8xbf16>
    %209 = arith.truncf %206 : vector<16x8xf32> to vector<16x8xbf16>
    %cst_90 = arith.constant dense<0.000000e+00> : vector<16x16xf32>
    %210 = tpu.matmul %208, %209, %cst_90 {dimension_numbers = #tpu.dot_dimension_numbers<[1], [1], [0], [0], [0, 0, 1, 0], [], []>} : vector<16x8xbf16>, vector<16x8xbf16>, vector<16x16xf32> -> vector<16x16xf32>
    %cst_91 = arith.constant 0.353553385 : f32
    %211 = vector.broadcast %cst_91 : f32 to vector<16x16xf32>
    %212 = arith.mulf %210, %211 : vector<16x16xf32>
    %cst_92 = arith.constant -1.000000e+30 : f32
    %213 = vector.shape_cast %116 : vector<1x16xi1> to vector<1x16xi1>
    %214 = vector.broadcast %213 : vector<1x16xi1> to vector<16x16xi1>
    %215 = vector.broadcast %cst_92 : f32 to vector<16x16xf32>
    %216 = arith.select %214, %212, %215 : vector<16x16xi1>, vector<16x16xf32>
    %cst_93 = arith.constant dense<0xFF800000> : vector<16xf32>
    %217 = vector.multi_reduction <maximumf>, %216, %cst_93 [1] : vector<16x16xf32> to vector<16xf32>
    %218 = vector.shape_cast %217 : vector<16xf32> to vector<16x1xf32>
    %219 = vector.broadcast %218 : vector<16x1xf32> to vector<16x16xf32>
    %220 = arith.subf %216, %219 : vector<16x16xf32>
    %221 = math.exp %220 : vector<16x16xf32>
    %cst_94 = arith.constant dense<0.000000e+00> : vector<16xf32>
    %222 = vector.multi_reduction <add>, %221, %cst_94 [1] : vector<16x16xf32> to vector<16xf32>
    %223 = vector.shape_cast %222 : vector<16xf32> to vector<16x1xf32>
    %224 = tpu.reciprocal %223 {approx = true} : vector<16x1xf32> -> vector<16x1xf32>
    %225 = arith.truncf %221 : vector<16x16xf32> to vector<16x16xbf16>
    %226 = arith.truncf %207 : vector<16x8xf32> to vector<16x8xbf16>
    %cst_95 = arith.constant dense<0.000000e+00> : vector<16x8xf32>
    %227 = tpu.matmul %225, %226, %cst_95 {dimension_numbers = #tpu.dot_dimension_numbers<[1], [0], [0], [1], [0, 0, 1, 1], [], []>} : vector<16x16xbf16>, vector<16x8xbf16>, vector<16x8xf32> -> vector<16x8xf32>
    %228 = vector.broadcast %224 : vector<16x1xf32> to vector<16x8xf32>
    %229 = arith.mulf %227, %228 : vector<16x8xf32>
    %230 = arith.truncf %229 : vector<16x8xf32> to vector<16x8xbf16>
    %231 = vector.extract_strided_slice %145 {offsets = [16, 0], sizes = [8, 32], strides = [1, 1]} : vector<32x32xbf16> to vector<8x32xbf16>
    %cst_96 = arith.constant dense<0.000000e+00> : vector<16x32xf32>
    %232 = tpu.matmul %230, %231, %cst_96 {dimension_numbers = #tpu.dot_dimension_numbers<[1], [0], [0], [1], [0, 0, 1, 1], [], []>} : vector<16x8xbf16>, vector<8x32xbf16>, vector<16x32xf32> -> vector<16x32xf32>
    %233 = arith.addf %204, %232 : vector<16x32xf32>
    %234 = vector.extract_strided_slice %144 {offsets = [0, 24], sizes = [16, 8], strides = [1, 1]} : vector<16x96xf32> to vector<16x8xf32>
    %235 = vector.extract_strided_slice %144 {offsets = [0, 56], sizes = [16, 8], strides = [1, 1]} : vector<16x96xf32> to vector<16x8xf32>
    %236 = vector.extract_strided_slice %144 {offsets = [0, 88], sizes = [16, 8], strides = [1, 1]} : vector<16x96xf32> to vector<16x8xf32>
    %237 = arith.truncf %234 : vector<16x8xf32> to vector<16x8xbf16>
    %238 = arith.truncf %235 : vector<16x8xf32> to vector<16x8xbf16>
    %cst_97 = arith.constant dense<0.000000e+00> : vector<16x16xf32>
    %239 = tpu.matmul %237, %238, %cst_97 {dimension_numbers = #tpu.dot_dimension_numbers<[1], [1], [0], [0], [0, 0, 1, 0], [], []>} : vector<16x8xbf16>, vector<16x8xbf16>, vector<16x16xf32> -> vector<16x16xf32>
    %cst_98 = arith.constant 0.353553385 : f32
    %240 = vector.broadcast %cst_98 : f32 to vector<16x16xf32>
    %241 = arith.mulf %239, %240 : vector<16x16xf32>
    %cst_99 = arith.constant -1.000000e+30 : f32
    %242 = vector.shape_cast %116 : vector<1x16xi1> to vector<1x16xi1>
    %243 = vector.broadcast %242 : vector<1x16xi1> to vector<16x16xi1>
    %244 = vector.broadcast %cst_99 : f32 to vector<16x16xf32>
    %245 = arith.select %243, %241, %244 : vector<16x16xi1>, vector<16x16xf32>
    %cst_100 = arith.constant dense<0xFF800000> : vector<16xf32>
    %246 = vector.multi_reduction <maximumf>, %245, %cst_100 [1] : vector<16x16xf32> to vector<16xf32>
    %247 = vector.shape_cast %246 : vector<16xf32> to vector<16x1xf32>
    %248 = vector.broadcast %247 : vector<16x1xf32> to vector<16x16xf32>
    %249 = arith.subf %245, %248 : vector<16x16xf32>
    %250 = math.exp %249 : vector<16x16xf32>
    %cst_101 = arith.constant dense<0.000000e+00> : vector<16xf32>
    %251 = vector.multi_reduction <add>, %250, %cst_101 [1] : vector<16x16xf32> to vector<16xf32>
    %252 = vector.shape_cast %251 : vector<16xf32> to vector<16x1xf32>
    %253 = tpu.reciprocal %252 {approx = true} : vector<16x1xf32> -> vector<16x1xf32>
    %254 = arith.truncf %250 : vector<16x16xf32> to vector<16x16xbf16>
    %255 = arith.truncf %236 : vector<16x8xf32> to vector<16x8xbf16>
    %cst_102 = arith.constant dense<0.000000e+00> : vector<16x8xf32>
    %256 = tpu.matmul %254, %255, %cst_102 {dimension_numbers = #tpu.dot_dimension_numbers<[1], [0], [0], [1], [0, 0, 1, 1], [], []>} : vector<16x16xbf16>, vector<16x8xbf16>, vector<16x8xf32> -> vector<16x8xf32>
    %257 = vector.broadcast %253 : vector<16x1xf32> to vector<16x8xf32>
    %258 = arith.mulf %256, %257 : vector<16x8xf32>
    %259 = arith.truncf %258 : vector<16x8xf32> to vector<16x8xbf16>
    %260 = vector.extract_strided_slice %145 {offsets = [24, 0], sizes = [8, 32], strides = [1, 1]} : vector<32x32xbf16> to vector<8x32xbf16>
    %cst_103 = arith.constant dense<0.000000e+00> : vector<16x32xf32>
    %261 = tpu.matmul %259, %260, %cst_103 {dimension_numbers = #tpu.dot_dimension_numbers<[1], [0], [0], [1], [0, 0, 1, 1], [], []>} : vector<16x8xbf16>, vector<8x32xbf16>, vector<16x32xf32> -> vector<16x32xf32>
    %262 = arith.addf %233, %261 : vector<16x32xf32>
    %c0_104 = arith.constant 0 : index
    %c0_105 = arith.constant 0 : index
    %263 = vector.load %arg14[%c0_104, %c0_105] : memref<1x32xf32, #tpu.memory_space<vmem>>, vector<1x32xf32>
    %264 = vector.broadcast %263 : vector<1x32xf32> to vector<16x32xf32>
    %265 = arith.addf %262, %264 : vector<16x32xf32>
    %266 = vector.broadcast %1 : vector<16x1xf32> to vector<16x32xf32>
    %267 = arith.mulf %265, %266 : vector<16x32xf32>
    %268 = arith.addf %114, %267 : vector<16x32xf32>
    %c0_106 = arith.constant 0 : index
    %c0_107 = arith.constant 0 : index
    %269 = vector.load %arg15[%c0_106, %c0_107] : memref<1x32xf32, #tpu.memory_space<vmem>>, vector<1x32xf32>
    %c0_108 = arith.constant 0 : index
    %c0_109 = arith.constant 0 : index
    %270 = vector.load %arg16[%c0_108, %c0_109] : memref<1x32xf32, #tpu.memory_space<vmem>>, vector<1x32xf32>
    %cst_110 = arith.constant dense<0.000000e+00> : vector<16xf32>
    %271 = vector.multi_reduction <add>, %268, %cst_110 [1] : vector<16x32xf32> to vector<16xf32>
    %272 = vector.shape_cast %271 : vector<16xf32> to vector<16x1xf32>
    %cst_111 = arith.constant 3.200000e+01 : f32
    %273 = vector.broadcast %cst_111 : f32 to vector<16x1xf32>
    %274 = arith.divf %272, %273 : vector<16x1xf32>
    %275 = vector.broadcast %274 : vector<16x1xf32> to vector<16x32xf32>
    %276 = arith.subf %268, %275 : vector<16x32xf32>
    %277 = arith.mulf %276, %276 : vector<16x32xf32>
    %cst_112 = arith.constant dense<0.000000e+00> : vector<16xf32>
    %278 = vector.multi_reduction <add>, %277, %cst_112 [1] : vector<16x32xf32> to vector<16xf32>
    %279 = vector.shape_cast %278 : vector<16xf32> to vector<16x1xf32>
    %cst_113 = arith.constant 3.200000e+01 : f32
    %280 = vector.broadcast %cst_113 : f32 to vector<16x1xf32>
    %281 = arith.divf %279, %280 : vector<16x1xf32>
    %cst_114 = arith.constant 9.99999974E-6 : f32
    %282 = vector.broadcast %cst_114 : f32 to vector<16x1xf32>
    %283 = arith.addf %281, %282 : vector<16x1xf32>
    %284 = math.rsqrt %283 : vector<16x1xf32>
    %285 = vector.broadcast %284 : vector<16x1xf32> to vector<16x32xf32>
    %286 = arith.mulf %276, %285 : vector<16x32xf32>
    %287 = vector.broadcast %269 : vector<1x32xf32> to vector<16x32xf32>
    %288 = arith.mulf %286, %287 : vector<16x32xf32>
    %289 = vector.broadcast %270 : vector<1x32xf32> to vector<16x32xf32>
    %290 = arith.addf %288, %289 : vector<16x32xf32>
    %291 = arith.truncf %290 : vector<16x32xf32> to vector<16x32xbf16>
    %c0_115 = arith.constant 0 : index
    %c0_116 = arith.constant 0 : index
    %292 = vector.load %arg17[%c0_115, %c0_116] : memref<32x128xbf16, #tpu.memory_space<vmem>>, vector<32x128xbf16>
    %cst_117 = arith.constant dense<0.000000e+00> : vector<16x128xf32>
    %293 = tpu.matmul %291, %292, %cst_117 {dimension_numbers = #tpu.dot_dimension_numbers<[1], [0], [0], [1], [0, 0, 1, 1], [], []>} : vector<16x32xbf16>, vector<32x128xbf16>, vector<16x128xf32> -> vector<16x128xf32>
    %c0_118 = arith.constant 0 : index
    %c0_119 = arith.constant 0 : index
    %294 = vector.load %arg18[%c0_118, %c0_119] : memref<1x128xf32, #tpu.memory_space<vmem>>, vector<1x128xf32>
    %295 = vector.broadcast %294 : vector<1x128xf32> to vector<16x128xf32>
    %296 = arith.addf %293, %295 : vector<16x128xf32>
    %cst_120 = arith.constant 5.000000e-01 : f32
    %297 = vector.broadcast %cst_120 : f32 to vector<16x128xf32>
    %298 = arith.mulf %297, %296 : vector<16x128xf32>
    %cst_121 = arith.constant 0.707106769 : f32
    %299 = vector.broadcast %cst_121 : f32 to vector<16x128xf32>
    %300 = arith.mulf %296, %299 : vector<16x128xf32>
    %cst_122 = arith.constant 0.000000e+00 : f32
    %301 = vector.broadcast %cst_122 : f32 to vector<16x128xf32>
    %302 = arith.cmpf oge, %300, %301 : vector<16x128xf32>
    %cst_123 = arith.constant 1.000000e+00 : f32
    %cst_124 = arith.constant -1.000000e+00 : f32
    %303 = vector.broadcast %cst_123 : f32 to vector<16x128xf32>
    %304 = vector.broadcast %cst_124 : f32 to vector<16x128xf32>
    %305 = arith.select %302, %303, %304 : vector<16x128xi1>, vector<16x128xf32>
    %306 = math.absf %300 : vector<16x128xf32>
    %cst_125 = arith.constant 0.327591091 : f32
    %307 = vector.broadcast %cst_125 : f32 to vector<16x128xf32>
    %308 = arith.mulf %307, %306 : vector<16x128xf32>
    %cst_126 = arith.constant 1.000000e+00 : f32
    %309 = vector.broadcast %cst_126 : f32 to vector<16x128xf32>
    %310 = arith.addf %309, %308 : vector<16x128xf32>
    %cst_127 = arith.constant 1.000000e+00 : f32
    %311 = vector.broadcast %cst_127 : f32 to vector<16x128xf32>
    %312 = arith.divf %311, %310 : vector<16x128xf32>
    %cst_128 = arith.constant 1.06140542 : f32
    %313 = vector.broadcast %cst_128 : f32 to vector<16x128xf32>
    %314 = arith.mulf %313, %312 : vector<16x128xf32>
    %cst_129 = arith.constant -1.45315206 : f32
    %315 = vector.broadcast %cst_129 : f32 to vector<16x128xf32>
    %316 = arith.addf %314, %315 : vector<16x128xf32>
    %317 = arith.mulf %316, %312 : vector<16x128xf32>
    %cst_130 = arith.constant 1.42141378 : f32
    %318 = vector.broadcast %cst_130 : f32 to vector<16x128xf32>
    %319 = arith.addf %317, %318 : vector<16x128xf32>
    %320 = arith.mulf %319, %312 : vector<16x128xf32>
    %cst_131 = arith.constant -0.284496725 : f32
    %321 = vector.broadcast %cst_131 : f32 to vector<16x128xf32>
    %322 = arith.addf %320, %321 : vector<16x128xf32>
    %323 = arith.mulf %322, %312 : vector<16x128xf32>
    %cst_132 = arith.constant 0.254829586 : f32
    %324 = vector.broadcast %cst_132 : f32 to vector<16x128xf32>
    %325 = arith.addf %323, %324 : vector<16x128xf32>
    %326 = arith.mulf %325, %312 : vector<16x128xf32>
    %cst_133 = arith.constant 0.000000e+00 : f32
    %327 = vector.broadcast %cst_133 : f32 to vector<16x128xf32>
    %328 = arith.subf %327, %306 : vector<16x128xf32>
    %329 = arith.mulf %328, %306 : vector<16x128xf32>
    %330 = math.exp %329 : vector<16x128xf32>
    %331 = arith.mulf %326, %330 : vector<16x128xf32>
    %cst_134 = arith.constant 1.000000e+00 : f32
    %332 = vector.broadcast %cst_134 : f32 to vector<16x128xf32>
    %333 = arith.subf %332, %331 : vector<16x128xf32>
    %334 = arith.mulf %305, %333 : vector<16x128xf32>
    %cst_135 = arith.constant 1.000000e+00 : f32
    %335 = vector.broadcast %cst_135 : f32 to vector<16x128xf32>
    %336 = arith.addf %335, %334 : vector<16x128xf32>
    %337 = arith.mulf %298, %336 : vector<16x128xf32>
    %338 = arith.truncf %337 : vector<16x128xf32> to vector<16x128xbf16>
    %c0_136 = arith.constant 0 : index
    %c0_137 = arith.constant 0 : index
    %339 = vector.load %arg19[%c0_136, %c0_137] : memref<128x32xbf16, #tpu.memory_space<vmem>>, vector<128x32xbf16>
    %cst_138 = arith.constant dense<0.000000e+00> : vector<16x32xf32>
    %340 = tpu.matmul %338, %339, %cst_138 {dimension_numbers = #tpu.dot_dimension_numbers<[1], [0], [0], [1], [0, 0, 1, 1], [], []>} : vector<16x128xbf16>, vector<128x32xbf16>, vector<16x32xf32> -> vector<16x32xf32>
    %c0_139 = arith.constant 0 : index
    %c0_140 = arith.constant 0 : index
    %341 = vector.load %arg20[%c0_139, %c0_140] : memref<1x32xf32, #tpu.memory_space<vmem>>, vector<1x32xf32>
    %342 = vector.broadcast %341 : vector<1x32xf32> to vector<16x32xf32>
    %343 = arith.addf %340, %342 : vector<16x32xf32>
    %344 = vector.broadcast %1 : vector<16x1xf32> to vector<16x32xf32>
    %345 = arith.mulf %343, %344 : vector<16x32xf32>
    %346 = arith.addf %268, %345 : vector<16x32xf32>
    %c0_141 = arith.constant 0 : index
    %c0_142 = arith.constant 0 : index
    %347 = vector.load %arg21[%c0_141, %c0_142] : memref<1x32xf32, #tpu.memory_space<vmem>>, vector<1x32xf32>
    %c0_143 = arith.constant 0 : index
    %c0_144 = arith.constant 0 : index
    %348 = vector.load %arg22[%c0_143, %c0_144] : memref<1x32xf32, #tpu.memory_space<vmem>>, vector<1x32xf32>
    %cst_145 = arith.constant dense<0.000000e+00> : vector<16xf32>
    %349 = vector.multi_reduction <add>, %346, %cst_145 [1] : vector<16x32xf32> to vector<16xf32>
    %350 = vector.shape_cast %349 : vector<16xf32> to vector<16x1xf32>
    %cst_146 = arith.constant 3.200000e+01 : f32
    %351 = vector.broadcast %cst_146 : f32 to vector<16x1xf32>
    %352 = arith.divf %350, %351 : vector<16x1xf32>
    %353 = vector.broadcast %352 : vector<16x1xf32> to vector<16x32xf32>
    %354 = arith.subf %346, %353 : vector<16x32xf32>
    %355 = arith.mulf %354, %354 : vector<16x32xf32>
    %cst_147 = arith.constant dense<0.000000e+00> : vector<16xf32>
    %356 = vector.multi_reduction <add>, %355, %cst_147 [1] : vector<16x32xf32> to vector<16xf32>
    %357 = vector.shape_cast %356 : vector<16xf32> to vector<16x1xf32>
    %cst_148 = arith.constant 3.200000e+01 : f32
    %358 = vector.broadcast %cst_148 : f32 to vector<16x1xf32>
    %359 = arith.divf %357, %358 : vector<16x1xf32>
    %cst_149 = arith.constant 9.99999974E-6 : f32
    %360 = vector.broadcast %cst_149 : f32 to vector<16x1xf32>
    %361 = arith.addf %359, %360 : vector<16x1xf32>
    %362 = math.rsqrt %361 : vector<16x1xf32>
    %363 = vector.broadcast %362 : vector<16x1xf32> to vector<16x32xf32>
    %364 = arith.mulf %354, %363 : vector<16x32xf32>
    %365 = vector.broadcast %347 : vector<1x32xf32> to vector<16x32xf32>
    %366 = arith.mulf %364, %365 : vector<16x32xf32>
    %367 = vector.broadcast %348 : vector<1x32xf32> to vector<16x32xf32>
    %368 = arith.addf %366, %367 : vector<16x32xf32>
    %369 = arith.truncf %368 : vector<16x32xf32> to vector<16x32xbf16>
    %c0_150 = arith.constant 0 : index
    %c0_151 = arith.constant 0 : index
    %370 = vector.load %arg23[%c0_150, %c0_151] : memref<32x96xbf16, #tpu.memory_space<vmem>>, vector<32x96xbf16>
    %cst_152 = arith.constant dense<0.000000e+00> : vector<16x96xf32>
    %371 = tpu.matmul %369, %370, %cst_152 {dimension_numbers = #tpu.dot_dimension_numbers<[1], [0], [0], [1], [0, 0, 1, 1], [], []>} : vector<16x32xbf16>, vector<32x96xbf16>, vector<16x96xf32> -> vector<16x96xf32>
    %c0_153 = arith.constant 0 : index
    %c0_154 = arith.constant 0 : index
    %372 = vector.load %arg24[%c0_153, %c0_154] : memref<1x96xf32, #tpu.memory_space<vmem>>, vector<1x96xf32>
    %373 = vector.broadcast %372 : vector<1x96xf32> to vector<16x96xf32>
    %374 = arith.addf %371, %373 : vector<16x96xf32>
    %c0_155 = arith.constant 0 : index
    %c0_156 = arith.constant 0 : index
    %375 = vector.load %arg25[%c0_155, %c0_156] : memref<32x32xbf16, #tpu.memory_space<vmem>>, vector<32x32xbf16>
    %cst_157 = arith.constant 0.000000e+00 : f32
    %376 = vector.broadcast %cst_157 : f32 to vector<16x32xf32>
    %377 = vector.extract_strided_slice %374 {offsets = [0, 0], sizes = [16, 8], strides = [1, 1]} : vector<16x96xf32> to vector<16x8xf32>
    %378 = vector.extract_strided_slice %374 {offsets = [0, 32], sizes = [16, 8], strides = [1, 1]} : vector<16x96xf32> to vector<16x8xf32>
    %379 = vector.extract_strided_slice %374 {offsets = [0, 64], sizes = [16, 8], strides = [1, 1]} : vector<16x96xf32> to vector<16x8xf32>
    %380 = arith.truncf %377 : vector<16x8xf32> to vector<16x8xbf16>
    %381 = arith.truncf %378 : vector<16x8xf32> to vector<16x8xbf16>
    %cst_158 = arith.constant dense<0.000000e+00> : vector<16x16xf32>
    %382 = tpu.matmul %380, %381, %cst_158 {dimension_numbers = #tpu.dot_dimension_numbers<[1], [1], [0], [0], [0, 0, 1, 0], [], []>} : vector<16x8xbf16>, vector<16x8xbf16>, vector<16x16xf32> -> vector<16x16xf32>
    %cst_159 = arith.constant 0.353553385 : f32
    %383 = vector.broadcast %cst_159 : f32 to vector<16x16xf32>
    %384 = arith.mulf %382, %383 : vector<16x16xf32>
    %cst_160 = arith.constant -1.000000e+30 : f32
    %385 = vector.shape_cast %116 : vector<1x16xi1> to vector<1x16xi1>
    %386 = vector.broadcast %385 : vector<1x16xi1> to vector<16x16xi1>
    %387 = vector.broadcast %cst_160 : f32 to vector<16x16xf32>
    %388 = arith.select %386, %384, %387 : vector<16x16xi1>, vector<16x16xf32>
    %cst_161 = arith.constant dense<0xFF800000> : vector<16xf32>
    %389 = vector.multi_reduction <maximumf>, %388, %cst_161 [1] : vector<16x16xf32> to vector<16xf32>
    %390 = vector.shape_cast %389 : vector<16xf32> to vector<16x1xf32>
    %391 = vector.broadcast %390 : vector<16x1xf32> to vector<16x16xf32>
    %392 = arith.subf %388, %391 : vector<16x16xf32>
    %393 = math.exp %392 : vector<16x16xf32>
    %cst_162 = arith.constant dense<0.000000e+00> : vector<16xf32>
    %394 = vector.multi_reduction <add>, %393, %cst_162 [1] : vector<16x16xf32> to vector<16xf32>
    %395 = vector.shape_cast %394 : vector<16xf32> to vector<16x1xf32>
    %396 = tpu.reciprocal %395 {approx = true} : vector<16x1xf32> -> vector<16x1xf32>
    %397 = arith.truncf %393 : vector<16x16xf32> to vector<16x16xbf16>
    %398 = arith.truncf %379 : vector<16x8xf32> to vector<16x8xbf16>
    %cst_163 = arith.constant dense<0.000000e+00> : vector<16x8xf32>
    %399 = tpu.matmul %397, %398, %cst_163 {dimension_numbers = #tpu.dot_dimension_numbers<[1], [0], [0], [1], [0, 0, 1, 1], [], []>} : vector<16x16xbf16>, vector<16x8xbf16>, vector<16x8xf32> -> vector<16x8xf32>
    %400 = vector.broadcast %396 : vector<16x1xf32> to vector<16x8xf32>
    %401 = arith.mulf %399, %400 : vector<16x8xf32>
    %402 = arith.truncf %401 : vector<16x8xf32> to vector<16x8xbf16>
    %403 = vector.extract_strided_slice %375 {offsets = [0, 0], sizes = [8, 32], strides = [1, 1]} : vector<32x32xbf16> to vector<8x32xbf16>
    %cst_164 = arith.constant dense<0.000000e+00> : vector<16x32xf32>
    %404 = tpu.matmul %402, %403, %cst_164 {dimension_numbers = #tpu.dot_dimension_numbers<[1], [0], [0], [1], [0, 0, 1, 1], [], []>} : vector<16x8xbf16>, vector<8x32xbf16>, vector<16x32xf32> -> vector<16x32xf32>
    %405 = arith.addf %376, %404 : vector<16x32xf32>
    %406 = vector.extract_strided_slice %374 {offsets = [0, 8], sizes = [16, 8], strides = [1, 1]} : vector<16x96xf32> to vector<16x8xf32>
    %407 = vector.extract_strided_slice %374 {offsets = [0, 40], sizes = [16, 8], strides = [1, 1]} : vector<16x96xf32> to vector<16x8xf32>
    %408 = vector.extract_strided_slice %374 {offsets = [0, 72], sizes = [16, 8], strides = [1, 1]} : vector<16x96xf32> to vector<16x8xf32>
    %409 = arith.truncf %406 : vector<16x8xf32> to vector<16x8xbf16>
    %410 = arith.truncf %407 : vector<16x8xf32> to vector<16x8xbf16>
    %cst_165 = arith.constant dense<0.000000e+00> : vector<16x16xf32>
    %411 = tpu.matmul %409, %410, %cst_165 {dimension_numbers = #tpu.dot_dimension_numbers<[1], [1], [0], [0], [0, 0, 1, 0], [], []>} : vector<16x8xbf16>, vector<16x8xbf16>, vector<16x16xf32> -> vector<16x16xf32>
    %cst_166 = arith.constant 0.353553385 : f32
    %412 = vector.broadcast %cst_166 : f32 to vector<16x16xf32>
    %413 = arith.mulf %411, %412 : vector<16x16xf32>
    %cst_167 = arith.constant -1.000000e+30 : f32
    %414 = vector.shape_cast %116 : vector<1x16xi1> to vector<1x16xi1>
    %415 = vector.broadcast %414 : vector<1x16xi1> to vector<16x16xi1>
    %416 = vector.broadcast %cst_167 : f32 to vector<16x16xf32>
    %417 = arith.select %415, %413, %416 : vector<16x16xi1>, vector<16x16xf32>
    %cst_168 = arith.constant dense<0xFF800000> : vector<16xf32>
    %418 = vector.multi_reduction <maximumf>, %417, %cst_168 [1] : vector<16x16xf32> to vector<16xf32>
    %419 = vector.shape_cast %418 : vector<16xf32> to vector<16x1xf32>
    %420 = vector.broadcast %419 : vector<16x1xf32> to vector<16x16xf32>
    %421 = arith.subf %417, %420 : vector<16x16xf32>
    %422 = math.exp %421 : vector<16x16xf32>
    %cst_169 = arith.constant dense<0.000000e+00> : vector<16xf32>
    %423 = vector.multi_reduction <add>, %422, %cst_169 [1] : vector<16x16xf32> to vector<16xf32>
    %424 = vector.shape_cast %423 : vector<16xf32> to vector<16x1xf32>
    %425 = tpu.reciprocal %424 {approx = true} : vector<16x1xf32> -> vector<16x1xf32>
    %426 = arith.truncf %422 : vector<16x16xf32> to vector<16x16xbf16>
    %427 = arith.truncf %408 : vector<16x8xf32> to vector<16x8xbf16>
    %cst_170 = arith.constant dense<0.000000e+00> : vector<16x8xf32>
    %428 = tpu.matmul %426, %427, %cst_170 {dimension_numbers = #tpu.dot_dimension_numbers<[1], [0], [0], [1], [0, 0, 1, 1], [], []>} : vector<16x16xbf16>, vector<16x8xbf16>, vector<16x8xf32> -> vector<16x8xf32>
    %429 = vector.broadcast %425 : vector<16x1xf32> to vector<16x8xf32>
    %430 = arith.mulf %428, %429 : vector<16x8xf32>
    %431 = arith.truncf %430 : vector<16x8xf32> to vector<16x8xbf16>
    %432 = vector.extract_strided_slice %375 {offsets = [8, 0], sizes = [8, 32], strides = [1, 1]} : vector<32x32xbf16> to vector<8x32xbf16>
    %cst_171 = arith.constant dense<0.000000e+00> : vector<16x32xf32>
    %433 = tpu.matmul %431, %432, %cst_171 {dimension_numbers = #tpu.dot_dimension_numbers<[1], [0], [0], [1], [0, 0, 1, 1], [], []>} : vector<16x8xbf16>, vector<8x32xbf16>, vector<16x32xf32> -> vector<16x32xf32>
    %434 = arith.addf %405, %433 : vector<16x32xf32>
    %435 = vector.extract_strided_slice %374 {offsets = [0, 16], sizes = [16, 8], strides = [1, 1]} : vector<16x96xf32> to vector<16x8xf32>
    %436 = vector.extract_strided_slice %374 {offsets = [0, 48], sizes = [16, 8], strides = [1, 1]} : vector<16x96xf32> to vector<16x8xf32>
    %437 = vector.extract_strided_slice %374 {offsets = [0, 80], sizes = [16, 8], strides = [1, 1]} : vector<16x96xf32> to vector<16x8xf32>
    %438 = arith.truncf %435 : vector<16x8xf32> to vector<16x8xbf16>
    %439 = arith.truncf %436 : vector<16x8xf32> to vector<16x8xbf16>
    %cst_172 = arith.constant dense<0.000000e+00> : vector<16x16xf32>
    %440 = tpu.matmul %438, %439, %cst_172 {dimension_numbers = #tpu.dot_dimension_numbers<[1], [1], [0], [0], [0, 0, 1, 0], [], []>} : vector<16x8xbf16>, vector<16x8xbf16>, vector<16x16xf32> -> vector<16x16xf32>
    %cst_173 = arith.constant 0.353553385 : f32
    %441 = vector.broadcast %cst_173 : f32 to vector<16x16xf32>
    %442 = arith.mulf %440, %441 : vector<16x16xf32>
    %cst_174 = arith.constant -1.000000e+30 : f32
    %443 = vector.shape_cast %116 : vector<1x16xi1> to vector<1x16xi1>
    %444 = vector.broadcast %443 : vector<1x16xi1> to vector<16x16xi1>
    %445 = vector.broadcast %cst_174 : f32 to vector<16x16xf32>
    %446 = arith.select %444, %442, %445 : vector<16x16xi1>, vector<16x16xf32>
    %cst_175 = arith.constant dense<0xFF800000> : vector<16xf32>
    %447 = vector.multi_reduction <maximumf>, %446, %cst_175 [1] : vector<16x16xf32> to vector<16xf32>
    %448 = vector.shape_cast %447 : vector<16xf32> to vector<16x1xf32>
    %449 = vector.broadcast %448 : vector<16x1xf32> to vector<16x16xf32>
    %450 = arith.subf %446, %449 : vector<16x16xf32>
    %451 = math.exp %450 : vector<16x16xf32>
    %cst_176 = arith.constant dense<0.000000e+00> : vector<16xf32>
    %452 = vector.multi_reduction <add>, %451, %cst_176 [1] : vector<16x16xf32> to vector<16xf32>
    %453 = vector.shape_cast %452 : vector<16xf32> to vector<16x1xf32>
    %454 = tpu.reciprocal %453 {approx = true} : vector<16x1xf32> -> vector<16x1xf32>
    %455 = arith.truncf %451 : vector<16x16xf32> to vector<16x16xbf16>
    %456 = arith.truncf %437 : vector<16x8xf32> to vector<16x8xbf16>
    %cst_177 = arith.constant dense<0.000000e+00> : vector<16x8xf32>
    %457 = tpu.matmul %455, %456, %cst_177 {dimension_numbers = #tpu.dot_dimension_numbers<[1], [0], [0], [1], [0, 0, 1, 1], [], []>} : vector<16x16xbf16>, vector<16x8xbf16>, vector<16x8xf32> -> vector<16x8xf32>
    %458 = vector.broadcast %454 : vector<16x1xf32> to vector<16x8xf32>
    %459 = arith.mulf %457, %458 : vector<16x8xf32>
    %460 = arith.truncf %459 : vector<16x8xf32> to vector<16x8xbf16>
    %461 = vector.extract_strided_slice %375 {offsets = [16, 0], sizes = [8, 32], strides = [1, 1]} : vector<32x32xbf16> to vector<8x32xbf16>
    %cst_178 = arith.constant dense<0.000000e+00> : vector<16x32xf32>
    %462 = tpu.matmul %460, %461, %cst_178 {dimension_numbers = #tpu.dot_dimension_numbers<[1], [0], [0], [1], [0, 0, 1, 1], [], []>} : vector<16x8xbf16>, vector<8x32xbf16>, vector<16x32xf32> -> vector<16x32xf32>
    %463 = arith.addf %434, %462 : vector<16x32xf32>
    %464 = vector.extract_strided_slice %374 {offsets = [0, 24], sizes = [16, 8], strides = [1, 1]} : vector<16x96xf32> to vector<16x8xf32>
    %465 = vector.extract_strided_slice %374 {offsets = [0, 56], sizes = [16, 8], strides = [1, 1]} : vector<16x96xf32> to vector<16x8xf32>
    %466 = vector.extract_strided_slice %374 {offsets = [0, 88], sizes = [16, 8], strides = [1, 1]} : vector<16x96xf32> to vector<16x8xf32>
    %467 = arith.truncf %464 : vector<16x8xf32> to vector<16x8xbf16>
    %468 = arith.truncf %465 : vector<16x8xf32> to vector<16x8xbf16>
    %cst_179 = arith.constant dense<0.000000e+00> : vector<16x16xf32>
    %469 = tpu.matmul %467, %468, %cst_179 {dimension_numbers = #tpu.dot_dimension_numbers<[1], [1], [0], [0], [0, 0, 1, 0], [], []>} : vector<16x8xbf16>, vector<16x8xbf16>, vector<16x16xf32> -> vector<16x16xf32>
    %cst_180 = arith.constant 0.353553385 : f32
    %470 = vector.broadcast %cst_180 : f32 to vector<16x16xf32>
    %471 = arith.mulf %469, %470 : vector<16x16xf32>
    %cst_181 = arith.constant -1.000000e+30 : f32
    %472 = vector.shape_cast %116 : vector<1x16xi1> to vector<1x16xi1>
    %473 = vector.broadcast %472 : vector<1x16xi1> to vector<16x16xi1>
    %474 = vector.broadcast %cst_181 : f32 to vector<16x16xf32>
    %475 = arith.select %473, %471, %474 : vector<16x16xi1>, vector<16x16xf32>
    %cst_182 = arith.constant dense<0xFF800000> : vector<16xf32>
    %476 = vector.multi_reduction <maximumf>, %475, %cst_182 [1] : vector<16x16xf32> to vector<16xf32>
    %477 = vector.shape_cast %476 : vector<16xf32> to vector<16x1xf32>
    %478 = vector.broadcast %477 : vector<16x1xf32> to vector<16x16xf32>
    %479 = arith.subf %475, %478 : vector<16x16xf32>
    %480 = math.exp %479 : vector<16x16xf32>
    %cst_183 = arith.constant dense<0.000000e+00> : vector<16xf32>
    %481 = vector.multi_reduction <add>, %480, %cst_183 [1] : vector<16x16xf32> to vector<16xf32>
    %482 = vector.shape_cast %481 : vector<16xf32> to vector<16x1xf32>
    %483 = tpu.reciprocal %482 {approx = true} : vector<16x1xf32> -> vector<16x1xf32>
    %484 = arith.truncf %480 : vector<16x16xf32> to vector<16x16xbf16>
    %485 = arith.truncf %466 : vector<16x8xf32> to vector<16x8xbf16>
    %cst_184 = arith.constant dense<0.000000e+00> : vector<16x8xf32>
    %486 = tpu.matmul %484, %485, %cst_184 {dimension_numbers = #tpu.dot_dimension_numbers<[1], [0], [0], [1], [0, 0, 1, 1], [], []>} : vector<16x16xbf16>, vector<16x8xbf16>, vector<16x8xf32> -> vector<16x8xf32>
    %487 = vector.broadcast %483 : vector<16x1xf32> to vector<16x8xf32>
    %488 = arith.mulf %486, %487 : vector<16x8xf32>
    %489 = arith.truncf %488 : vector<16x8xf32> to vector<16x8xbf16>
    %490 = vector.extract_strided_slice %375 {offsets = [24, 0], sizes = [8, 32], strides = [1, 1]} : vector<32x32xbf16> to vector<8x32xbf16>
    %cst_185 = arith.constant dense<0.000000e+00> : vector<16x32xf32>
    %491 = tpu.matmul %489, %490, %cst_185 {dimension_numbers = #tpu.dot_dimension_numbers<[1], [0], [0], [1], [0, 0, 1, 1], [], []>} : vector<16x8xbf16>, vector<8x32xbf16>, vector<16x32xf32> -> vector<16x32xf32>
    %492 = arith.addf %463, %491 : vector<16x32xf32>
    %c0_186 = arith.constant 0 : index
    %c0_187 = arith.constant 0 : index
    %493 = vector.load %arg26[%c0_186, %c0_187] : memref<1x32xf32, #tpu.memory_space<vmem>>, vector<1x32xf32>
    %494 = vector.broadcast %493 : vector<1x32xf32> to vector<16x32xf32>
    %495 = arith.addf %492, %494 : vector<16x32xf32>
    %496 = vector.broadcast %1 : vector<16x1xf32> to vector<16x32xf32>
    %497 = arith.mulf %495, %496 : vector<16x32xf32>
    %498 = arith.addf %346, %497 : vector<16x32xf32>
    %c0_188 = arith.constant 0 : index
    %c0_189 = arith.constant 0 : index
    %499 = vector.load %arg27[%c0_188, %c0_189] : memref<1x32xf32, #tpu.memory_space<vmem>>, vector<1x32xf32>
    %c0_190 = arith.constant 0 : index
    %c0_191 = arith.constant 0 : index
    %500 = vector.load %arg28[%c0_190, %c0_191] : memref<1x32xf32, #tpu.memory_space<vmem>>, vector<1x32xf32>
    %cst_192 = arith.constant dense<0.000000e+00> : vector<16xf32>
    %501 = vector.multi_reduction <add>, %498, %cst_192 [1] : vector<16x32xf32> to vector<16xf32>
    %502 = vector.shape_cast %501 : vector<16xf32> to vector<16x1xf32>
    %cst_193 = arith.constant 3.200000e+01 : f32
    %503 = vector.broadcast %cst_193 : f32 to vector<16x1xf32>
    %504 = arith.divf %502, %503 : vector<16x1xf32>
    %505 = vector.broadcast %504 : vector<16x1xf32> to vector<16x32xf32>
    %506 = arith.subf %498, %505 : vector<16x32xf32>
    %507 = arith.mulf %506, %506 : vector<16x32xf32>
    %cst_194 = arith.constant dense<0.000000e+00> : vector<16xf32>
    %508 = vector.multi_reduction <add>, %507, %cst_194 [1] : vector<16x32xf32> to vector<16xf32>
    %509 = vector.shape_cast %508 : vector<16xf32> to vector<16x1xf32>
    %cst_195 = arith.constant 3.200000e+01 : f32
    %510 = vector.broadcast %cst_195 : f32 to vector<16x1xf32>
    %511 = arith.divf %509, %510 : vector<16x1xf32>
    %cst_196 = arith.constant 9.99999974E-6 : f32
    %512 = vector.broadcast %cst_196 : f32 to vector<16x1xf32>
    %513 = arith.addf %511, %512 : vector<16x1xf32>
    %514 = math.rsqrt %513 : vector<16x1xf32>
    %515 = vector.broadcast %514 : vector<16x1xf32> to vector<16x32xf32>
    %516 = arith.mulf %506, %515 : vector<16x32xf32>
    %517 = vector.broadcast %499 : vector<1x32xf32> to vector<16x32xf32>
    %518 = arith.mulf %516, %517 : vector<16x32xf32>
    %519 = vector.broadcast %500 : vector<1x32xf32> to vector<16x32xf32>
    %520 = arith.addf %518, %519 : vector<16x32xf32>
    %521 = arith.truncf %520 : vector<16x32xf32> to vector<16x32xbf16>
    %c0_197 = arith.constant 0 : index
    %c0_198 = arith.constant 0 : index
    %522 = vector.load %arg29[%c0_197, %c0_198] : memref<32x128xbf16, #tpu.memory_space<vmem>>, vector<32x128xbf16>
    %cst_199 = arith.constant dense<0.000000e+00> : vector<16x128xf32>
    %523 = tpu.matmul %521, %522, %cst_199 {dimension_numbers = #tpu.dot_dimension_numbers<[1], [0], [0], [1], [0, 0, 1, 1], [], []>} : vector<16x32xbf16>, vector<32x128xbf16>, vector<16x128xf32> -> vector<16x128xf32>
    %c0_200 = arith.constant 0 : index
    %c0_201 = arith.constant 0 : index
    %524 = vector.load %arg30[%c0_200, %c0_201] : memref<1x128xf32, #tpu.memory_space<vmem>>, vector<1x128xf32>
    %525 = vector.broadcast %524 : vector<1x128xf32> to vector<16x128xf32>
    %526 = arith.addf %523, %525 : vector<16x128xf32>
    %cst_202 = arith.constant 5.000000e-01 : f32
    %527 = vector.broadcast %cst_202 : f32 to vector<16x128xf32>
    %528 = arith.mulf %527, %526 : vector<16x128xf32>
    %cst_203 = arith.constant 0.707106769 : f32
    %529 = vector.broadcast %cst_203 : f32 to vector<16x128xf32>
    %530 = arith.mulf %526, %529 : vector<16x128xf32>
    %cst_204 = arith.constant 0.000000e+00 : f32
    %531 = vector.broadcast %cst_204 : f32 to vector<16x128xf32>
    %532 = arith.cmpf oge, %530, %531 : vector<16x128xf32>
    %cst_205 = arith.constant 1.000000e+00 : f32
    %cst_206 = arith.constant -1.000000e+00 : f32
    %533 = vector.broadcast %cst_205 : f32 to vector<16x128xf32>
    %534 = vector.broadcast %cst_206 : f32 to vector<16x128xf32>
    %535 = arith.select %532, %533, %534 : vector<16x128xi1>, vector<16x128xf32>
    %536 = math.absf %530 : vector<16x128xf32>
    %cst_207 = arith.constant 0.327591091 : f32
    %537 = vector.broadcast %cst_207 : f32 to vector<16x128xf32>
    %538 = arith.mulf %537, %536 : vector<16x128xf32>
    %cst_208 = arith.constant 1.000000e+00 : f32
    %539 = vector.broadcast %cst_208 : f32 to vector<16x128xf32>
    %540 = arith.addf %539, %538 : vector<16x128xf32>
    %cst_209 = arith.constant 1.000000e+00 : f32
    %541 = vector.broadcast %cst_209 : f32 to vector<16x128xf32>
    %542 = arith.divf %541, %540 : vector<16x128xf32>
    %cst_210 = arith.constant 1.06140542 : f32
    %543 = vector.broadcast %cst_210 : f32 to vector<16x128xf32>
    %544 = arith.mulf %543, %542 : vector<16x128xf32>
    %cst_211 = arith.constant -1.45315206 : f32
    %545 = vector.broadcast %cst_211 : f32 to vector<16x128xf32>
    %546 = arith.addf %544, %545 : vector<16x128xf32>
    %547 = arith.mulf %546, %542 : vector<16x128xf32>
    %cst_212 = arith.constant 1.42141378 : f32
    %548 = vector.broadcast %cst_212 : f32 to vector<16x128xf32>
    %549 = arith.addf %547, %548 : vector<16x128xf32>
    %550 = arith.mulf %549, %542 : vector<16x128xf32>
    %cst_213 = arith.constant -0.284496725 : f32
    %551 = vector.broadcast %cst_213 : f32 to vector<16x128xf32>
    %552 = arith.addf %550, %551 : vector<16x128xf32>
    %553 = arith.mulf %552, %542 : vector<16x128xf32>
    %cst_214 = arith.constant 0.254829586 : f32
    %554 = vector.broadcast %cst_214 : f32 to vector<16x128xf32>
    %555 = arith.addf %553, %554 : vector<16x128xf32>
    %556 = arith.mulf %555, %542 : vector<16x128xf32>
    %cst_215 = arith.constant 0.000000e+00 : f32
    %557 = vector.broadcast %cst_215 : f32 to vector<16x128xf32>
    %558 = arith.subf %557, %536 : vector<16x128xf32>
    %559 = arith.mulf %558, %536 : vector<16x128xf32>
    %560 = math.exp %559 : vector<16x128xf32>
    %561 = arith.mulf %556, %560 : vector<16x128xf32>
    %cst_216 = arith.constant 1.000000e+00 : f32
    %562 = vector.broadcast %cst_216 : f32 to vector<16x128xf32>
    %563 = arith.subf %562, %561 : vector<16x128xf32>
    %564 = arith.mulf %535, %563 : vector<16x128xf32>
    %cst_217 = arith.constant 1.000000e+00 : f32
    %565 = vector.broadcast %cst_217 : f32 to vector<16x128xf32>
    %566 = arith.addf %565, %564 : vector<16x128xf32>
    %567 = arith.mulf %528, %566 : vector<16x128xf32>
    %568 = arith.truncf %567 : vector<16x128xf32> to vector<16x128xbf16>
    %c0_218 = arith.constant 0 : index
    %c0_219 = arith.constant 0 : index
    %569 = vector.load %arg31[%c0_218, %c0_219] : memref<128x32xbf16, #tpu.memory_space<vmem>>, vector<128x32xbf16>
    %cst_220 = arith.constant dense<0.000000e+00> : vector<16x32xf32>
    %570 = tpu.matmul %568, %569, %cst_220 {dimension_numbers = #tpu.dot_dimension_numbers<[1], [0], [0], [1], [0, 0, 1, 1], [], []>} : vector<16x128xbf16>, vector<128x32xbf16>, vector<16x32xf32> -> vector<16x32xf32>
    %c0_221 = arith.constant 0 : index
    %c0_222 = arith.constant 0 : index
    %571 = vector.load %arg32[%c0_221, %c0_222] : memref<1x32xf32, #tpu.memory_space<vmem>>, vector<1x32xf32>
    %572 = vector.broadcast %571 : vector<1x32xf32> to vector<16x32xf32>
    %573 = arith.addf %570, %572 : vector<16x32xf32>
    %574 = vector.broadcast %1 : vector<16x1xf32> to vector<16x32xf32>
    %575 = arith.mulf %573, %574 : vector<16x32xf32>
    %576 = arith.addf %498, %575 : vector<16x32xf32>
    %577 = arith.truncf %576 : vector<16x32xf32> to vector<16x32xbf16>
    %c0_223 = arith.constant 0 : index
    %c0_224 = arith.constant 0 : index
    %578 = vector.load %arg33[%c0_223, %c0_224] : memref<32x16xbf16, #tpu.memory_space<vmem>>, vector<32x16xbf16>
    %cst_225 = arith.constant dense<0.000000e+00> : vector<16x16xf32>
    %579 = tpu.matmul %577, %578, %cst_225 {dimension_numbers = #tpu.dot_dimension_numbers<[1], [0], [0], [1], [0, 0, 1, 1], [], []>} : vector<16x32xbf16>, vector<32x16xbf16>, vector<16x16xf32> -> vector<16x16xf32>
    %c0_226 = arith.constant 0 : index
    %c0_227 = arith.constant 0 : index
    %580 = vector.load %arg34[%c0_226, %c0_227] : memref<1x16xf32, #tpu.memory_space<vmem>>, vector<1x16xf32>
    %581 = vector.broadcast %580 : vector<1x16xf32> to vector<16x16xf32>
    %582 = arith.addf %579, %581 : vector<16x16xf32>
    %cst_228 = arith.constant 0.000000e+00 : f32
    %583 = vector.broadcast %cst_228 : f32 to vector<16x16xf32>
    %584 = arith.maximumf %582, %583 : vector<16x16xf32>
    %585 = arith.truncf %584 : vector<16x16xf32> to vector<16x16xbf16>
    %c0_229 = arith.constant 0 : index
    %c0_230 = arith.constant 0 : index
    %586 = vector.load %arg35[%c0_229, %c0_230] : memref<16x16xbf16, #tpu.memory_space<vmem>>, vector<16x16xbf16>
    %cst_231 = arith.constant dense<0.000000e+00> : vector<16x16xf32>
    %587 = tpu.matmul %585, %586, %cst_231 {dimension_numbers = #tpu.dot_dimension_numbers<[1], [0], [0], [1], [0, 0, 1, 1], [], []>} : vector<16x16xbf16>, vector<16x16xbf16>, vector<16x16xf32> -> vector<16x16xf32>
    %c0_232 = arith.constant 0 : index
    %c0_233 = arith.constant 0 : index
    %588 = vector.load %arg36[%c0_232, %c0_233] : memref<1x16xf32, #tpu.memory_space<vmem>>, vector<1x16xf32>
    %589 = vector.broadcast %588 : vector<1x16xf32> to vector<16x16xf32>
    %590 = arith.addf %587, %589 : vector<16x16xf32>
    %cst_234 = arith.constant 0.000000e+00 : f32
    %591 = vector.broadcast %cst_234 : f32 to vector<16x16xf32>
    %592 = arith.maximumf %590, %591 : vector<16x16xf32>
    %593 = arith.truncf %592 : vector<16x16xf32> to vector<16x16xbf16>
    %c0_235 = arith.constant 0 : index
    %c0_236 = arith.constant 0 : index
    %594 = vector.load %arg37[%c0_235, %c0_236] : memref<16x32xbf16, #tpu.memory_space<vmem>>, vector<16x32xbf16>
    %cst_237 = arith.constant dense<0.000000e+00> : vector<16x32xf32>
    %595 = tpu.matmul %593, %594, %cst_237 {dimension_numbers = #tpu.dot_dimension_numbers<[1], [0], [0], [1], [0, 0, 1, 1], [], []>} : vector<16x16xbf16>, vector<16x32xbf16>, vector<16x32xf32> -> vector<16x32xf32>
    %c0_238 = arith.constant 0 : index
    %c0_239 = arith.constant 0 : index
    %596 = vector.load %arg38[%c0_238, %c0_239] : memref<1x32xf32, #tpu.memory_space<vmem>>, vector<1x32xf32>
    %597 = vector.broadcast %596 : vector<1x32xf32> to vector<16x32xf32>
    %598 = arith.addf %595, %597 : vector<16x32xf32>
    %599 = tpu.iota {dimensions = array<i32: 1>} : vector<16x32xi32>
    %c16_i32_240 = arith.constant 16 : i32
    %600 = vector.broadcast %c16_i32_240 : i32 to vector<16x32xi32>
    %601 = arith.cmpi slt, %599, %600 : vector<16x32xi32>
    %602 = math.exp %598 : vector<16x32xf32>
    %603 = arith.select %601, %598, %602 : vector<16x32xi1>, vector<16x32xf32>
    %c0_241 = arith.constant 0 : index
    %c0_242 = arith.constant 0 : index
    %c0_243 = arith.constant 0 : index
    %604 = vector.load %arg43[%c0_241, %c0_242, %c0_243] : memref<1x16x32xf32, #tpu.memory_space<vmem>>, vector<1x16x32xf32>
    %605 = vector.shape_cast %604 : vector<1x16x32xf32> to vector<16x32xf32>
    %606 = vector.shape_cast %603 : vector<16x32xf32> to vector<1x16x32xf32>
    tpu.vector_store %arg43[%c0_241, %c0_242, %c0_243], %606 {strides = array<i32>} : memref<1x16x32xf32, #tpu.memory_space<vmem>>, vector<1x16x32xf32>,
    %cst_244 = arith.constant dense<0.000000e+00> : vector<1xf32>
    %607 = vector.multi_reduction <add>, %1, %cst_244 [0] : vector<16x1xf32> to vector<1xf32>
    %608 = vector.shape_cast %607 : vector<1xf32> to vector<1x1xf32>
    %cst_245 = arith.constant 1.000000e+00 : f32
    %609 = vector.broadcast %cst_245 : f32 to vector<1x1xf32>
    %610 = arith.maximumf %608, %609 : vector<1x1xf32>
    %611 = vector.broadcast %1 : vector<16x1xf32> to vector<16x32xf32>
    %612 = arith.mulf %603, %611 : vector<16x32xf32>
    %cst_246 = arith.constant dense<0.000000e+00> : vector<32xf32>
    %613 = vector.multi_reduction <add>, %612, %cst_246 [0] : vector<16x32xf32> to vector<32xf32>
    %614 = vector.shape_cast %613 : vector<32xf32> to vector<1x32xf32>
    %615 = vector.broadcast %610 : vector<1x1xf32> to vector<1x32xf32>
    %616 = arith.divf %614, %615 : vector<1x32xf32>
    %617 = vector.extract_strided_slice %616 {offsets = [0, 0], sizes = [1, 16], strides = [1, 1]} : vector<1x32xf32> to vector<1x16xf32>
    %618 = vector.extract_strided_slice %616 {offsets = [0, 16], sizes = [1, 16], strides = [1, 1]} : vector<1x32xf32> to vector<1x16xf32>
    %619 = math.sqrt %618 : vector<1x16xf32>
    %c0_247 = arith.constant 0 : index
    %c0_248 = arith.constant 0 : index
    %c0_249 = arith.constant 0 : index
    %620 = vector.load %arg44[%c0_247, %c0_248, %c0_249] : memref<1x1x16xf32, #tpu.memory_space<vmem>>, vector<1x1x16xf32>
    %621 = vector.shape_cast %620 : vector<1x1x16xf32> to vector<1x16xf32>
    %622 = vector.shape_cast %619 : vector<1x16xf32> to vector<1x1x16xf32>
    tpu.vector_store %arg44[%c0_247, %c0_248, %c0_249], %622 {strides = array<i32>} : memref<1x1x16xf32, #tpu.memory_space<vmem>>, vector<1x1x16xf32>,
    %623 = arith.truncf %617 : vector<1x16xf32> to vector<1x16xbf16>
    %c0_250 = arith.constant 0 : index
    %c0_251 = arith.constant 0 : index
    %624 = vector.load %arg39[%c0_250, %c0_251] : memref<16x16xbf16, #tpu.memory_space<vmem>>, vector<16x16xbf16>
    %cst_252 = arith.constant dense<0.000000e+00> : vector<1x16xf32>
    %625 = tpu.matmul %623, %624, %cst_252 {dimension_numbers = #tpu.dot_dimension_numbers<[1], [0], [0], [1], [0, 0, 1, 1], [], []>} : vector<1x16xbf16>, vector<16x16xbf16>, vector<1x16xf32> -> vector<1x16xf32>
    %c0_253 = arith.constant 0 : index
    %c0_254 = arith.constant 0 : index
    %626 = vector.load %arg40[%c0_253, %c0_254] : memref<1x16xf32, #tpu.memory_space<vmem>>, vector<1x16xf32>
    %627 = arith.addf %625, %626 : vector<1x16xf32>
    %cst_255 = arith.constant 0.000000e+00 : f32
    %628 = vector.broadcast %cst_255 : f32 to vector<1x16xf32>
    %629 = arith.maximumf %627, %628 : vector<1x16xf32>
    %630 = arith.truncf %629 : vector<1x16xf32> to vector<1x16xbf16>
    %c0_256 = arith.constant 0 : index
    %c0_257 = arith.constant 0 : index
    %631 = vector.load %arg41[%c0_256, %c0_257] : memref<16x8xbf16, #tpu.memory_space<vmem>>, vector<16x8xbf16>
    %cst_258 = arith.constant dense<0.000000e+00> : vector<1x8xf32>
    %632 = tpu.matmul %630, %631, %cst_258 {dimension_numbers = #tpu.dot_dimension_numbers<[1], [0], [0], [1], [0, 0, 1, 1], [], []>} : vector<1x16xbf16>, vector<16x8xbf16>, vector<1x8xf32> -> vector<1x8xf32>
    %c0_259 = arith.constant 0 : index
    %c0_260 = arith.constant 0 : index
    %633 = vector.load %arg42[%c0_259, %c0_260] : memref<1x8xf32, #tpu.memory_space<vmem>>, vector<1x8xf32>
    %634 = arith.addf %632, %633 : vector<1x8xf32>
    %c0_261 = arith.constant 0 : index
    %c0_262 = arith.constant 0 : index
    %c0_263 = arith.constant 0 : index
    %635 = vector.load %arg45[%c0_261, %c0_262, %c0_263] : memref<1x1x8xf32, #tpu.memory_space<vmem>>, vector<1x1x8xf32>
    %636 = vector.shape_cast %635 : vector<1x1x8xf32> to vector<1x8xf32>
    %637 = vector.shape_cast %634 : vector<1x8xf32> to vector<1x1x8xf32>
    tpu.vector_store %arg45[%c0_261, %c0_262, %c0_263], %637 {strides = array<i32>} : memref<1x1x8xf32, #tpu.memory_space<vmem>>, vector<1x1x8xf32>,
    return
  }
  func.func @transform_0(%arg0: i32) -> (i32, i32, i32) {
    %c0_i32 = arith.constant 0 : i32
    %c0_i32_0 = arith.constant 0 : i32
    %c0_i32_1 = arith.constant 0 : i32
    return %arg0, %c0_i32, %c0_i32_0 : i32, i32, i32
  }
  func.func @transform_1(%arg0: i32) -> (i32, i32, i32) {
    %c0_i32 = arith.constant 0 : i32
    %c0_i32_0 = arith.constant 0 : i32
    %c0_i32_1 = arith.constant 0 : i32
    return %arg0, %c0_i32, %c0_i32_0 : i32, i32, i32
  }
  func.func @transform_2(%arg0: i32) -> (i32, i32, i32) {
    %c0_i32 = arith.constant 0 : i32
    %c0_i32_0 = arith.constant 0 : i32
    %c0_i32_1 = arith.constant 0 : i32
    return %arg0, %c0_i32, %c0_i32_0 : i32, i32, i32
  }
  func.func @transform_3(%arg0: i32) -> (i32, i32) {
    %c0_i32 = arith.constant 0 : i32
    %c0_i32_0 = arith.constant 0 : i32
    %c0_i32_1 = arith.constant 0 : i32
    return %c0_i32, %c0_i32_0 : i32, i32
  }
  func.func @transform_4(%arg0: i32) -> (i32, i32, i32) {
    %c0_i32 = arith.constant 0 : i32
    %c0_i32_0 = arith.constant 0 : i32
    %c0_i32_1 = arith.constant 0 : i32
    %c0_i32_2 = arith.constant 0 : i32
    return %c0_i32, %c0_i32_0, %c0_i32_1 : i32, i32, i32
  }
  func.func @transform_5(%arg0: i32) -> (i32, i32) {
    %c0_i32 = arith.constant 0 : i32
    %c0_i32_0 = arith.constant 0 : i32
    %c0_i32_1 = arith.constant 0 : i32
    return %c0_i32, %c0_i32_0 : i32, i32
  }
  func.func @transform_6(%arg0: i32) -> (i32, i32, i32) {
    %c0_i32 = arith.constant 0 : i32
    %c0_i32_0 = arith.constant 0 : i32
    %c0_i32_1 = arith.constant 0 : i32
    %c0_i32_2 = arith.constant 0 : i32
    return %c0_i32, %c0_i32_0, %c0_i32_1 : i32, i32, i32
  }
  func.func @transform_7(%arg0: i32) -> (i32, i32) {
    %c0_i32 = arith.constant 0 : i32
    %c0_i32_0 = arith.constant 0 : i32
    %c0_i32_1 = arith.constant 0 : i32
    return %c0_i32, %c0_i32_0 : i32, i32
  }
  func.func @transform_8(%arg0: i32) -> (i32, i32) {
    %c0_i32 = arith.constant 0 : i32
    %c0_i32_0 = arith.constant 0 : i32
    %c0_i32_1 = arith.constant 0 : i32
    return %c0_i32, %c0_i32_0 : i32, i32
  }
  func.func @transform_9(%arg0: i32) -> (i32, i32) {
    %c0_i32 = arith.constant 0 : i32
    %c0_i32_0 = arith.constant 0 : i32
    %c0_i32_1 = arith.constant 0 : i32
    return %c0_i32, %c0_i32_0 : i32, i32
  }
  func.func @transform_10(%arg0: i32) -> (i32, i32) {
    %c0_i32 = arith.constant 0 : i32
    %c0_i32_0 = arith.constant 0 : i32
    %c0_i32_1 = arith.constant 0 : i32
    return %c0_i32, %c0_i32_0 : i32, i32
  }
  func.func @transform_11(%arg0: i32) -> (i32, i32) {
    %c0_i32 = arith.constant 0 : i32
    %c0_i32_0 = arith.constant 0 : i32
    %c0_i32_1 = arith.constant 0 : i32
    return %c0_i32, %c0_i32_0 : i32, i32
  }
  func.func @transform_12(%arg0: i32) -> (i32, i32) {
    %c0_i32 = arith.constant 0 : i32
    %c0_i32_0 = arith.constant 0 : i32
    %c0_i32_1 = arith.constant 0 : i32
    return %c0_i32, %c0_i32_0 : i32, i32
  }
  func.func @transform_13(%arg0: i32) -> (i32, i32) {
    %c0_i32 = arith.constant 0 : i32
    %c0_i32_0 = arith.constant 0 : i32
    %c0_i32_1 = arith.constant 0 : i32
    return %c0_i32, %c0_i32_0 : i32, i32
  }
  func.func @transform_14(%arg0: i32) -> (i32, i32) {
    %c0_i32 = arith.constant 0 : i32
    %c0_i32_0 = arith.constant 0 : i32
    %c0_i32_1 = arith.constant 0 : i32
    return %c0_i32, %c0_i32_0 : i32, i32
  }
  func.func @transform_15(%arg0: i32) -> (i32, i32) {
    %c0_i32 = arith.constant 0 : i32
    %c0_i32_0 = arith.constant 0 : i32
    %c0_i32_1 = arith.constant 0 : i32
    return %c0_i32, %c0_i32_0 : i32, i32
  }
  func.func @transform_16(%arg0: i32) -> (i32, i32) {
    %c0_i32 = arith.constant 0 : i32
    %c0_i32_0 = arith.constant 0 : i32
    %c0_i32_1 = arith.constant 0 : i32
    return %c0_i32, %c0_i32_0 : i32, i32
  }
  func.func @transform_17(%arg0: i32) -> (i32, i32) {
    %c0_i32 = arith.constant 0 : i32
    %c0_i32_0 = arith.constant 0 : i32
    %c0_i32_1 = arith.constant 0 : i32
    return %c0_i32, %c0_i32_0 : i32, i32
  }
  func.func @transform_18(%arg0: i32) -> (i32, i32) {
    %c0_i32 = arith.constant 0 : i32
    %c0_i32_0 = arith.constant 0 : i32
    %c0_i32_1 = arith.constant 0 : i32
    return %c0_i32, %c0_i32_0 : i32, i32
  }
  func.func @transform_19(%arg0: i32) -> (i32, i32) {
    %c0_i32 = arith.constant 0 : i32
    %c0_i32_0 = arith.constant 0 : i32
    %c0_i32_1 = arith.constant 0 : i32
    return %c0_i32, %c0_i32_0 : i32, i32
  }
  func.func @transform_20(%arg0: i32) -> (i32, i32) {
    %c0_i32 = arith.constant 0 : i32
    %c0_i32_0 = arith.constant 0 : i32
    %c0_i32_1 = arith.constant 0 : i32
    return %c0_i32, %c0_i32_0 : i32, i32
  }
  func.func @transform_21(%arg0: i32) -> (i32, i32) {
    %c0_i32 = arith.constant 0 : i32
    %c0_i32_0 = arith.constant 0 : i32
    %c0_i32_1 = arith.constant 0 : i32
    return %c0_i32, %c0_i32_0 : i32, i32
  }
  func.func @transform_22(%arg0: i32) -> (i32, i32) {
    %c0_i32 = arith.constant 0 : i32
    %c0_i32_0 = arith.constant 0 : i32
    %c0_i32_1 = arith.constant 0 : i32
    return %c0_i32, %c0_i32_0 : i32, i32
  }
  func.func @transform_23(%arg0: i32) -> (i32, i32) {
    %c0_i32 = arith.constant 0 : i32
    %c0_i32_0 = arith.constant 0 : i32
    %c0_i32_1 = arith.constant 0 : i32
    return %c0_i32, %c0_i32_0 : i32, i32
  }
  func.func @transform_24(%arg0: i32) -> (i32, i32) {
    %c0_i32 = arith.constant 0 : i32
    %c0_i32_0 = arith.constant 0 : i32
    %c0_i32_1 = arith.constant 0 : i32
    return %c0_i32, %c0_i32_0 : i32, i32
  }
  func.func @transform_25(%arg0: i32) -> (i32, i32) {
    %c0_i32 = arith.constant 0 : i32
    %c0_i32_0 = arith.constant 0 : i32
    %c0_i32_1 = arith.constant 0 : i32
    return %c0_i32, %c0_i32_0 : i32, i32
  }
  func.func @transform_26(%arg0: i32) -> (i32, i32) {
    %c0_i32 = arith.constant 0 : i32
    %c0_i32_0 = arith.constant 0 : i32
    %c0_i32_1 = arith.constant 0 : i32
    return %c0_i32, %c0_i32_0 : i32, i32
  }
  func.func @transform_27(%arg0: i32) -> (i32, i32) {
    %c0_i32 = arith.constant 0 : i32
    %c0_i32_0 = arith.constant 0 : i32
    %c0_i32_1 = arith.constant 0 : i32
    return %c0_i32, %c0_i32_0 : i32, i32
  }
  func.func @transform_28(%arg0: i32) -> (i32, i32) {
    %c0_i32 = arith.constant 0 : i32
    %c0_i32_0 = arith.constant 0 : i32
    %c0_i32_1 = arith.constant 0 : i32
    return %c0_i32, %c0_i32_0 : i32, i32
  }
  func.func @transform_29(%arg0: i32) -> (i32, i32) {
    %c0_i32 = arith.constant 0 : i32
    %c0_i32_0 = arith.constant 0 : i32
    %c0_i32_1 = arith.constant 0 : i32
    return %c0_i32, %c0_i32_0 : i32, i32
  }
  func.func @transform_30(%arg0: i32) -> (i32, i32) {
    %c0_i32 = arith.constant 0 : i32
    %c0_i32_0 = arith.constant 0 : i32
    %c0_i32_1 = arith.constant 0 : i32
    return %c0_i32, %c0_i32_0 : i32, i32
  }
  func.func @transform_31(%arg0: i32) -> (i32, i32) {
    %c0_i32 = arith.constant 0 : i32
    %c0_i32_0 = arith.constant 0 : i32
    %c0_i32_1 = arith.constant 0 : i32
    return %c0_i32, %c0_i32_0 : i32, i32
  }
  func.func @transform_32(%arg0: i32) -> (i32, i32) {
    %c0_i32 = arith.constant 0 : i32
    %c0_i32_0 = arith.constant 0 : i32
    %c0_i32_1 = arith.constant 0 : i32
    return %c0_i32, %c0_i32_0 : i32, i32
  }
  func.func @transform_33(%arg0: i32) -> (i32, i32) {
    %c0_i32 = arith.constant 0 : i32
    %c0_i32_0 = arith.constant 0 : i32
    %c0_i32_1 = arith.constant 0 : i32
    return %c0_i32, %c0_i32_0 : i32, i32
  }
  func.func @transform_34(%arg0: i32) -> (i32, i32) {
    %c0_i32 = arith.constant 0 : i32
    %c0_i32_0 = arith.constant 0 : i32
    %c0_i32_1 = arith.constant 0 : i32
    return %c0_i32, %c0_i32_0 : i32, i32
  }
  func.func @transform_35(%arg0: i32) -> (i32, i32) {
    %c0_i32 = arith.constant 0 : i32
    %c0_i32_0 = arith.constant 0 : i32
    %c0_i32_1 = arith.constant 0 : i32
    return %c0_i32, %c0_i32_0 : i32, i32
  }
  func.func @transform_36(%arg0: i32) -> (i32, i32) {
    %c0_i32 = arith.constant 0 : i32
    %c0_i32_0 = arith.constant 0 : i32
    %c0_i32_1 = arith.constant 0 : i32
    return %c0_i32, %c0_i32_0 : i32, i32
  }
  func.func @transform_37(%arg0: i32) -> (i32, i32) {
    %c0_i32 = arith.constant 0 : i32
    %c0_i32_0 = arith.constant 0 : i32
    %c0_i32_1 = arith.constant 0 : i32
    return %c0_i32, %c0_i32_0 : i32, i32
  }
  func.func @transform_38(%arg0: i32) -> (i32, i32) {
    %c0_i32 = arith.constant 0 : i32
    %c0_i32_0 = arith.constant 0 : i32
    %c0_i32_1 = arith.constant 0 : i32
    return %c0_i32, %c0_i32_0 : i32, i32
  }
  func.func @transform_39(%arg0: i32) -> (i32, i32) {
    %c0_i32 = arith.constant 0 : i32
    %c0_i32_0 = arith.constant 0 : i32
    %c0_i32_1 = arith.constant 0 : i32
    return %c0_i32, %c0_i32_0 : i32, i32
  }
  func.func @transform_40(%arg0: i32) -> (i32, i32) {
    %c0_i32 = arith.constant 0 : i32
    %c0_i32_0 = arith.constant 0 : i32
    %c0_i32_1 = arith.constant 0 : i32
    return %c0_i32, %c0_i32_0 : i32, i32
  }
  func.func @transform_41(%arg0: i32) -> (i32, i32) {
    %c0_i32 = arith.constant 0 : i32
    %c0_i32_0 = arith.constant 0 : i32
    %c0_i32_1 = arith.constant 0 : i32
    return %c0_i32, %c0_i32_0 : i32, i32
  }
  func.func @transform_42(%arg0: i32) -> (i32, i32, i32) {
    %c0_i32 = arith.constant 0 : i32
    %c0_i32_0 = arith.constant 0 : i32
    %c0_i32_1 = arith.constant 0 : i32
    return %arg0, %c0_i32, %c0_i32_0 : i32, i32, i32
  }
  func.func @transform_43(%arg0: i32) -> (i32, i32, i32) {
    %c0_i32 = arith.constant 0 : i32
    %c0_i32_0 = arith.constant 0 : i32
    %c0_i32_1 = arith.constant 0 : i32
    return %arg0, %c0_i32, %c0_i32_0 : i32, i32, i32
  }
  func.func @transform_44(%arg0: i32) -> (i32, i32, i32) {
    %c0_i32 = arith.constant 0 : i32
    %c0_i32_0 = arith.constant 0 : i32
    %c0_i32_1 = arith.constant 0 : i32
    return %arg0, %c0_i32, %c0_i32_0 : i32, i32, i32
  }
}

</mosaic_0001>

<llo_original>
// kernel: fwd_fn.1
$region0: #{fwd_fn.1}
  #allocation0 [shape = 'u32[]', space=smem, size = 0x4, offset = 0x4, fixed_abs, tag = 'smem constant byte address 0x4 - core index']
  #allocation1 [shape = 'u32[144,128]{1,0:T(1,128)}', space=vmem, size = 0x12000, scoped, tag = 'internal scratch']
  %s0 = inlined_call_operand.smem [shape: u32[45], index: -1, kind: input, shape index: {}]
  %s1 = sld [smem:[%s0]]
  %s2 = scalar_lea.smem %s0, 1
  %s3 = sld [smem:[%s2]]
  %s4 = scalar_lea.smem %s0, 2
  %s5 = sld [smem:[%s4]]
  %s6 = scalar_lea.smem %s0, 3
  %s7 = sld [smem:[%s6]]
  %s8 = scalar_lea.smem %s0, 4
  %s9 = sld [smem:[%s8]]
  %s10 = scalar_lea.smem %s0, 5
  %s11 = sld [smem:[%s10]]
  %s12 = scalar_lea.smem %s0, 6
  %s13 = sld [smem:[%s12]]
  %s14 = scalar_lea.smem %s0, 7
  %s15 = sld [smem:[%s14]]
  %s16 = scalar_lea.smem %s0, 8
  %s17 = sld [smem:[%s16]]
  %s18 = scalar_lea.smem %s0, 9
  %s19 = sld [smem:[%s18]]
  %s20 = scalar_lea.smem %s0, 10
  %s21 = sld [smem:[%s20]]
  %s22 = scalar_lea.smem %s0, 11
  %s23 = sld [smem:[%s22]]
  %s24 = scalar_lea.smem %s0, 12
  %s25 = sld [smem:[%s24]]
  %s26 = scalar_lea.smem %s0, 13
  %s27 = sld [smem:[%s26]]
  %s28 = scalar_lea.smem %s0, 14
  %s29 = sld [smem:[%s28]]
  %s30 = scalar_lea.smem %s0, 15
  %s31 = sld [smem:[%s30]]
  %s32 = scalar_lea.smem %s0, 16
  %s33 = sld [smem:[%s32]]
  %s34 = scalar_lea.smem %s0, 17
  %s35 = sld [smem:[%s34]]
  %s36 = scalar_lea.smem %s0, 18
  %s37 = sld [smem:[%s36]]
  %s38 = scalar_lea.smem %s0, 19
  %s39 = sld [smem:[%s38]]
  %s40 = scalar_lea.smem %s0, 20
  %s41 = sld [smem:[%s40]]
  %s42 = scalar_lea.smem %s0, 21
  %s43 = sld [smem:[%s42]]
  %s44 = scalar_lea.smem %s0, 22
  %s45 = sld [smem:[%s44]]
  %s46 = scalar_lea.smem %s0, 23
  %s47 = sld [smem:[%s46]]
  %s48 = scalar_lea.smem %s0, 24
  %s49 = sld [smem:[%s48]]
  %s50 = scalar_lea.smem %s0, 25
  %s51 = sld [smem:[%s50]]
  %s52 = scalar_lea.smem %s0, 26
  %s53 = sld [smem:[%s52]]
  %s54 = scalar_lea.smem %s0, 27
  %s55 = sld [smem:[%s54]]
  %s56 = scalar_lea.smem %s0, 28
  %s57 = sld [smem:[%s56]]
  %s58 = scalar_lea.smem %s0, 29
  %s59 = sld [smem:[%s58]]
  %s60 = scalar_lea.smem %s0, 30
  %s61 = sld [smem:[%s60]]
  %s62 = scalar_lea.smem %s0, 31
  %s63 = sld [smem:[%s62]]
  %s64 = scalar_lea.smem %s0, 32
  %s65 = sld [smem:[%s64]]
  %s66 = scalar_lea.smem %s0, 33
  %s67 = sld [smem:[%s66]]
  %s68 = scalar_lea.smem %s0, 34
  %s69 = sld [smem:[%s68]]
  %s70 = scalar_lea.smem %s0, 35
  %s71 = sld [smem:[%s70]]
  %s72 = scalar_lea.smem %s0, 36
  %s73 = sld [smem:[%s72]]
  %s74 = scalar_lea.smem %s0, 37
  %s75 = sld [smem:[%s74]]
  %s76 = scalar_lea.smem %s0, 38
  %s77 = sld [smem:[%s76]]
  %s78 = scalar_lea.smem %s0, 39
  %s79 = sld [smem:[%s78]]
  %s80 = scalar_lea.smem %s0, 40
  %s81 = sld [smem:[%s80]]
  %s82 = scalar_lea.smem %s0, 41
  %s83 = sld [smem:[%s82]]
  %s84 = scalar_lea.smem %s0, 42
  %s85 = sld [smem:[%s84]]
  %s86 = scalar_lea.smem %s0, 43
  %s87 = sld [smem:[%s86]]
  %s88 = scalar_lea.smem %s0, 44
  %s89 = sld [smem:[%s88]]
  %90 = xla_tuple %s85, %s87, %s89
  %s91 = sld [smem:[#allocation0]]
  $region217: #{fwd_fn.1} parent=0
    _
  %s93 = ssub.s32 1, %s91
  %s94 = scalar_select 0, %s93, %s91
  $region1: #{fwd_fn.1} parent=0
    #allocation2 [shape = 'u8[1024]{0}', space=vmem, size = 0x400, scoped, tag = 'output window, operand 1']
    #allocation3 [shape = 's32[2]{0}', space=sflag, size = 0x8, scoped, tag = 'scoped memory for fwd_fn.1']
    #allocation4 [shape = 'u8[1024]{0}', space=vmem, size = 0x400, scoped, tag = 'output window, operand 2']
    #allocation5 [shape = 's32[2]{0}', space=sflag, size = 0x8, scoped, tag = 'scoped memory for fwd_fn.1']
    %95 = vsyncpa [#allocation3], 0
    %s96 = scalar_lea.sflag [#allocation3], 1
    %97 = vsyncpa %s96, 0
    %98 = vsyncpa [#allocation5], 0
    %s99 = scalar_lea.sflag [#allocation5], 1
    %100 = vsyncpa %s99, 0
    loop: start=0, step=1, limit=4
    $region2: #{fwd_fn.1} parent=1 // loop_pre_header
      _
    $region3: #{fwd_fn.1} parent=1 // loop_header
      %s102 = sphi 0, %s106
      %p103 = scmp.ge.s32.totalorder %s102, 4
      %s112 = sphi 0, %s114
      %s115 = sphi 0, %s112
      %s116 = sphi 0, %s115
      %s132 = sphi 0, %s116
      %s138 = sphi 0, %s140
      %s141 = sphi 0, %s138
      %s142 = sphi 0, %s141
      %s158 = sphi 0, %s142
      %s164 = sphi 0, %s166
      %s167 = sphi 0, %s164
      %s168 = sphi 0, %s167
      %s184 = sphi 0, %s168
      %s188 = sphi 0, %s188
      %s190 = sphi 0, %s188
      %s191 = sphi 0, %s190
      %s205 = sphi 0, %s191
      %s209 = sphi 0, %s209
      %s211 = sphi 0, %s209
      %s212 = sphi 0, %s211
      %s226 = sphi 0, %s212
      %s230 = sphi 0, %s230
      %s232 = sphi 0, %s230
      %s233 = sphi 0, %s232
      %s247 = sphi 0, %s233
      %s251 = sphi 0, %s251
      %s253 = sphi 0, %s251
      %s254 = sphi 0, %s253
      %s268 = sphi 0, %s254
      %s272 = sphi 0, %s272
      %s274 = sphi 0, %s272
      %s275 = sphi 0, %s274
      %s289 = sphi 0, %s275
      %s293 = sphi 0, %s293
      %s295 = sphi 0, %s293
      %s296 = sphi 0, %s295
      %s310 = sphi 0, %s296
      %s314 = sphi 0, %s314
      %s316 = sphi 0, %s314
      %s317 = sphi 0, %s316
      %s331 = sphi 0, %s317
      %s335 = sphi 0, %s335
      %s337 = sphi 0, %s335
      %s338 = sphi 0, %s337
      %s352 = sphi 0, %s338
      %s356 = sphi 0, %s356
      %s358 = sphi 0, %s356
      %s359 = sphi 0, %s358
      %s373 = sphi 0, %s359
      %s377 = sphi 0, %s377
      %s379 = sphi 0, %s377
      %s380 = sphi 0, %s379
      %s394 = sphi 0, %s380
      %s398 = sphi 0, %s398
      %s400 = sphi 0, %s398
      %s401 = sphi 0, %s400
      %s415 = sphi 0, %s401
      %s419 = sphi 0, %s419
      %s421 = sphi 0, %s419
      %s422 = sphi 0, %s421
      %s436 = sphi 0, %s422
      %s440 = sphi 0, %s440
      %s442 = sphi 0, %s440
      %s443 = sphi 0, %s442
      %s457 = sphi 0, %s443
      %s461 = sphi 0, %s461
      %s463 = sphi 0, %s461
      %s464 = sphi 0, %s463
      %s478 = sphi 0, %s464
      %s482 = sphi 0, %s482
      %s484 = sphi 0, %s482
      %s485 = sphi 0, %s484
      %s499 = sphi 0, %s485
      %s503 = sphi 0, %s503
      %s505 = sphi 0, %s503
      %s506 = sphi 0, %s505
      %s520 = sphi 0, %s506
      %s524 = sphi 0, %s524
      %s526 = sphi 0, %s524
      %s527 = sphi 0, %s526
      %s541 = sphi 0, %s527
      %s545 = sphi 0, %s545
      %s547 = sphi 0, %s545
      %s548 = sphi 0, %s547
      %s562 = sphi 0, %s548
      %s566 = sphi 0, %s566
      %s568 = sphi 0, %s566
      %s569 = sphi 0, %s568
      %s583 = sphi 0, %s569
      %s587 = sphi 0, %s587
      %s589 = sphi 0, %s587
      %s590 = sphi 0, %s589
      %s604 = sphi 0, %s590
      %s608 = sphi 0, %s608
      %s610 = sphi 0, %s608
      %s611 = sphi 0, %s610
      %s625 = sphi 0, %s611
      %s629 = sphi 0, %s629
      %s631 = sphi 0, %s629
      %s632 = sphi 0, %s631
      %s646 = sphi 0, %s632
      %s650 = sphi 0, %s650
      %s652 = sphi 0, %s650
      %s653 = sphi 0, %s652
      %s667 = sphi 0, %s653
      %s671 = sphi 0, %s671
      %s673 = sphi 0, %s671
      %s674 = sphi 0, %s673
      %s688 = sphi 0, %s674
      %s692 = sphi 0, %s692
      %s694 = sphi 0, %s692
      %s695 = sphi 0, %s694
      %s709 = sphi 0, %s695
      %s713 = sphi 0, %s713
      %s715 = sphi 0, %s713
      %s716 = sphi 0, %s715
      %s730 = sphi 0, %s716
      %s734 = sphi 0, %s734
      %s736 = sphi 0, %s734
      %s737 = sphi 0, %s736
      %s751 = sphi 0, %s737
      %s755 = sphi 0, %s755
      %s757 = sphi 0, %s755
      %s758 = sphi 0, %s757
      %s772 = sphi 0, %s758
      %s776 = sphi 0, %s776
      %s778 = sphi 0, %s776
      %s779 = sphi 0, %s778
      %s793 = sphi 0, %s779
      %s797 = sphi 0, %s797
      %s799 = sphi 0, %s797
      %s800 = sphi 0, %s799
      %s814 = sphi 0, %s800
      %s818 = sphi 0, %s818
      %s820 = sphi 0, %s818
      %s821 = sphi 0, %s820
      %s835 = sphi 0, %s821
      %s839 = sphi 0, %s839
      %s841 = sphi 0, %s839
      %s842 = sphi 0, %s841
      %s856 = sphi 0, %s842
      %s860 = sphi 0, %s860
      %s862 = sphi 0, %s860
      %s863 = sphi 0, %s862
      %s877 = sphi 0, %s863
      %s881 = sphi 0, %s881
      %s883 = sphi 0, %s881
      %s884 = sphi 0, %s883
      %s898 = sphi 0, %s884
      %s902 = sphi 0, %s902
      %s904 = sphi 0, %s902
      %s905 = sphi 0, %s904
      %s919 = sphi 0, %s905
      %s923 = sphi 0, %s923
      %s925 = sphi 0, %s923
      %s926 = sphi 0, %s925
      %s940 = sphi 0, %s926
      %s944 = sphi 0, %s944
      %s946 = sphi 0, %s944
      %s947 = sphi 0, %s946
      %s961 = sphi 0, %s947
      %s965 = sphi 0, %s965
      %s967 = sphi 0, %s965
      %s968 = sphi 0, %s967
      %s982 = sphi 0, %s968
      %s986 = sphi 0, %s986
      %s988 = sphi 0, %s986
      %s989 = sphi 0, %s988
      %s1003 = sphi 0, %s989
      %s1009 = sphi 0, %s1011
      %s1012 = sphi 0, %s1009
      %s1013 = sphi 0, %s1012
      %s1029 = sphi 0, %s1013
      %s1035 = sphi 0, %s1037
      %s1038 = sphi 0, %s1035
      %s1039 = sphi 0, %s1038
      %s1055 = sphi 0, %s1039
      %s1061 = sphi 0, %s1063
      %s1064 = sphi 0, %s1061
      %s1065 = sphi 0, %s1064
      %s1081 = sphi 0, %s1065
    $region4: #{fwd_fn.1} parent=1 // loop_header_branch
      %105 = sbr.rel (%p103) target = $region8
    $region5: #{fwd_fn.1} parent=1 // loop_body
      %s107 = ssub.s32 %s102, 1
      %s108 = ssub.s32 %s102, 2
      %s109 = sadd.s32 %s102, 1
      %s110 = ssub.s32 %s102, %s109
      %p111 = scmp.eq.s32.totalorder %s110, 0
      %s113 = sadd.s32 %s112, 1
      %s114 = scalar_select %p111, %s112, %s113
      %p117 = pneg %p111
      %p118 = scmp.eq.s32.totalorder %s102, 1
      %p119 = por %p117, %p118
      %p120 = scmp.ne.s32.totalorder %s112, %s115
      %p121 = scmp.eq.s32.totalorder %s102, 0
      %p122 = por %p120, %p121
      %p123 = scmp.ne.s32.totalorder %s112, %s115
      %p124 = scmp.eq.s32.totalorder %s107, 1
      %p125 = por %p123, %p124
      %p126 = scmp.ne.s32.totalorder %s115, %s116
      %p127 = scmp.eq.s32.totalorder %s107, 0
      %p128 = por %p126, %p127
      %p129 = scmp.ne.s32.totalorder %s115, %s116
      %p130 = scmp.eq.s32.totalorder %s108, 1
      %p131 = por %p129, %p130
      %p133 = scmp.ne.s32.totalorder %s116, %s132
      %p134 = scmp.eq.s32.totalorder %s108, 0
      %p135 = por %p133, %p134
      %s136 = ssub.s32 %s102, %s109
      %p137 = scmp.eq.s32.totalorder %s136, 0
      %s139 = sadd.s32 %s138, 1
      %s140 = scalar_select %p137, %s138, %s139
      %p143 = pneg %p137
      %p144 = scmp.eq.s32.totalorder %s102, 1
      %p145 = por %p143, %p144
      %p146 = scmp.ne.s32.totalorder %s138, %s141
      %p147 = scmp.eq.s32.totalorder %s102, 0
      %p148 = por %p146, %p147
      %p149 = scmp.ne.s32.totalorder %s138, %s141
      %p150 = scmp.eq.s32.totalorder %s107, 1
      %p151 = por %p149, %p150
      %p152 = scmp.ne.s32.totalorder %s141, %s142
      %p153 = scmp.eq.s32.totalorder %s107, 0
      %p154 = por %p152, %p153
      %p155 = scmp.ne.s32.totalorder %s141, %s142
      %p156 = scmp.eq.s32.totalorder %s108, 1
      %p157 = por %p155, %p156
      %p159 = scmp.ne.s32.totalorder %s142, %s158
      %p160 = scmp.eq.s32.totalorder %s108, 0
      %p161 = por %p159, %p160
      %s162 = ssub.s32 %s102, %s109
      %p163 = scmp.eq.s32.totalorder %s162, 0
      %s165 = sadd.s32 %s164, 1
      %s166 = scalar_select %p163, %s164, %s165
      %p169 = pneg %p163
      %p170 = scmp.eq.s32.totalorder %s102, 1
      %p171 = por %p169, %p170
      %p172 = scmp.ne.s32.totalorder %s164, %s167
      %p173 = scmp.eq.s32.totalorder %s102, 0
      %p174 = por %p172, %p173
      %p175 = scmp.ne.s32.totalorder %s164, %s167
      %p176 = scmp.eq.s32.totalorder %s107, 1
      %p177 = por %p175, %p176
      %p178 = scmp.ne.s32.totalorder %s167, %s168
      %p179 = scmp.eq.s32.totalorder %s107, 0
      %p180 = por %p178, %p179
      %p181 = scmp.ne.s32.totalorder %s167, %s168
      %p182 = scmp.eq.s32.totalorder %s108, 1
      %p183 = por %p181, %p182
      %p185 = scmp.ne.s32.totalorder %s168, %s184
      %p186 = scmp.eq.s32.totalorder %s108, 0
      %p187 = por %p185, %p186
      %s189 = sadd.s32 %s188, 1
      %p192 = scmp.eq.s32.totalorder %s102, 1
      %p193 = scmp.ne.s32.totalorder %s188, %s190
      %p194 = scmp.eq.s32.totalorder %s102, 0
      %p195 = por %p193, %p194
      %p196 = scmp.ne.s32.totalorder %s188, %s190
      %p197 = scmp.eq.s32.totalorder %s107, 1
      %p198 = por %p196, %p197
      %p199 = scmp.ne.s32.totalorder %s190, %s191
      %p200 = scmp.eq.s32.totalorder %s107, 0
      %p201 = por %p199, %p200
      %p202 = scmp.ne.s32.totalorder %s190, %s191
      %p203 = scmp.eq.s32.totalorder %s108, 1
      %p204 = por %p202, %p203
      %p206 = scmp.ne.s32.totalorder %s191, %s205
      %p207 = scmp.eq.s32.totalorder %s108, 0
      %p208 = por %p206, %p207
      %s210 = sadd.s32 %s209, 1
      %p213 = scmp.eq.s32.totalorder %s102, 1
      %p214 = scmp.ne.s32.totalorder %s209, %s211
      %p215 = scmp.eq.s32.totalorder %s102, 0
      %p216 = por %p214, %p215
      %p217 = scmp.ne.s32.totalorder %s209, %s211
      %p218 = scmp.eq.s32.totalorder %s107, 1
      %p219 = por %p217, %p218
      %p220 = scmp.ne.s32.totalorder %s211, %s212
      %p221 = scmp.eq.s32.totalorder %s107, 0
      %p222 = por %p220, %p221
      %p223 = scmp.ne.s32.totalorder %s211, %s212
      %p224 = scmp.eq.s32.totalorder %s108, 1
      %p225 = por %p223, %p224
      %p227 = scmp.ne.s32.totalorder %s212, %s226
      %p228 = scmp.eq.s32.totalorder %s108, 0
      %p229 = por %p227, %p228
      %s231 = sadd.s32 %s230, 1
      %p234 = scmp.eq.s32.totalorder %s102, 1
      %p235 = scmp.ne.s32.totalorder %s230, %s232
      %p236 = scmp.eq.s32.totalorder %s102, 0
      %p237 = por %p235, %p236
      %p238 = scmp.ne.s32.totalorder %s230, %s232
      %p239 = scmp.eq.s32.totalorder %s107, 1
      %p240 = por %p238, %p239
      %p241 = scmp.ne.s32.totalorder %s232, %s233
      %p242 = scmp.eq.s32.totalorder %s107, 0
      %p243 = por %p241, %p242
      %p244 = scmp.ne.s32.totalorder %s232, %s233
      %p245 = scmp.eq.s32.totalorder %s108, 1
      %p246 = por %p244, %p245
      %p248 = scmp.ne.s32.totalorder %s233, %s247
      %p249 = scmp.eq.s32.totalorder %s108, 0
      %p250 = por %p248, %p249
      %s252 = sadd.s32 %s251, 1
      %p255 = scmp.eq.s32.totalorder %s102, 1
      %p256 = scmp.ne.s32.totalorder %s251, %s253
      %p257 = scmp.eq.s32.totalorder %s102, 0
      %p258 = por %p256, %p257
      %p259 = scmp.ne.s32.totalorder %s251, %s253
      %p260 = scmp.eq.s32.totalorder %s107, 1
      %p261 = por %p259, %p260
      %p262 = scmp.ne.s32.totalorder %s253, %s254
      %p263 = scmp.eq.s32.totalorder %s107, 0
      %p264 = por %p262, %p263
      %p265 = scmp.ne.s32.totalorder %s253, %s254
      %p266 = scmp.eq.s32.totalorder %s108, 1
      %p267 = por %p265, %p266
      %p269 = scmp.ne.s32.totalorder %s254, %s268
      %p270 = scmp.eq.s32.totalorder %s108, 0
      %p271 = por %p269, %p270
      %s273 = sadd.s32 %s272, 1
      %p276 = scmp.eq.s32.totalorder %s102, 1
      %p277 = scmp.ne.s32.totalorder %s272, %s274
      %p278 = scmp.eq.s32.totalorder %s102, 0
      %p279 = por %p277, %p278
      %p280 = scmp.ne.s32.totalorder %s272, %s274
      %p281 = scmp.eq.s32.totalorder %s107, 1
      %p282 = por %p280, %p281
      %p283 = scmp.ne.s32.totalorder %s274, %s275
      %p284 = scmp.eq.s32.totalorder %s107, 0
      %p285 = por %p283, %p284
      %p286 = scmp.ne.s32.totalorder %s274, %s275
      %p287 = scmp.eq.s32.totalorder %s108, 1
      %p288 = por %p286, %p287
      %p290 = scmp.ne.s32.totalorder %s275, %s289
      %p291 = scmp.eq.s32.totalorder %s108, 0
      %p292 = por %p290, %p291
      %s294 = sadd.s32 %s293, 1
      %p297 = scmp.eq.s32.totalorder %s102, 1
      %p298 = scmp.ne.s32.totalorder %s293, %s295
      %p299 = scmp.eq.s32.totalorder %s102, 0
      %p300 = por %p298, %p299
      %p301 = scmp.ne.s32.totalorder %s293, %s295
      %p302 = scmp.eq.s32.totalorder %s107, 1
      %p303 = por %p301, %p302
      %p304 = scmp.ne.s32.totalorder %s295, %s296
      %p305 = scmp.eq.s32.totalorder %s107, 0
      %p306 = por %p304, %p305
      %p307 = scmp.ne.s32.totalorder %s295, %s296
      %p308 = scmp.eq.s32.totalorder %s108, 1
      %p309 = por %p307, %p308
      %p311 = scmp.ne.s32.totalorder %s296, %s310
      %p312 = scmp.eq.s32.totalorder %s108, 0
      %p313 = por %p311, %p312
      %s315 = sadd.s32 %s314, 1
      %p318 = scmp.eq.s32.totalorder %s102, 1
      %p319 = scmp.ne.s32.totalorder %s314, %s316
      %p320 = scmp.eq.s32.totalorder %s102, 0
      %p321 = por %p319, %p320
      %p322 = scmp.ne.s32.totalorder %s314, %s316
      %p323 = scmp.eq.s32.totalorder %s107, 1
      %p324 = por %p322, %p323
      %p325 = scmp.ne.s32.totalorder %s316, %s317
      %p326 = scmp.eq.s32.totalorder %s107, 0
      %p327 = por %p325, %p326
      %p328 = scmp.ne.s32.totalorder %s316, %s317
      %p329 = scmp.eq.s32.totalorder %s108, 1
      %p330 = por %p328, %p329
      %p332 = scmp.ne.s32.totalorder %s317, %s331
      %p333 = scmp.eq.s32.totalorder %s108, 0
      %p334 = por %p332, %p333
      %s336 = sadd.s32 %s335, 1
      %p339 = scmp.eq.s32.totalorder %s102, 1
      %p340 = scmp.ne.s32.totalorder %s335, %s337
      %p341 = scmp.eq.s32.totalorder %s102, 0
      %p342 = por %p340, %p341
      %p343 = scmp.ne.s32.totalorder %s335, %s337
      %p344 = scmp.eq.s32.totalorder %s107, 1
      %p345 = por %p343, %p344
      %p346 = scmp.ne.s32.totalorder %s337, %s338
      %p347 = scmp.eq.s32.totalorder %s107, 0
      %p348 = por %p346, %p347
      %p349 = scmp.ne.s32.totalorder %s337, %s338
      %p350 = scmp.eq.s32.totalorder %s108, 1
      %p351 = por %p349, %p350
      %p353 = scmp.ne.s32.totalorder %s338, %s352
      %p354 = scmp.eq.s32.totalorder %s108, 0
      %p355 = por %p353, %p354
      %s357 = sadd.s32 %s356, 1
      %p360 = scmp.eq.s32.totalorder %s102, 1
      %p361 = scmp.ne.s32.totalorder %s356, %s358
      %p362 = scmp.eq.s32.totalorder %s102, 0
      %p363 = por %p361, %p362
      %p364 = scmp.ne.s32.totalorder %s356, %s358
      %p365 = scmp.eq.s32.totalorder %s107, 1
      %p366 = por %p364, %p365
      %p367 = scmp.ne.s32.totalorder %s358, %s359
      %p368 = scmp.eq.s32.totalorder %s107, 0
      %p369 = por %p367, %p368
      %p370 = scmp.ne.s32.totalorder %s358, %s359
      %p371 = scmp.eq.s32.totalorder %s108, 1
      %p372 = por %p370, %p371
      %p374 = scmp.ne.s32.totalorder %s359, %s373
      %p375 = scmp.eq.s32.totalorder %s108, 0
      %p376 = por %p374, %p375
      %s378 = sadd.s32 %s377, 1
      %p381 = scmp.eq.s32.totalorder %s102, 1
      %p382 = scmp.ne.s32.totalorder %s377, %s379
      %p383 = scmp.eq.s32.totalorder %s102, 0
      %p384 = por %p382, %p383
      %p385 = scmp.ne.s32.totalorder %s377, %s379
      %p386 = scmp.eq.s32.totalorder %s107, 1
      %p387 = por %p385, %p386
      %p388 = scmp.ne.s32.totalorder %s379, %s380
      %p389 = scmp.eq.s32.totalorder %s107, 0
      %p390 = por %p388, %p389
      %p391 = scmp.ne.s32.totalorder %s379, %s380
      %p392 = scmp.eq.s32.totalorder %s108, 1
      %p393 = por %p391, %p392
      %p395 = scmp.ne.s32.totalorder %s380, %s394
      %p396 = scmp.eq.s32.totalorder %s108, 0
      %p397 = por %p395, %p396
      %s399 = sadd.s32 %s398, 1
      %p402 = scmp.eq.s32.totalorder %s102, 1
      %p403 = scmp.ne.s32.totalorder %s398, %s400
      %p404 = scmp.eq.s32.totalorder %s102, 0
      %p405 = por %p403, %p404
      %p406 = scmp.ne.s32.totalorder %s398, %s400
      %p407 = scmp.eq.s32.totalorder %s107, 1
      %p408 = por %p406, %p407
      %p409 = scmp.ne.s32.totalorder %s400, %s401
      %p410 = scmp.eq.s32.totalorder %s107, 0
      %p411 = por %p409, %p410
      %p412 = scmp.ne.s32.totalorder %s400, %s401
      %p413 = scmp.eq.s32.totalorder %s108, 1
      %p414 = por %p412, %p413
      %p416 = scmp.ne.s32.totalorder %s401, %s415
      %p417 = scmp.eq.s32.totalorder %s108, 0
      %p418 = por %p416, %p417
      %s420 = sadd.s32 %s419, 1
      %p423 = scmp.eq.s32.totalorder %s102, 1
      %p424 = scmp.ne.s32.totalorder %s419, %s421
      %p425 = scmp.eq.s32.totalorder %s102, 0
      %p426 = por %p424, %p425
      %p427 = scmp.ne.s32.totalorder %s419, %s421
      %p428 = scmp.eq.s32.totalorder %s107, 1
      %p429 = por %p427, %p428
      %p430 = scmp.ne.s32.totalorder %s421, %s422
      %p431 = scmp.eq.s32.totalorder %s107, 0
      %p432 = por %p430, %p431
      %p433 = scmp.ne.s32.totalorder %s421, %s422
      %p434 = scmp.eq.s32.totalorder %s108, 1
      %p435 = por %p433, %p434
      %p437 = scmp.ne.s32.totalorder %s422, %s436
      %p438 = scmp.eq.s32.totalorder %s108, 0
      %p439 = por %p437, %p438
      %s441 = sadd.s32 %s440, 1
      %p444 = scmp.eq.s32.totalorder %s102, 1
      %p445 = scmp.ne.s32.totalorder %s440, %s442
      %p446 = scmp.eq.s32.totalorder %s102, 0
      %p447 = por %p445, %p446
      %p448 = scmp.ne.s32.totalorder %s440, %s442
      %p449 = scmp.eq.s32.totalorder %s107, 1
      %p450 = por %p448, %p449
      %p451 = scmp.ne.s32.totalorder %s442, %s443
      %p452 = scmp.eq.s32.totalorder %s107, 0
      %p453 = por %p451, %p452
      %p454 = scmp.ne.s32.totalorder %s442, %s443
      %p455 = scmp.eq.s32.totalorder %s108, 1
      %p456 = por %p454, %p455
      %p458 = scmp.ne.s32.totalorder %s443, %s457
      %p459 = scmp.eq.s32.totalorder %s108, 0
      %p460 = por %p458, %p459
      %s462 = sadd.s32 %s461, 1
      %p465 = scmp.eq.s32.totalorder %s102, 1
      %p466 = scmp.ne.s32.totalorder %s461, %s463
      %p467 = scmp.eq.s32.totalorder %s102, 0
      %p468 = por %p466, %p467
      %p469 = scmp.ne.s32.totalorder %s461, %s463
      %p470 = scmp.eq.s32.totalorder %s107, 1
      %p471 = por %p469, %p470
      %p472 = scmp.ne.s32.totalorder %s463, %s464
      %p473 = scmp.eq.s32.totalorder %s107, 0
      %p474 = por %p472, %p473
      %p475 = scmp.ne.s32.totalorder %s463, %s464
      %p476 = scmp.eq.s32.totalorder %s108, 1
      %p477 = por %p475, %p476
      %p479 = scmp.ne.s32.totalorder %s464, %s478
      %p480 = scmp.eq.s32.totalorder %s108, 0
      %p481 = por %p479, %p480
      %s483 = sadd.s32 %s482, 1
      %p486 = scmp.eq.s32.totalorder %s102, 1
      %p487 = scmp.ne.s32.totalorder %s482, %s484
      %p488 = scmp.eq.s32.totalorder %s102, 0
      %p489 = por %p487, %p488
      %p490 = scmp.ne.s32.totalorder %s482, %s484
      %p491 = scmp.eq.s32.totalorder %s107, 1
      %p492 = por %p490, %p491
      %p493 = scmp.ne.s32.totalorder %s484, %s485
      %p494 = scmp.eq.s32.totalorder %s107, 0
      %p495 = por %p493, %p494
      %p496 = scmp.ne.s32.totalorder %s484, %s485
      %p497 = scmp.eq.s32.totalorder %s108, 1
      %p498 = por %p496, %p497
      %p500 = scmp.ne.s32.totalorder %s485, %s499
      %p501 = scmp.eq.s32.totalorder %s108, 0
      %p502 = por %p500, %p501
      %s504 = sadd.s32 %s503, 1
      %p507 = scmp.eq.s32.totalorder %s102, 1
      %p508 = scmp.ne.s32.totalorder %s503, %s505
      %p509 = scmp.eq.s32.totalorder %s102, 0
      %p510 = por %p508, %p509
      %p511 = scmp.ne.s32.totalorder %s503, %s505
      %p512 = scmp.eq.s32.totalorder %s107, 1
      %p513 = por %p511, %p512
      %p514 = scmp.ne.s32.totalorder %s505, %s506
      %p515 = scmp.eq.s32.totalorder %s107, 0
      %p516 = por %p514, %p515
      %p517 = scmp.ne.s32.totalorder %s505, %s506
      %p518 = scmp.eq.s32.totalorder %s108, 1
      %p519 = por %p517, %p518
      %p521 = scmp.ne.s32.totalorder %s506, %s520
      %p522 = scmp.eq.s32.totalorder %s108, 0
      %p523 = por %p521, %p522
      %s525 = sadd.s32 %s524, 1
      %p528 = scmp.eq.s32.totalorder %s102, 1
      %p529 = scmp.ne.s32.totalorder %s524, %s526
      %p530 = scmp.eq.s32.totalorder %s102, 0
      %p531 = por %p529, %p530
      %p532 = scmp.ne.s32.totalorder %s524, %s526
      %p533 = scmp.eq.s32.totalorder %s107, 1
      %p534 = por %p532, %p533
      %p535 = scmp.ne.s32.totalorder %s526, %s527
      %p536 = scmp.eq.s32.totalorder %s107, 0
      %p537 = por %p535, %p536
      %p538 = scmp.ne.s32.totalorder %s526, %s527
      %p539 = scmp.eq.s32.totalorder %s108, 1
      %p540 = por %p538, %p539
      %p542 = scmp.ne.s32.totalorder %s527, %s541
      %p543 = scmp.eq.s32.totalorder %s108, 0
      %p544 = por %p542, %p543
      %s546 = sadd.s32 %s545, 1
      %p549 = scmp.eq.s32.totalorder %s102, 1
      %p550 = scmp.ne.s32.totalorder %s545, %s547
      %p551 = scmp.eq.s32.totalorder %s102, 0
      %p552 = por %p550, %p551
      %p553 = scmp.ne.s32.totalorder %s545, %s547
      %p554 = scmp.eq.s32.totalorder %s107, 1
      %p555 = por %p553, %p554
      %p556 = scmp.ne.s32.totalorder %s547, %s548
      %p557 = scmp.eq.s32.totalorder %s107, 0
      %p558 = por %p556, %p557
      %p559 = scmp.ne.s32.totalorder %s547, %s548
      %p560 = scmp.eq.s32.totalorder %s108, 1
      %p561 = por %p559, %p560
      %p563 = scmp.ne.s32.totalorder %s548, %s562
      %p564 = scmp.eq.s32.totalorder %s108, 0
      %p565 = por %p563, %p564
      %s567 = sadd.s32 %s566, 1
      %p570 = scmp.eq.s32.totalorder %s102, 1
      %p571 = scmp.ne.s32.totalorder %s566, %s568
      %p572 = scmp.eq.s32.totalorder %s102, 0
      %p573 = por %p571, %p572
      %p574 = scmp.ne.s32.totalorder %s566, %s568
      %p575 = scmp.eq.s32.totalorder %s107, 1
      %p576 = por %p574, %p575
      %p577 = scmp.ne.s32.totalorder %s568, %s569
      %p578 = scmp.eq.s32.totalorder %s107, 0
      %p579 = por %p577, %p578
      %p580 = scmp.ne.s32.totalorder %s568, %s569
      %p581 = scmp.eq.s32.totalorder %s108, 1
      %p582 = por %p580, %p581
      %p584 = scmp.ne.s32.totalorder %s569, %s583
      %p585 = scmp.eq.s32.totalorder %s108, 0
      %p586 = por %p584, %p585
      %s588 = sadd.s32 %s587, 1
      %p591 = scmp.eq.s32.totalorder %s102, 1
      %p592 = scmp.ne.s32.totalorder %s587, %s589
      %p593 = scmp.eq.s32.totalorder %s102, 0
      %p594 = por %p592, %p593
      %p595 = scmp.ne.s32.totalorder %s587, %s589
      %p596 = scmp.eq.s32.totalorder %s107, 1
      %p597 = por %p595, %p596
      %p598 = scmp.ne.s32.totalorder %s589, %s590
      %p599 = scmp.eq.s32.totalorder %s107, 0
      %p600 = por %p598, %p599
      %p601 = scmp.ne.s32.totalorder %s589, %s590
      %p602 = scmp.eq.s32.totalorder %s108, 1
      %p603 = por %p601, %p602
      %p605 = scmp.ne.s32.totalorder %s590, %s604
      %p606 = scmp.eq.s32.totalorder %s108, 0
      %p607 = por %p605, %p606
      %s609 = sadd.s32 %s608, 1
      %p612 = scmp.eq.s32.totalorder %s102, 1
      %p613 = scmp.ne.s32.totalorder %s608, %s610
      %p614 = scmp.eq.s32.totalorder %s102, 0
      %p615 = por %p613, %p614
      %p616 = scmp.ne.s32.totalorder %s608, %s610
      %p617 = scmp.eq.s32.totalorder %s107, 1
      %p618 = por %p616, %p617
      %p619 = scmp.ne.s32.totalorder %s610, %s611
      %p620 = scmp.eq.s32.totalorder %s107, 0
      %p621 = por %p619, %p620
      %p622 = scmp.ne.s32.totalorder %s610, %s611
      %p623 = scmp.eq.s32.totalorder %s108, 1
      %p624 = por %p622, %p623
      %p626 = scmp.ne.s32.totalorder %s611, %s625
      %p627 = scmp.eq.s32.totalorder %s108, 0
      %p628 = por %p626, %p627
      %s630 = sadd.s32 %s629, 1
      %p633 = scmp.eq.s32.totalorder %s102, 1
      %p634 = scmp.ne.s32.totalorder %s629, %s631
      %p635 = scmp.eq.s32.totalorder %s102, 0
      %p636 = por %p634, %p635
      %p637 = scmp.ne.s32.totalorder %s629, %s631
      %p638 = scmp.eq.s32.totalorder %s107, 1
      %p639 = por %p637, %p638
      %p640 = scmp.ne.s32.totalorder %s631, %s632
      %p641 = scmp.eq.s32.totalorder %s107, 0
      %p642 = por %p640, %p641
      %p643 = scmp.ne.s32.totalorder %s631, %s632
      %p644 = scmp.eq.s32.totalorder %s108, 1
      %p645 = por %p643, %p644
      %p647 = scmp.ne.s32.totalorder %s632, %s646
      %p648 = scmp.eq.s32.totalorder %s108, 0
      %p649 = por %p647, %p648
      %s651 = sadd.s32 %s650, 1
      %p654 = scmp.eq.s32.totalorder %s102, 1
      %p655 = scmp.ne.s32.totalorder %s650, %s652
      %p656 = scmp.eq.s32.totalorder %s102, 0
      %p657 = por %p655, %p656
      %p658 = scmp.ne.s32.totalorder %s650, %s652
      %p659 = scmp.eq.s32.totalorder %s107, 1
      %p660 = por %p658, %p659
      %p661 = scmp.ne.s32.totalorder %s652, %s653
      %p662 = scmp.eq.s32.totalorder %s107, 0
      %p663 = por %p661, %p662
      %p664 = scmp.ne.s32.totalorder %s652, %s653
      %p665 = scmp.eq.s32.totalorder %s108, 1
      %p666 = por %p664, %p665
      %p668 = scmp.ne.s32.totalorder %s653, %s667
      %p669 = scmp.eq.s32.totalorder %s108, 0
      %p670 = por %p668, %p669
      %s672 = sadd.s32 %s671, 1
      %p675 = scmp.eq.s32.totalorder %s102, 1
      %p676 = scmp.ne.s32.totalorder %s671, %s673
      %p677 = scmp.eq.s32.totalorder %s102, 0
      %p678 = por %p676, %p677
      %p679 = scmp.ne.s32.totalorder %s671, %s673
      %p680 = scmp.eq.s32.totalorder %s107, 1
      %p681 = por %p679, %p680
      %p682 = scmp.ne.s32.totalorder %s673, %s674
      %p683 = scmp.eq.s32.totalorder %s107, 0
      %p684 = por %p682, %p683
      %p685 = scmp.ne.s32.totalorder %s673, %s674
      %p686 = scmp.eq.s32.totalorder %s108, 1
      %p687 = por %p685, %p686
      %p689 = scmp.ne.s32.totalorder %s674, %s688
      %p690 = scmp.eq.s32.totalorder %s108, 0
      %p691 = por %p689, %p690
      %s693 = sadd.s32 %s692, 1
      %p696 = scmp.eq.s32.totalorder %s102, 1
      %p697 = scmp.ne.s32.totalorder %s692, %s694
      %p698 = scmp.eq.s32.totalorder %s102, 0
      %p699 = por %p697, %p698
      %p700 = scmp.ne.s32.totalorder %s692, %s694
      %p701 = scmp.eq.s32.totalorder %s107, 1
      %p702 = por %p700, %p701
      %p703 = scmp.ne.s32.totalorder %s694, %s695
      %p704 = scmp.eq.s32.totalorder %s107, 0
      %p705 = por %p703, %p704
      %p706 = scmp.ne.s32.totalorder %s694, %s695
      %p707 = scmp.eq.s32.totalorder %s108, 1
      %p708 = por %p706, %p707
      %p710 = scmp.ne.s32.totalorder %s695, %s709
      %p711 = scmp.eq.s32.totalorder %s108, 0
      %p712 = por %p710, %p711
      %s714 = sadd.s32 %s713, 1
      %p717 = scmp.eq.s32.totalorder %s102, 1
      %p718 = scmp.ne.s32.totalorder %s713, %s715
      %p719 = scmp.eq.s32.totalorder %s102, 0
      %p720 = por %p718, %p719
      %p721 = scmp.ne.s32.totalorder %s713, %s715
      %p722 = scmp.eq.s32.totalorder %s107, 1
      %p723 = por %p721, %p722
      %p724 = scmp.ne.s32.totalorder %s715, %s716
      %p725 = scmp.eq.s32.totalorder %s107, 0
      %p726 = por %p724, %p725
      %p727 = scmp.ne.s32.totalorder %s715, %s716
      %p728 = scmp.eq.s32.totalorder %s108, 1
      %p729 = por %p727, %p728
      %p731 = scmp.ne.s32.totalorder %s716, %s730
      %p732 = scmp.eq.s32.totalorder %s108, 0
      %p733 = por %p731, %p732
      %s735 = sadd.s32 %s734, 1
      %p738 = scmp.eq.s32.totalorder %s102, 1
      %p739 = scmp.ne.s32.totalorder %s734, %s736
      %p740 = scmp.eq.s32.totalorder %s102, 0
      %p741 = por %p739, %p740
      %p742 = scmp.ne.s32.totalorder %s734, %s736
      %p743 = scmp.eq.s32.totalorder %s107, 1
      %p744 = por %p742, %p743
      %p745 = scmp.ne.s32.totalorder %s736, %s737
      %p746 = scmp.eq.s32.totalorder %s107, 0
      %p747 = por %p745, %p746
      %p748 = scmp.ne.s32.totalorder %s736, %s737
      %p749 = scmp.eq.s32.totalorder %s108, 1
      %p750 = por %p748, %p749
      %p752 = scmp.ne.s32.totalorder %s737, %s751
      %p753 = scmp.eq.s32.totalorder %s108, 0
      %p754 = por %p752, %p753
      %s756 = sadd.s32 %s755, 1
      %p759 = scmp.eq.s32.totalorder %s102, 1
      %p760 = scmp.ne.s32.totalorder %s755, %s757
      %p761 = scmp.eq.s32.totalorder %s102, 0
      %p762 = por %p760, %p761
      %p763 = scmp.ne.s32.totalorder %s755, %s757
      %p764 = scmp.eq.s32.totalorder %s107, 1
      %p765 = por %p763, %p764
      %p766 = scmp.ne.s32.totalorder %s757, %s758
      %p767 = scmp.eq.s32.totalorder %s107, 0
      %p768 = por %p766, %p767
      %p769 = scmp.ne.s32.totalorder %s757, %s758
      %p770 = scmp.eq.s32.totalorder %s108, 1
      %p771 = por %p769, %p770
      %p773 = scmp.ne.s32.totalorder %s758, %s772
      %p774 = scmp.eq.s32.totalorder %s108, 0
      %p775 = por %p773, %p774
      %s777 = sadd.s32 %s776, 1
      %p780 = scmp.eq.s32.totalorder %s102, 1
      %p781 = scmp.ne.s32.totalorder %s776, %s778
      %p782 = scmp.eq.s32.totalorder %s102, 0
      %p783 = por %p781, %p782
      %p784 = scmp.ne.s32.totalorder %s776, %s778
      %p785 = scmp.eq.s32.totalorder %s107, 1
      %p786 = por %p784, %p785
      %p787 = scmp.ne.s32.totalorder %s778, %s779
      %p788 = scmp.eq.s32.totalorder %s107, 0
      %p789 = por %p787, %p788
      %p790 = scmp.ne.s32.totalorder %s778, %s779
      %p791 = scmp.eq.s32.totalorder %s108, 1
      %p792 = por %p790, %p791
      %p794 = scmp.ne.s32.totalorder %s779, %s793
      %p795 = scmp.eq.s32.totalorder %s108, 0
      %p796 = por %p794, %p795
      %s798 = sadd.s32 %s797, 1
      %p801 = scmp.eq.s32.totalorder %s102, 1
      %p802 = scmp.ne.s32.totalorder %s797, %s799
      %p803 = scmp.eq.s32.totalorder %s102, 0
      %p804 = por %p802, %p803
      %p805 = scmp.ne.s32.totalorder %s797, %s799
      %p806 = scmp.eq.s32.totalorder %s107, 1
      %p807 = por %p805, %p806
      %p808 = scmp.ne.s32.totalorder %s799, %s800
      %p809 = scmp.eq.s32.totalorder %s107, 0
      %p810 = por %p808, %p809
      %p811 = scmp.ne.s32.totalorder %s799, %s800
      %p812 = scmp.eq.s32.totalorder %s108, 1
      %p813 = por %p811, %p812
      %p815 = scmp.ne.s32.totalorder %s800, %s814
      %p816 = scmp.eq.s32.totalorder %s108, 0
      %p817 = por %p815, %p816
      %s819 = sadd.s32 %s818, 1
      %p822 = scmp.eq.s32.totalorder %s102, 1
      %p823 = scmp.ne.s32.totalorder %s818, %s820
      %p824 = scmp.eq.s32.totalorder %s102, 0
      %p825 = por %p823, %p824
      %p826 = scmp.ne.s32.totalorder %s818, %s820
      %p827 = scmp.eq.s32.totalorder %s107, 1
      %p828 = por %p826, %p827
      %p829 = scmp.ne.s32.totalorder %s820, %s821
      %p830 = scmp.eq.s32.totalorder %s107, 0
      %p831 = por %p829, %p830
      %p832 = scmp.ne.s32.totalorder %s820, %s821
      %p833 = scmp.eq.s32.totalorder %s108, 1
      %p834 = por %p832, %p833
      %p836 = scmp.ne.s32.totalorder %s821, %s835
      %p837 = scmp.eq.s32.totalorder %s108, 0
      %p838 = por %p836, %p837
      %s840 = sadd.s32 %s839, 1
      %p843 = scmp.eq.s32.totalorder %s102, 1
      %p844 = scmp.ne.s32.totalorder %s839, %s841
      %p845 = scmp.eq.s32.totalorder %s102, 0
      %p846 = por %p844, %p845
      %p847 = scmp.ne.s32.totalorder %s839, %s841
      %p848 = scmp.eq.s32.totalorder %s107, 1
      %p849 = por %p847, %p848
      %p850 = scmp.ne.s32.totalorder %s841, %s842
      %p851 = scmp.eq.s32.totalorder %s107, 0
      %p852 = por %p850, %p851
      %p853 = scmp.ne.s32.totalorder %s841, %s842
      %p854 = scmp.eq.s32.totalorder %s108, 1
      %p855 = por %p853, %p854
      %p857 = scmp.ne.s32.totalorder %s842, %s856
      %p858 = scmp.eq.s32.totalorder %s108, 0
      %p859 = por %p857, %p858
      %s861 = sadd.s32 %s860, 1
      %p864 = scmp.eq.s32.totalorder %s102, 1
      %p865 = scmp.ne.s32.totalorder %s860, %s862
      %p866 = scmp.eq.s32.totalorder %s102, 0
      %p867 = por %p865, %p866
      %p868 = scmp.ne.s32.totalorder %s860, %s862
      %p869 = scmp.eq.s32.totalorder %s107, 1
      %p870 = por %p868, %p869
      %p871 = scmp.ne.s32.totalorder %s862, %s863
      %p872 = scmp.eq.s32.totalorder %s107, 0
      %p873 = por %p871, %p872
      %p874 = scmp.ne.s32.totalorder %s862, %s863
      %p875 = scmp.eq.s32.totalorder %s108, 1
      %p876 = por %p874, %p875
      %p878 = scmp.ne.s32.totalorder %s863, %s877
      %p879 = scmp.eq.s32.totalorder %s108, 0
      %p880 = por %p878, %p879
      %s882 = sadd.s32 %s881, 1
      %p885 = scmp.eq.s32.totalorder %s102, 1
      %p886 = scmp.ne.s32.totalorder %s881, %s883
      %p887 = scmp.eq.s32.totalorder %s102, 0
      %p888 = por %p886, %p887
      %p889 = scmp.ne.s32.totalorder %s881, %s883
      %p890 = scmp.eq.s32.totalorder %s107, 1
      %p891 = por %p889, %p890
      %p892 = scmp.ne.s32.totalorder %s883, %s884
      %p893 = scmp.eq.s32.totalorder %s107, 0
      %p894 = por %p892, %p893
      %p895 = scmp.ne.s32.totalorder %s883, %s884
      %p896 = scmp.eq.s32.totalorder %s108, 1
      %p897 = por %p895, %p896
      %p899 = scmp.ne.s32.totalorder %s884, %s898
      %p900 = scmp.eq.s32.totalorder %s108, 0
      %p901 = por %p899, %p900
      %s903 = sadd.s32 %s902, 1
      %p906 = scmp.eq.s32.totalorder %s102, 1
      %p907 = scmp.ne.s32.totalorder %s902, %s904
      %p908 = scmp.eq.s32.totalorder %s102, 0
      %p909 = por %p907, %p908
      %p910 = scmp.ne.s32.totalorder %s902, %s904
      %p911 = scmp.eq.s32.totalorder %s107, 1
      %p912 = por %p910, %p911
      %p913 = scmp.ne.s32.totalorder %s904, %s905
      %p914 = scmp.eq.s32.totalorder %s107, 0
      %p915 = por %p913, %p914
      %p916 = scmp.ne.s32.totalorder %s904, %s905
      %p917 = scmp.eq.s32.totalorder %s108, 1
      %p918 = por %p916, %p917
      %p920 = scmp.ne.s32.totalorder %s905, %s919
      %p921 = scmp.eq.s32.totalorder %s108, 0
      %p922 = por %p920, %p921
      %s924 = sadd.s32 %s923, 1
      %p927 = scmp.eq.s32.totalorder %s102, 1
      %p928 = scmp.ne.s32.totalorder %s923, %s925
      %p929 = scmp.eq.s32.totalorder %s102, 0
      %p930 = por %p928, %p929
      %p931 = scmp.ne.s32.totalorder %s923, %s925
      %p932 = scmp.eq.s32.totalorder %s107, 1
      %p933 = por %p931, %p932
      %p934 = scmp.ne.s32.totalorder %s925, %s926
      %p935 = scmp.eq.s32.totalorder %s107, 0
      %p936 = por %p934, %p935
      %p937 = scmp.ne.s32.totalorder %s925, %s926
      %p938 = scmp.eq.s32.totalorder %s108, 1
      %p939 = por %p937, %p938
      %p941 = scmp.ne.s32.totalorder %s926, %s940
      %p942 = scmp.eq.s32.totalorder %s108, 0
      %p943 = por %p941, %p942
      %s945 = sadd.s32 %s944, 1
      %p948 = scmp.eq.s32.totalorder %s102, 1
      %p949 = scmp.ne.s32.totalorder %s944, %s946
      %p950 = scmp.eq.s32.totalorder %s102, 0
      %p951 = por %p949, %p950
      %p952 = scmp.ne.s32.totalorder %s944, %s946
      %p953 = scmp.eq.s32.totalorder %s107, 1
      %p954 = por %p952, %p953
      %p955 = scmp.ne.s32.totalorder %s946, %s947
      %p956 = scmp.eq.s32.totalorder %s107, 0
      %p957 = por %p955, %p956
      %p958 = scmp.ne.s32.totalorder %s946, %s947
      %p959 = scmp.eq.s32.totalorder %s108, 1
      %p960 = por %p958, %p959
      %p962 = scmp.ne.s32.totalorder %s947, %s961
      %p963 = scmp.eq.s32.totalorder %s108, 0
      %p964 = por %p962, %p963
      %s966 = sadd.s32 %s965, 1
      %p969 = scmp.eq.s32.totalorder %s102, 1
      %p970 = scmp.ne.s32.totalorder %s965, %s967
      %p971 = scmp.eq.s32.totalorder %s102, 0
      %p972 = por %p970, %p971
      %p973 = scmp.ne.s32.totalorder %s965, %s967
      %p974 = scmp.eq.s32.totalorder %s107, 1
      %p975 = por %p973, %p974
      %p976 = scmp.ne.s32.totalorder %s967, %s968
      %p977 = scmp.eq.s32.totalorder %s107, 0
      %p978 = por %p976, %p977
      %p979 = scmp.ne.s32.totalorder %s967, %s968
      %p980 = scmp.eq.s32.totalorder %s108, 1
      %p981 = por %p979, %p980
      %p983 = scmp.ne.s32.totalorder %s968, %s982
      %p984 = scmp.eq.s32.totalorder %s108, 0
      %p985 = por %p983, %p984
      %s987 = sadd.s32 %s986, 1
      %p990 = scmp.eq.s32.totalorder %s102, 1
      %p991 = scmp.ne.s32.totalorder %s986, %s988
      %p992 = scmp.eq.s32.totalorder %s102, 0
      %p993 = por %p991, %p992
      %p994 = scmp.ne.s32.totalorder %s986, %s988
      %p995 = scmp.eq.s32.totalorder %s107, 1
      %p996 = por %p994, %p995
      %p997 = scmp.ne.s32.totalorder %s988, %s989
      %p998 = scmp.eq.s32.totalorder %s107, 0
      %p999 = por %p997, %p998
      %p1000 = scmp.ne.s32.totalorder %s988, %s989
      %p1001 = scmp.eq.s32.totalorder %s108, 1
      %p1002 = por %p1000, %p1001
      %p1004 = scmp.ne.s32.totalorder %s989, %s1003
      %p1005 = scmp.eq.s32.totalorder %s108, 0
      %p1006 = por %p1004, %p1005
      %s1007 = ssub.s32 %s102, %s109
      %p1008 = scmp.eq.s32.totalorder %s1007, 0
      %s1010 = sadd.s32 %s1009, 1
      %s1011 = scalar_select %p1008, %s1009, %s1010
      %p1014 = pneg %p1008
      %p1015 = scmp.eq.s32.totalorder %s102, 1
      %p1016 = por %p1014, %p1015
      %p1017 = scmp.ne.s32.totalorder %s1009, %s1012
      %p1018 = scmp.eq.s32.totalorder %s102, 0
      %p1019 = por %p1017, %p1018
      %p1020 = scmp.ne.s32.totalorder %s1009, %s1012
      %p1021 = scmp.eq.s32.totalorder %s107, 1
      %p1022 = por %p1020, %p1021
      %p1023 = scmp.ne.s32.totalorder %s1012, %s1013
      %p1024 = scmp.eq.s32.totalorder %s107, 0
      %p1025 = por %p1023, %p1024
      %p1026 = scmp.ne.s32.totalorder %s1012, %s1013
      %p1027 = scmp.eq.s32.totalorder %s108, 1
      %p1028 = por %p1026, %p1027
      %p1030 = scmp.ne.s32.totalorder %s1013, %s1029
      %p1031 = scmp.eq.s32.totalorder %s108, 0
      %p1032 = por %p1030, %p1031
      %s1033 = ssub.s32 %s102, %s109
      %p1034 = scmp.eq.s32.totalorder %s1033, 0
      %s1036 = sadd.s32 %s1035, 1
      %s1037 = scalar_select %p1034, %s1035, %s1036
      %p1040 = pneg %p1034
      %p1041 = scmp.eq.s32.totalorder %s102, 1
      %p1042 = por %p1040, %p1041
      %p1043 = scmp.ne.s32.totalorder %s1035, %s1038
      %p1044 = scmp.eq.s32.totalorder %s102, 0
      %p1045 = por %p1043, %p1044
      %p1046 = scmp.ne.s32.totalorder %s1035, %s1038
      %p1047 = scmp.eq.s32.totalorder %s107, 1
      %p1048 = por %p1046, %p1047
      %p1049 = scmp.ne.s32.totalorder %s1038, %s1039
      %p1050 = scmp.eq.s32.totalorder %s107, 0
      %p1051 = por %p1049, %p1050
      %p1052 = scmp.ne.s32.totalorder %s1038, %s1039
      %p1053 = scmp.eq.s32.totalorder %s108, 1
      %p1054 = por %p1052, %p1053
      %p1056 = scmp.ne.s32.totalorder %s1039, %s1055
      %p1057 = scmp.eq.s32.totalorder %s108, 0
      %p1058 = por %p1056, %p1057
      %s1059 = ssub.s32 %s102, %s109
      %p1060 = scmp.eq.s32.totalorder %s1059, 0
      %s1062 = sadd.s32 %s1061, 1
      %s1063 = scalar_select %p1060, %s1061, %s1062
      %p1066 = pneg %p1060
      %p1067 = scmp.eq.s32.totalorder %s102, 1
      %p1068 = por %p1066, %p1067
      %p1069 = scmp.ne.s32.totalorder %s1061, %s1064
      %p1070 = scmp.eq.s32.totalorder %s102, 0
      %p1071 = por %p1069, %p1070
      %p1072 = scmp.ne.s32.totalorder %s1061, %s1064
      %p1073 = scmp.eq.s32.totalorder %s107, 1
      %p1074 = por %p1072, %p1073
      %p1075 = scmp.ne.s32.totalorder %s1064, %s1065
      %p1076 = scmp.eq.s32.totalorder %s107, 0
      %p1077 = por %p1075, %p1076
      %p1078 = scmp.ne.s32.totalorder %s1064, %s1065
      %p1079 = scmp.eq.s32.totalorder %s108, 1
      %p1080 = por %p1078, %p1079
      %p1082 = scmp.ne.s32.totalorder %s1065, %s1081
      %p1083 = scmp.eq.s32.totalorder %s108, 0
      %p1084 = por %p1082, %p1083
      %p1085 = scmp.le.s32.totalorder 1, %s102
      %p1086 = scmp.lt.s32.totalorder %s102, 3
      %p1087 = pnand %p1085, %p1086
      %p1088 = pneg %p1087
      // Predicated region
      $region9: #{fwd_fn.1} parent=5 // pred_check
        _
      $region10: #{fwd_fn.1} parent=5 // pred_check_branch
        %1090 = sbr.rel (%p1087) target = $region12
      $region11: #{fwd_fn.1} parent=5 // pred_region
        %s1091 = ssub.s32 %s102, 1
        // Predicated region
        $region13: #{fwd_fn.1} parent=11 // pred_check
          %p1092 = pneg %p201
        $region14: #{fwd_fn.1} parent=11 // pred_check_branch
          %1094 = sbr.rel (%p1092) target = $region16
        $region15: #{fwd_fn.1} parent=11 // pred_region
          _
        $region16: #{fwd_fn.1} parent=11 // pred_fallthru
          _
        // Predicated region
        $region17: #{fwd_fn.1} parent=11 // pred_check
          %p1095 = pneg %p222
        $region18: #{fwd_fn.1} parent=11 // pred_check_branch
          %1097 = sbr.rel (%p1095) target = $region20
        $region19: #{fwd_fn.1} parent=11 // pred_region
          _
        $region20: #{fwd_fn.1} parent=11 // pred_fallthru
          _
        // Predicated region
        $region21: #{fwd_fn.1} parent=11 // pred_check
          %p1098 = pneg %p243
        $region22: #{fwd_fn.1} parent=11 // pred_check_branch
          %1100 = sbr.rel (%p1098) target = $region24
        $region23: #{fwd_fn.1} parent=11 // pred_region
          _
        $region24: #{fwd_fn.1} parent=11 // pred_fallthru
          _
        // Predicated region
        $region25: #{fwd_fn.1} parent=11 // pred_check
          %p1101 = pneg %p264
        $region26: #{fwd_fn.1} parent=11 // pred_check_branch
          %1103 = sbr.rel (%p1101) target = $region28
        $region27: #{fwd_fn.1} parent=11 // pred_region
          _
        $region28: #{fwd_fn.1} parent=11 // pred_fallthru
          _
        // Predicated region
        $region29: #{fwd_fn.1} parent=11 // pred_check
          %p1104 = pneg %p285
        $region30: #{fwd_fn.1} parent=11 // pred_check_branch
          %1106 = sbr.rel (%p1104) target = $region32
        $region31: #{fwd_fn.1} parent=11 // pred_region
          _
        $region32: #{fwd_fn.1} parent=11 // pred_fallthru
          _
        // Predicated region
        $region33: #{fwd_fn.1} parent=11 // pred_check
          %p1107 = pneg %p306
        $region34: #{fwd_fn.1} parent=11 // pred_check_branch
          %1109 = sbr.rel (%p1107) target = $region36
        $region35: #{fwd_fn.1} parent=11 // pred_region
          _
        $region36: #{fwd_fn.1} parent=11 // pred_fallthru
          _
        // Predicated region
        $region37: #{fwd_fn.1} parent=11 // pred_check
          %p1110 = pneg %p327
        $region38: #{fwd_fn.1} parent=11 // pred_check_branch
          %1112 = sbr.rel (%p1110) target = $region40
        $region39: #{fwd_fn.1} parent=11 // pred_region
          _
        $region40: #{fwd_fn.1} parent=11 // pred_fallthru
          _
        // Predicated region
        $region41: #{fwd_fn.1} parent=11 // pred_check
          %p1113 = pneg %p348
        $region42: #{fwd_fn.1} parent=11 // pred_check_branch
          %1115 = sbr.rel (%p1113) target = $region44
        $region43: #{fwd_fn.1} parent=11 // pred_region
          _
        $region44: #{fwd_fn.1} parent=11 // pred_fallthru
          _
        // Predicated region
        $region45: #{fwd_fn.1} parent=11 // pred_check
          %p1116 = pneg %p369
        $region46: #{fwd_fn.1} parent=11 // pred_check_branch
          %1118 = sbr.rel (%p1116) target = $region48
        $region47: #{fwd_fn.1} parent=11 // pred_region
          _
        $region48: #{fwd_fn.1} parent=11 // pred_fallthru
          _
        // Predicated region
        $region49: #{fwd_fn.1} parent=11 // pred_check
          %p1119 = pneg %p390
        $region50: #{fwd_fn.1} parent=11 // pred_check_branch
          %1121 = sbr.rel (%p1119) target = $region52
        $region51: #{fwd_fn.1} parent=11 // pred_region
          _
        $region52: #{fwd_fn.1} parent=11 // pred_fallthru
          _
        // Predicated region
        $region53: #{fwd_fn.1} parent=11 // pred_check
          %p1122 = pneg %p411
        $region54: #{fwd_fn.1} parent=11 // pred_check_branch
          %1124 = sbr.rel (%p1122) target = $region56
        $region55: #{fwd_fn.1} parent=11 // pred_region
          _
        $region56: #{fwd_fn.1} parent=11 // pred_fallthru
          _
        // Predicated region
        $region57: #{fwd_fn.1} parent=11 // pred_check
          %p1125 = pneg %p432
        $region58: #{fwd_fn.1} parent=11 // pred_check_branch
          %1127 = sbr.rel (%p1125) target = $region60
        $region59: #{fwd_fn.1} parent=11 // pred_region
          _
        $region60: #{fwd_fn.1} parent=11 // pred_fallthru
          _
        // Predicated region
        $region61: #{fwd_fn.1} parent=11 // pred_check
          %p1128 = pneg %p453
        $region62: #{fwd_fn.1} parent=11 // pred_check_branch
          %1130 = sbr.rel (%p1128) target = $region64
        $region63: #{fwd_fn.1} parent=11 // pred_region
          _
        $region64: #{fwd_fn.1} parent=11 // pred_fallthru
          _
        // Predicated region
        $region65: #{fwd_fn.1} parent=11 // pred_check
          %p1131 = pneg %p474
        $region66: #{fwd_fn.1} parent=11 // pred_check_branch
          %1133 = sbr.rel (%p1131) target = $region68
        $region67: #{fwd_fn.1} parent=11 // pred_region
          _
        $region68: #{fwd_fn.1} parent=11 // pred_fallthru
          _
        // Predicated region
        $region69: #{fwd_fn.1} parent=11 // pred_check
          %p1134 = pneg %p495
        $region70: #{fwd_fn.1} parent=11 // pred_check_branch
          %1136 = sbr.rel (%p1134) target = $region72
        $region71: #{fwd_fn.1} parent=11 // pred_region
          _
        $region72: #{fwd_fn.1} parent=11 // pred_fallthru
          _
        // Predicated region
        $region73: #{fwd_fn.1} parent=11 // pred_check
          %p1137 = pneg %p516
        $region74: #{fwd_fn.1} parent=11 // pred_check_branch
          %1139 = sbr.rel (%p1137) target = $region76
        $region75: #{fwd_fn.1} parent=11 // pred_region
          _
        $region76: #{fwd_fn.1} parent=11 // pred_fallthru
          _
        // Predicated region
        $region77: #{fwd_fn.1} parent=11 // pred_check
          %p1140 = pneg %p537
        $region78: #{fwd_fn.1} parent=11 // pred_check_branch
          %1142 = sbr.rel (%p1140) target = $region80
        $region79: #{fwd_fn.1} parent=11 // pred_region
          _
        $region80: #{fwd_fn.1} parent=11 // pred_fallthru
          _
        // Predicated region
        $region81: #{fwd_fn.1} parent=11 // pred_check
          %p1143 = pneg %p558
        $region82: #{fwd_fn.1} parent=11 // pred_check_branch
          %1145 = sbr.rel (%p1143) target = $region84
        $region83: #{fwd_fn.1} parent=11 // pred_region
          _
        $region84: #{fwd_fn.1} parent=11 // pred_fallthru
          _
        // Predicated region
        $region85: #{fwd_fn.1} parent=11 // pred_check
          %p1146 = pneg %p579
        $region86: #{fwd_fn.1} parent=11 // pred_check_branch
          %1148 = sbr.rel (%p1146) target = $region88
        $region87: #{fwd_fn.1} parent=11 // pred_region
          _
        $region88: #{fwd_fn.1} parent=11 // pred_fallthru
          _
        // Predicated region
        $region89: #{fwd_fn.1} parent=11 // pred_check
          %p1149 = pneg %p600
        $region90: #{fwd_fn.1} parent=11 // pred_check_branch
          %1151 = sbr.rel (%p1149) target = $region92
        $region91: #{fwd_fn.1} parent=11 // pred_region
          _
        $region92: #{fwd_fn.1} parent=11 // pred_fallthru
          _
        // Predicated region
        $region93: #{fwd_fn.1} parent=11 // pred_check
          %p1152 = pneg %p621
        $region94: #{fwd_fn.1} parent=11 // pred_check_branch
          %1154 = sbr.rel (%p1152) target = $region96
        $region95: #{fwd_fn.1} parent=11 // pred_region
          _
        $region96: #{fwd_fn.1} parent=11 // pred_fallthru
          _
        // Predicated region
        $region97: #{fwd_fn.1} parent=11 // pred_check
          %p1155 = pneg %p642
        $region98: #{fwd_fn.1} parent=11 // pred_check_branch
          %1157 = sbr.rel (%p1155) target = $region100
        $region99: #{fwd_fn.1} parent=11 // pred_region
          _
        $region100: #{fwd_fn.1} parent=11 // pred_fallthru
          _
        // Predicated region
        $region101: #{fwd_fn.1} parent=11 // pred_check
          %p1158 = pneg %p663
        $region102: #{fwd_fn.1} parent=11 // pred_check_branch
          %1160 = sbr.rel (%p1158) target = $region104
        $region103: #{fwd_fn.1} parent=11 // pred_region
          _
        $region104: #{fwd_fn.1} parent=11 // pred_fallthru
          _
        // Predicated region
        $region105: #{fwd_fn.1} parent=11 // pred_check
          %p1161 = pneg %p684
        $region106: #{fwd_fn.1} parent=11 // pred_check_branch
          %1163 = sbr.rel (%p1161) target = $region108
        $region107: #{fwd_fn.1} parent=11 // pred_region
          _
        $region108: #{fwd_fn.1} parent=11 // pred_fallthru
          _
        // Predicated region
        $region109: #{fwd_fn.1} parent=11 // pred_check
          %p1164 = pneg %p705
        $region110: #{fwd_fn.1} parent=11 // pred_check_branch
          %1166 = sbr.rel (%p1164) target = $region112
        $region111: #{fwd_fn.1} parent=11 // pred_region
          _
        $region112: #{fwd_fn.1} parent=11 // pred_fallthru
          _
        // Predicated region
        $region113: #{fwd_fn.1} parent=11 // pred_check
          %p1167 = pneg %p726
        $region114: #{fwd_fn.1} parent=11 // pred_check_branch
          %1169 = sbr.rel (%p1167) target = $region116
        $region115: #{fwd_fn.1} parent=11 // pred_region
          _
        $region116: #{fwd_fn.1} parent=11 // pred_fallthru
          _
        // Predicated region
        $region117: #{fwd_fn.1} parent=11 // pred_check
          %p1170 = pneg %p747
        $region118: #{fwd_fn.1} parent=11 // pred_check_branch
          %1172 = sbr.rel (%p1170) target = $region120
        $region119: #{fwd_fn.1} parent=11 // pred_region
          _
        $region120: #{fwd_fn.1} parent=11 // pred_fallthru
          _
        // Predicated region
        $region121: #{fwd_fn.1} parent=11 // pred_check
          %p1173 = pneg %p768
        $region122: #{fwd_fn.1} parent=11 // pred_check_branch
          %1175 = sbr.rel (%p1173) target = $region124
        $region123: #{fwd_fn.1} parent=11 // pred_region
          _
        $region124: #{fwd_fn.1} parent=11 // pred_fallthru
          _
        // Predicated region
        $region125: #{fwd_fn.1} parent=11 // pred_check
          %p1176 = pneg %p789
        $region126: #{fwd_fn.1} parent=11 // pred_check_branch
          %1178 = sbr.rel (%p1176) target = $region128
        $region127: #{fwd_fn.1} parent=11 // pred_region
          _
        $region128: #{fwd_fn.1} parent=11 // pred_fallthru
          _
        // Predicated region
        $region129: #{fwd_fn.1} parent=11 // pred_check
          %p1179 = pneg %p810
        $region130: #{fwd_fn.1} parent=11 // pred_check_branch
          %1181 = sbr.rel (%p1179) target = $region132
        $region131: #{fwd_fn.1} parent=11 // pred_region
          _
        $region132: #{fwd_fn.1} parent=11 // pred_fallthru
          _
        // Predicated region
        $region133: #{fwd_fn.1} parent=11 // pred_check
          %p1182 = pneg %p831
        $region134: #{fwd_fn.1} parent=11 // pred_check_branch
          %1184 = sbr.rel (%p1182) target = $region136
        $region135: #{fwd_fn.1} parent=11 // pred_region
          _
        $region136: #{fwd_fn.1} parent=11 // pred_fallthru
          _
        // Predicated region
        $region137: #{fwd_fn.1} parent=11 // pred_check
          %p1185 = pneg %p852
        $region138: #{fwd_fn.1} parent=11 // pred_check_branch
          %1187 = sbr.rel (%p1185) target = $region140
        $region139: #{fwd_fn.1} parent=11 // pred_region
          _
        $region140: #{fwd_fn.1} parent=11 // pred_fallthru
          _
        // Predicated region
        $region141: #{fwd_fn.1} parent=11 // pred_check
          %p1188 = pneg %p873
        $region142: #{fwd_fn.1} parent=11 // pred_check_branch
          %1190 = sbr.rel (%p1188) target = $region144
        $region143: #{fwd_fn.1} parent=11 // pred_region
          _
        $region144: #{fwd_fn.1} parent=11 // pred_fallthru
          _
        // Predicated region
        $region145: #{fwd_fn.1} parent=11 // pred_check
          %p1191 = pneg %p894
        $region146: #{fwd_fn.1} parent=11 // pred_check_branch
          %1193 = sbr.rel (%p1191) target = $region148
        $region147: #{fwd_fn.1} parent=11 // pred_region
          _
        $region148: #{fwd_fn.1} parent=11 // pred_fallthru
          _
        // Predicated region
        $region149: #{fwd_fn.1} parent=11 // pred_check
          %p1194 = pneg %p915
        $region150: #{fwd_fn.1} parent=11 // pred_check_branch
          %1196 = sbr.rel (%p1194) target = $region152
        $region151: #{fwd_fn.1} parent=11 // pred_region
          _
        $region152: #{fwd_fn.1} parent=11 // pred_fallthru
          _
        // Predicated region
        $region153: #{fwd_fn.1} parent=11 // pred_check
          %p1197 = pneg %p936
        $region154: #{fwd_fn.1} parent=11 // pred_check_branch
          %1199 = sbr.rel (%p1197) target = $region156
        $region155: #{fwd_fn.1} parent=11 // pred_region
          _
        $region156: #{fwd_fn.1} parent=11 // pred_fallthru
          _
        // Predicated region
        $region157: #{fwd_fn.1} parent=11 // pred_check
          %p1200 = pneg %p957
        $region158: #{fwd_fn.1} parent=11 // pred_check_branch
          %1202 = sbr.rel (%p1200) target = $region160
        $region159: #{fwd_fn.1} parent=11 // pred_region
          _
        $region160: #{fwd_fn.1} parent=11 // pred_fallthru
          _
        // Predicated region
        $region161: #{fwd_fn.1} parent=11 // pred_check
          %p1203 = pneg %p978
        $region162: #{fwd_fn.1} parent=11 // pred_check_branch
          %1205 = sbr.rel (%p1203) target = $region164
        $region163: #{fwd_fn.1} parent=11 // pred_region
          _
        $region164: #{fwd_fn.1} parent=11 // pred_fallthru
          _
        // Predicated region
        $region165: #{fwd_fn.1} parent=11 // pred_check
          %p1206 = pneg %p999
        $region166: #{fwd_fn.1} parent=11 // pred_check_branch
          %1208 = sbr.rel (%p1206) target = $region168
        $region167: #{fwd_fn.1} parent=11 // pred_region
          _
        $region168: #{fwd_fn.1} parent=11 // pred_fallthru
          _
      $region12: #{fwd_fn.1} parent=5 // pred_fallthru
        _
      %p1209 = scmp.lt.s32.totalorder %s102, 2
      // Predicated region
      $region169: #{fwd_fn.1} parent=5 // pred_check
        %p1210 = pneg %p1209
      $region170: #{fwd_fn.1} parent=5 // pred_check_branch
        %1212 = sbr.rel (%p1210) target = $region172
      $region171: #{fwd_fn.1} parent=5 // pred_region
        // Predicated region
        $region173: #{fwd_fn.1} parent=171 // pred_check
          %p1213 = pneg %p122
        $region174: #{fwd_fn.1} parent=171 // pred_check_branch
          %1215 = sbr.rel (%p1213) target = $region176
        $region175: #{fwd_fn.1} parent=171 // pred_region
          %p1216 = scmp.lt.s32.totalorder %s102, 1
          %s1217 = scalar_select %p1216, %s102, 1
          %s1218 = smul.addr %s1217, 2
          %s1219 = smul.addr %s1218, 8
          %s1220 = scalar_lea.vmem %s1, %s1219
        $region176: #{fwd_fn.1} parent=171 // pred_fallthru
          _
        // Predicated region
        $region177: #{fwd_fn.1} parent=171 // pred_check
          %p1221 = pneg %p148
        $region178: #{fwd_fn.1} parent=171 // pred_check_branch
          %1223 = sbr.rel (%p1221) target = $region180
        $region179: #{fwd_fn.1} parent=171 // pred_region
          %p1224 = scmp.lt.s32.totalorder %s102, 1
          %s1225 = scalar_select %p1224, %s102, 1
          %s1226 = smul.addr %s1225, 2
          %s1227 = smul.addr %s1226, 8
          %s1228 = scalar_lea.vmem %s3, %s1227
        $region180: #{fwd_fn.1} parent=171 // pred_fallthru
          _
        // Predicated region
        $region181: #{fwd_fn.1} parent=171 // pred_check
          %p1229 = pneg %p174
        $region182: #{fwd_fn.1} parent=171 // pred_check_branch
          %1231 = sbr.rel (%p1229) target = $region184
        $region183: #{fwd_fn.1} parent=171 // pred_region
          %p1232 = scmp.lt.s32.totalorder %s102, 1
          %s1233 = scalar_select %p1232, %s102, 1
          %s1234 = scalar_lea.vmem %s5, %s1233
        $region184: #{fwd_fn.1} parent=171 // pred_fallthru
          _
      $region172: #{fwd_fn.1} parent=5 // pred_fallthru
        _
      %p1235 = scmp.le.s32.totalorder 1, %s102
      %p1236 = scmp.lt.s32.totalorder %s102, 3
      %p1237 = pnand %p1235, %p1236
      %p1238 = pneg %p1237
      // Predicated region
      $region185: #{fwd_fn.1} parent=5 // pred_check
        _
      $region186: #{fwd_fn.1} parent=5 // pred_check_branch
        %1240 = sbr.rel (%p1237) target = $region188
      $region187: #{fwd_fn.1} parent=5 // pred_region
        %s1241 = ssub.s32 %s102, 1
        %p1242 = scmp.lt.s32.totalorder %s107, 1
        %s1243 = scalar_select %p1242, %s107, 1
        %s1244 = smul.addr %s1243, 2
        %s1245 = smul.addr %s1244, 8
        %s1246 = scalar_lea.vmem %s1, %s1245
        %p1247 = pneg %p128
        %p1248 = pneg %p125
        %p1249 = scmp.lt.s32.totalorder %s107, 1
        %s1250 = scalar_select %p1249, %s107, 1
        %s1251 = smul.addr %s1250, 2
        %s1252 = smul.addr %s1251, 8
        %s1253 = scalar_lea.vmem %s3, %s1252
        %p1254 = pneg %p154
        %p1255 = pneg %p151
        %p1256 = scmp.lt.s32.totalorder %s107, 1
        %s1257 = scalar_select %p1256, %s107, 1
        %s1258 = scalar_lea.vmem %s5, %s1257
        %p1259 = pneg %p180
        %p1260 = pneg %p177
        %p1261 = pneg %p201
        %p1262 = pneg %p198
        %p1263 = pneg %p222
        %p1264 = pneg %p219
        %p1265 = pneg %p243
        %p1266 = pneg %p240
        %p1267 = pneg %p264
        %p1268 = pneg %p261
        %p1269 = pneg %p285
        %p1270 = pneg %p282
        %p1271 = pneg %p306
        %p1272 = pneg %p303
        %p1273 = pneg %p327
        %p1274 = pneg %p324
        %p1275 = pneg %p348
        %p1276 = pneg %p345
        %p1277 = pneg %p369
        %p1278 = pneg %p366
        %p1279 = pneg %p390
        %p1280 = pneg %p387
        %p1281 = pneg %p411
        %p1282 = pneg %p408
        %p1283 = pneg %p432
        %p1284 = pneg %p429
        %p1285 = pneg %p453
        %p1286 = pneg %p450
        %p1287 = pneg %p474
        %p1288 = pneg %p471
        %p1289 = pneg %p495
        %p1290 = pneg %p492
        %p1291 = pneg %p516
        %p1292 = pneg %p513
        %p1293 = pneg %p537
        %p1294 = pneg %p534
        %p1295 = pneg %p558
        %p1296 = pneg %p555
        %p1297 = pneg %p579
        %p1298 = pneg %p576
        %p1299 = pneg %p600
        %p1300 = pneg %p597
        %p1301 = pneg %p621
        %p1302 = pneg %p618
        %p1303 = pneg %p642
        %p1304 = pneg %p639
        %p1305 = pneg %p663
        %p1306 = pneg %p660
        %p1307 = pneg %p684
        %p1308 = pneg %p681
        %p1309 = pneg %p705
        %p1310 = pneg %p702
        %p1311 = pneg %p726
        %p1312 = pneg %p723
        %p1313 = pneg %p747
        %p1314 = pneg %p744
        %p1315 = pneg %p768
        %p1316 = pneg %p765
        %p1317 = pneg %p789
        %p1318 = pneg %p786
        %p1319 = pneg %p810
        %p1320 = pneg %p807
        %p1321 = pneg %p831
        %p1322 = pneg %p828
        %p1323 = pneg %p852
        %p1324 = pneg %p849
        %p1325 = pneg %p873
        %p1326 = pneg %p870
        %p1327 = pneg %p894
        %p1328 = pneg %p891
        %p1329 = pneg %p915
        %p1330 = pneg %p912
        %p1331 = pneg %p936
        %p1332 = pneg %p933
        %p1333 = pneg %p957
        %p1334 = pneg %p954
        %p1335 = pneg %p978
        %p1336 = pneg %p975
        %p1337 = pneg %p999
        %p1338 = pneg %p996
        %p1339 = pneg %p1025
        %p1340 = pneg %p1022
        %p1341 = scmp.lt.s32.totalorder %s107, 1
        %s1342 = scalar_select %p1341, %s107, 1
        %s1343 = smul.addr %s1342, 2
        %s1344 = smul.addr %s1343, 8
        %s1345 = scalar_lea.vmem %s85, %s1344
        %p1346 = pneg %p1051
        %p1347 = pneg %p1048
        %s1348 = sand.u32 %s1038, 1
        %s1349 = scalar_lea.sflag [#allocation3], %s1348
        %s1350 = sand.u32 %s1038, 1
        %s1351 = scalar_lea.vmem [#allocation2], %s1350
        %p1352 = pneg %p1077
        %p1353 = pneg %p1074
        %s1354 = sand.u32 %s1064, 1
        %s1355 = scalar_lea.sflag [#allocation5], %s1354
        %s1356 = sand.u32 %s1064, 1
        %s1357 = scalar_lea.vmem [#allocation4], %s1356
        %p1358 = scmp.lt.s32.totalorder %s107, 1
        %s1359 = scalar_select %p1358, %s107, 1
        %s1360 = smul.addr %s1359, 2
        %s1361 = smul.addr %s1360, 8
        %s1362 = scalar_lea.vmem %s1, %s1361
        %p1363 = scmp.lt.s32.totalorder %s107, 1
        %s1364 = scalar_select %p1363, %s107, 1
        %s1365 = smul.addr %s1364, 2
        %s1366 = smul.addr %s1365, 8
        %s1367 = scalar_lea.vmem %s3, %s1366
        %p1368 = scmp.lt.s32.totalorder %s107, 1
        %s1369 = scalar_select %p1368, %s107, 1
        %s1370 = scalar_lea.vmem %s5, %s1369
        %p1371 = scmp.lt.s32.totalorder %s107, 1
        %s1372 = scalar_select %p1371, %s107, 1
        %s1373 = smul.addr %s1372, 2
        %s1374 = smul.addr %s1373, 8
        %s1375 = scalar_lea.vmem %s85, %s1374
        %v1377 = vld [vmem:[%s1367] sm:$0xff]
        %v1378 = vld [vmem:[%s1367 + $0x8] sm:$0xff]
        %v1379 = vld [vmem:[%s1370] sm:$0x1]
        %v1380 = vlaneseq
        %v1381 = vshrl.u32 %v1380, 7
        %v1382 = vadd.s32 %v1381, 8
        %v1383 = vld [vmem:[%s1362] sm:$0xff]
        %v1384 = vld [vmem:[%s1362 + $0x8] sm:$0xff]
        %1386 = vset.pattern.permute.xlu0 0
        %1387 = vperm.xlu0 %1386, %v1377
        %v1388 = vpop.permute.xlu0 %1387
        %1391 = vset.pattern.permute.xlu0 0
        %1392 = vperm.xlu0 %1391, %v1378
        %v1393 = vpop.permute.xlu0 %1392
        %v1395 = vmul.f32 %v1383, %v1388
        %v1396 = vmul.f32 %v1384, %v1393
        %v1397 = vld [vmem:[%s11] sm:$0x1]
        %v1398 = vrot.slane %v1395, 7
        %v1399 = vrot.slane %v1396, 7
        %vm1400 = vcmp.lt.s32.totalorder %v1381, 1
        %v1401 = vsel %vm1400, %v1398, %v1399
        %v1402 = vsel %vm1400, %v1399, %v1398
        %v1403 = vadd.s32 %v1381, 4294967295
        %v1404 = vadd.s32 %v1382, 4294967295
        %vm1405 = vcmp.ge.s32.totalorder %v1403, 0
        %vm1406 = vcmp.ge.s32.totalorder %v1404, 0
        %vm1407 = vcmp.lt.s32.totalorder %v1403, 16
        %vm1408 = vcmp.lt.s32.totalorder %v1404, 16
        %vm1409 = vmand %vm1405, %vm1407
        %vm1410 = vmand %vm1406, %vm1408
        %v1411 = vsel %vm1409, 1, 0
        %v1412 = vsel %vm1410, 1, 0
        %vm1413 = vcmp.eq.s32.totalorder %v1411, 1
        %vm1414 = vcmp.eq.s32.totalorder %v1412, 1
        %v1415 = vsel %vm1413, %v1402, 0.0
        %v1416 = vsel %vm1414, %v1401, 0.0
        %v1417 = vpack.c.bf16 %v1416, %v1415
        %v1418 = vld [vmem:[%s9] sm:$0xf]
        %v1419 = vld [vmem:[%s9 + $0x4] sm:$0xf]
        %v1420 = vld [vmem:[%s9 + $0x8] sm:$0xf]
        %v1421 = vld [vmem:[%s9 + $0xc] sm:$0xf]
        %v1422 = vld [vmem:[%s9 + $0x10] sm:$0xf]
        %v1423 = vld [vmem:[%s9 + $0x14] sm:$0xf]
        %v1424 = vpack.c.bf16 %v1396, %v1395
        %s1425 = scalar_lea.vmem %s9, 24
        %v1426 = vld [vmem:[%s1425] sm:$0xf]
        %v1427 = vld [vmem:[%s1425 + $0x4] sm:$0xf]
        %v1428 = vld [vmem:[%s1425 + $0x8] sm:$0xf]
        %v1429 = vld [vmem:[%s1425 + $0xc] sm:$0xf]
        %v1430 = vld [vmem:[%s1425 + $0x10] sm:$0xf]
        %v1431 = vld [vmem:[%s1425 + $0x14] sm:$0xf]
        %v1438 = vunpack.c.l.b16 %v1426
        %v1439 = vunpack.c.l.b16 %v1427
        %v1440 = vunpack.c.l.b16 %v1428
        %v1441 = vunpack.c.l.b16 %v1429
        %v1442 = vunpack.c.l.b16 %v1430
        %v1443 = vunpack.c.l.b16 %v1431
        %v1444 = vpack.c.b16 %v1439, %v1438
        %v1445 = vpack.c.b16 %v1441, %v1440
        %v1446 = vpack.c.b16 %v1443, %v1442
        %vm1450 = vcmask 392192
        %v1452 = vsel %vm1450, %v1424, 0
        %1454 = vmatprep.subr.bf16.mxu0 0
        %1455 = vmatpush1.bf16.msra.mxu0 0
        %1456 = vmatprep.subr.bf16.mxu0 0
        %1457 = vmatpush1.bf16.msra.mxu0 0
        %1458 = vmatprep.subr.bf16.mxu0 0
        %1459 = vmatpush1.bf16.msra.mxu0 0
        %1460 = vmatprep.subr.bf16.mxu0 0
        %1461 = vmatpush1.bf16.msra.mxu0 0
        %1462 = vmatprep.subr.bf16.mxu0 0
        %1463 = vmatpush1.bf16.msra.mxu0 0
        %1464 = vmatprep.subr.bf16.mxu0 0
        %1465 = vmatpush1.bf16.msra.mxu0 %v1446
        %1466 = vmatprep.subr.bf16.mxu0 0
        %1467 = vmatpush1.bf16.msra.mxu0 %v1445
        %1468 = vmatprep.subr.bf16.mxu0 0
        %1469 = vmatpush1.bf16.msra.mxu0 %v1444
        %1470 = vmatprep.subr.bf16.mxu0 0
        %1471 = vmatpush2.bf16.msra.mxu0 0
        %1472 = vmatprep.subr.bf16.mxu0 0
        %1473 = vmatpush2.bf16.msra.mxu0 0
        %1474 = vmatprep.subr.bf16.mxu0 0
        %1475 = vmatpush2.bf16.msra.mxu0 0
        %1476 = vmatprep.subr.bf16.mxu0 0
        %1477 = vmatpush2.bf16.msra.mxu0 0
        %1478 = vmatprep.subr.bf16.mxu0 0
        %1479 = vmatpush2.bf16.msra.mxu0 0
        %1480 = vmatprep.subr.bf16.mxu0 0
        %1481 = vmatpush2.bf16.msra.mxu0 0
        %1482 = vmatprep.subr.bf16.mxu0 0
        %1483 = vmatpush2.bf16.msra.mxu0 0
        %1484 = vmatprep.subr.bf16.mxu0 0
        %1485 = vmatpush2.bf16.msra.mxu0 0
        %1486 = vmatprep.mubr.bf16.mxu0 0
        %1487 = vmatmul.mubr.bf16.gmra.mxu0 %v1452
        %v1488 = vpop.f32.mrf.mxu0
        %v1489 = vadd.f32 0.0, %v1488
        %v1490 = vpop.f32.mrf.mxu0
        %v1491 = vpop.f32.mrf.mxu0
        %v1492 = vadd.f32 0.0, %v1491
        %v1493 = vpop.f32.mrf.mxu0
        %1494 = vdwg.mxu0
        %v1501 = vunpack.c.l.b16 %v1418
        %v1502 = vunpack.c.l.b16 %v1419
        %v1503 = vunpack.c.l.b16 %v1420
        %v1504 = vunpack.c.l.b16 %v1421
        %v1505 = vunpack.c.l.b16 %v1422
        %v1506 = vunpack.c.l.b16 %v1423
        %v1507 = vpack.c.b16 %v1502, %v1501
        %v1508 = vpack.c.b16 %v1504, %v1503
        %v1509 = vpack.c.b16 %v1506, %v1505
        %v1514 = vsel %vm1450, %v1417, 0
        %1516 = vmatprep.subr.bf16.mxu0 0
        %1517 = vmatpush1.bf16.msra.mxu0 0
        %1518 = vmatprep.subr.bf16.mxu0 0
        %1519 = vmatpush1.bf16.msra.mxu0 0
        %1520 = vmatprep.subr.bf16.mxu0 0
        %1521 = vmatpush1.bf16.msra.mxu0 0
        %1522 = vmatprep.subr.bf16.mxu0 0
        %1523 = vmatpush1.bf16.msra.mxu0 0
        %1524 = vmatprep.subr.bf16.mxu0 0
        %1525 = vmatpush1.bf16.msra.mxu0 0
        %1526 = vmatprep.subr.bf16.mxu0 0
        %1527 = vmatpush1.bf16.msra.mxu0 %v1509
        %1528 = vmatprep.subr.bf16.mxu0 0
        %1529 = vmatpush1.bf16.msra.mxu0 %v1508
        %1530 = vmatprep.subr.bf16.mxu0 0
        %1531 = vmatpush1.bf16.msra.mxu0 %v1507
        %1532 = vmatprep.subr.bf16.mxu0 0
        %1533 = vmatpush2.bf16.msra.mxu0 0
        %1534 = vmatprep.subr.bf16.mxu0 0
        %1535 = vmatpush2.bf16.msra.mxu0 0
        %1536 = vmatprep.subr.bf16.mxu0 0
        %1537 = vmatpush2.bf16.msra.mxu0 0
        %1538 = vmatprep.subr.bf16.mxu0 0
        %1539 = vmatpush2.bf16.msra.mxu0 0
        %1540 = vmatprep.subr.bf16.mxu0 0
        %1541 = vmatpush2.bf16.msra.mxu0 0
        %1542 = vmatprep.subr.bf16.mxu0 0
        %1543 = vmatpush2.bf16.msra.mxu0 0
        %1544 = vmatprep.subr.bf16.mxu0 0
        %1545 = vmatpush2.bf16.msra.mxu0 0
        %1546 = vmatprep.subr.bf16.mxu0 0
        %1547 = vmatpush2.bf16.msra.mxu0 0
        %1548 = vmatprep.mubr.bf16.mxu0 0
        %1549 = vmatmul.mubr.bf16.gmra.mxu0 %v1514
        %v1550 = vpop.f32.mrf.mxu0
        %v1551 = vadd.f32 %v1489, %v1550
        %v1552 = vpop.f32.mrf.mxu0
        %v1553 = vpop.f32.mrf.mxu0
        %v1554 = vadd.f32 %v1492, %v1553
        %v1555 = vpop.f32.mrf.mxu0
        %1556 = vdwg.mxu0
        %v1557 = vrot.slane %v1395, 1
        %v1558 = vrot.slane %v1396, 1
        %vm1559 = vcmp.lt.s32.totalorder %v1381, 7
        %v1560 = vsel %vm1559, %v1557, %v1558
        %v1561 = vsel %vm1559, %v1558, %v1557
        %v1562 = vadd.s32 %v1381, 1
        %v1563 = vadd.s32 %v1382, 1
        %vm1564 = vcmp.ge.s32.totalorder %v1562, 0
        %vm1565 = vcmp.ge.s32.totalorder %v1563, 0
        %vm1566 = vcmp.lt.s32.totalorder %v1562, 16
        %vm1567 = vcmp.lt.s32.totalorder %v1563, 16
        %vm1568 = vmand %vm1564, %vm1566
        %vm1569 = vmand %vm1565, %vm1567
        %v1570 = vsel %vm1568, 1, 0
        %v1571 = vsel %vm1569, 1, 0
        %vm1572 = vcmp.eq.s32.totalorder %v1570, 1
        %vm1573 = vcmp.eq.s32.totalorder %v1571, 1
        %v1574 = vsel %vm1572, %v1560, 0.0
        %v1575 = vsel %vm1573, %v1561, 0.0
        %v1576 = vpack.c.bf16 %v1575, %v1574
        %s1577 = scalar_lea.vmem %s9, 48
        %v1578 = vld [vmem:[%s1577] sm:$0xf]
        %v1579 = vld [vmem:[%s1577 + $0x4] sm:$0xf]
        %v1580 = vld [vmem:[%s1577 + $0x8] sm:$0xf]
        %v1581 = vld [vmem:[%s1577 + $0xc] sm:$0xf]
        %v1582 = vld [vmem:[%s1577 + $0x10] sm:$0xf]
        %v1583 = vld [vmem:[%s1577 + $0x14] sm:$0xf]
        %v1590 = vunpack.c.l.b16 %v1578
        %v1591 = vunpack.c.l.b16 %v1579
        %v1592 = vunpack.c.l.b16 %v1580
        %v1593 = vunpack.c.l.b16 %v1581
        %v1594 = vunpack.c.l.b16 %v1582
        %v1595 = vunpack.c.l.b16 %v1583
        %v1596 = vpack.c.b16 %v1591, %v1590
        %v1597 = vpack.c.b16 %v1593, %v1592
        %v1598 = vpack.c.b16 %v1595, %v1594
        %v1603 = vsel %vm1450, %v1576, 0
        %1605 = vmatprep.subr.bf16.mxu0 0
        %1606 = vmatpush1.bf16.msra.mxu0 0
        %1607 = vmatprep.subr.bf16.mxu0 0
        %1608 = vmatpush1.bf16.msra.mxu0 0
        %1609 = vmatprep.subr.bf16.mxu0 0
        %1610 = vmatpush1.bf16.msra.mxu0 0
        %1611 = vmatprep.subr.bf16.mxu0 0
        %1612 = vmatpush1.bf16.msra.mxu0 0
        %1613 = vmatprep.subr.bf16.mxu0 0
        %1614 = vmatpush1.bf16.msra.mxu0 0
        %1615 = vmatprep.subr.bf16.mxu0 0
        %1616 = vmatpush1.bf16.msra.mxu0 %v1598
        %1617 = vmatprep.subr.bf16.mxu0 0
        %1618 = vmatpush1.bf16.msra.mxu0 %v1597
        %1619 = vmatprep.subr.bf16.mxu0 0
        %1620 = vmatpush1.bf16.msra.mxu0 %v1596
        %1621 = vmatprep.subr.bf16.mxu0 0
        %1622 = vmatpush2.bf16.msra.mxu0 0
        %1623 = vmatprep.subr.bf16.mxu0 0
        %1624 = vmatpush2.bf16.msra.mxu0 0
        %1625 = vmatprep.subr.bf16.mxu0 0
        %1626 = vmatpush2.bf16.msra.mxu0 0
        %1627 = vmatprep.subr.bf16.mxu0 0
        %1628 = vmatpush2.bf16.msra.mxu0 0
        %1629 = vmatprep.subr.bf16.mxu0 0
        %1630 = vmatpush2.bf16.msra.mxu0 0
        %1631 = vmatprep.subr.bf16.mxu0 0
        %1632 = vmatpush2.bf16.msra.mxu0 0
        %1633 = vmatprep.subr.bf16.mxu0 0
        %1634 = vmatpush2.bf16.msra.mxu0 0
        %1635 = vmatprep.subr.bf16.mxu0 0
        %1636 = vmatpush2.bf16.msra.mxu0 0
        %1637 = vmatprep.mubr.bf16.mxu0 0
        %1638 = vmatmul.mubr.bf16.gmra.mxu0 %v1603
        %v1639 = vpop.f32.mrf.mxu0
        %v1640 = vadd.f32 0.0, %v1639
        %v1641 = vpop.f32.mrf.mxu0
        %v1642 = vpop.f32.mrf.mxu0
        %v1643 = vadd.f32 0.0, %v1642
        %v1644 = vpop.f32.mrf.mxu0
        %1645 = vdwg.mxu0
        %v1646 = vadd.f32 %v1551, %v1640
        %v1647 = vadd.f32 %v1554, %v1643
        %v1649 = vlaneseq
        %v1650 = vshrl.u32 %v1649, 7
        %v1651 = vsub.s32 0, %v1650
        %v1652 = vrot.slane %v1397, %v1651
        %v1654 = vadd.f32 %v1646, %v1652
        %v1655 = vadd.f32 %v1647, %v1652
        %v1656 = vmax.f32 %v1654, 0.0
        %v1657 = vmax.f32 %v1655, 0.0
        %v1658 = vmul.f32 %v1656, %v1388
        %v1659 = vmul.f32 %v1657, %v1393
        %v1660 = vld [vmem:[%s15] sm:$0x1]
        %v1661 = vrot.slane %v1658, 7
        %v1662 = vrot.slane %v1659, 7
        %v1663 = vsel %vm1400, %v1661, %v1662
        %v1664 = vsel %vm1400, %v1662, %v1661
        %v1665 = vsel %vm1413, %v1664, 0.0
        %v1666 = vsel %vm1414, %v1663, 0.0
        %v1667 = vpack.c.bf16 %v1666, %v1665
        %v1668 = vld [vmem:[%s13] sm:$0xf]
        %v1669 = vld [vmem:[%s13 + $0x4] sm:$0xf]
        %v1670 = vld [vmem:[%s13 + $0x8] sm:$0xf]
        %v1671 = vld [vmem:[%s13 + $0xc] sm:$0xf]
        %v1672 = vpack.c.bf16 %v1659, %v1658
        %s1673 = scalar_lea.vmem %s13, 16
        %v1674 = vld [vmem:[%s1673] sm:$0xf]
        %v1675 = vld [vmem:[%s1673 + $0x4] sm:$0xf]
        %v1676 = vld [vmem:[%s1673 + $0x8] sm:$0xf]
        %v1677 = vld [vmem:[%s1673 + $0xc] sm:$0xf]
        %v1682 = vunpack.c.l.b16 %v1674
        %v1683 = vunpack.c.l.b16 %v1675
        %v1684 = vunpack.c.l.b16 %v1676
        %v1685 = vunpack.c.l.b16 %v1677
        %v1686 = vpack.c.b16 %v1683, %v1682
        %v1687 = vpack.c.b16 %v1685, %v1684
        %vm1690 = vcmask 261120
        %v1692 = vsel %vm1690, %v1672, 0
        %1694 = vmatprep.subr.bf16.mxu0 0
        %1695 = vmatpush1.bf16.msra.mxu0 0
        %1696 = vmatprep.subr.bf16.mxu0 0
        %1697 = vmatpush1.bf16.msra.mxu0 0
        %1698 = vmatprep.subr.bf16.mxu0 0
        %1699 = vmatpush1.bf16.msra.mxu0 0
        %1700 = vmatprep.subr.bf16.mxu0 0
        %1701 = vmatpush1.bf16.msra.mxu0 0
        %1702 = vmatprep.subr.bf16.mxu0 0
        %1703 = vmatpush1.bf16.msra.mxu0 0
        %1704 = vmatprep.subr.bf16.mxu0 0
        %1705 = vmatpush1.bf16.msra.mxu0 0
        %1706 = vmatprep.subr.bf16.mxu0 0
        %1707 = vmatpush1.bf16.msra.mxu0 %v1687
        %1708 = vmatprep.subr.bf16.mxu0 0
        %1709 = vmatpush1.bf16.msra.mxu0 %v1686
        %1710 = vmatprep.subr.bf16.mxu0 0
        %1711 = vmatpush2.bf16.msra.mxu0 0
        %1712 = vmatprep.subr.bf16.mxu0 0
        %1713 = vmatpush2.bf16.msra.mxu0 0
        %1714 = vmatprep.subr.bf16.mxu0 0
        %1715 = vmatpush2.bf16.msra.mxu0 0
        %1716 = vmatprep.subr.bf16.mxu0 0
        %1717 = vmatpush2.bf16.msra.mxu0 0
        %1718 = vmatprep.subr.bf16.mxu0 0
        %1719 = vmatpush2.bf16.msra.mxu0 0
        %1720 = vmatprep.subr.bf16.mxu0 0
        %1721 = vmatpush2.bf16.msra.mxu0 0
        %1722 = vmatprep.subr.bf16.mxu0 0
        %1723 = vmatpush2.bf16.msra.mxu0 0
        %1724 = vmatprep.subr.bf16.mxu0 0
        %1725 = vmatpush2.bf16.msra.mxu0 0
        %1726 = vmatprep.mubr.bf16.mxu0 0
        %1727 = vmatmul.mubr.bf16.gmra.mxu0 %v1692
        %v1728 = vpop.f32.mrf.mxu0
        %v1729 = vadd.f32 0.0, %v1728
        %v1730 = vpop.f32.mrf.mxu0
        %v1731 = vpop.f32.mrf.mxu0
        %v1732 = vadd.f32 0.0, %v1731
        %v1733 = vpop.f32.mrf.mxu0
        %1734 = vdwg.mxu0
        %v1739 = vunpack.c.l.b16 %v1668
        %v1740 = vunpack.c.l.b16 %v1669
        %v1741 = vunpack.c.l.b16 %v1670
        %v1742 = vunpack.c.l.b16 %v1671
        %v1743 = vpack.c.b16 %v1740, %v1739
        %v1744 = vpack.c.b16 %v1742, %v1741
        %v1748 = vsel %vm1690, %v1667, 0
        %1750 = vmatprep.subr.bf16.mxu0 0
        %1751 = vmatpush1.bf16.msra.mxu0 0
        %1752 = vmatprep.subr.bf16.mxu0 0
        %1753 = vmatpush1.bf16.msra.mxu0 0
        %1754 = vmatprep.subr.bf16.mxu0 0
        %1755 = vmatpush1.bf16.msra.mxu0 0
        %1756 = vmatprep.subr.bf16.mxu0 0
        %1757 = vmatpush1.bf16.msra.mxu0 0
        %1758 = vmatprep.subr.bf16.mxu0 0
        %1759 = vmatpush1.bf16.msra.mxu0 0
        %1760 = vmatprep.subr.bf16.mxu0 0
        %1761 = vmatpush1.bf16.msra.mxu0 0
        %1762 = vmatprep.subr.bf16.mxu0 0
        %1763 = vmatpush1.bf16.msra.mxu0 %v1744
        %1764 = vmatprep.subr.bf16.mxu0 0
        %1765 = vmatpush1.bf16.msra.mxu0 %v1743
        %1766 = vmatprep.subr.bf16.mxu0 0
        %1767 = vmatpush2.bf16.msra.mxu0 0
        %1768 = vmatprep.subr.bf16.mxu0 0
        %1769 = vmatpush2.bf16.msra.mxu0 0
        %1770 = vmatprep.subr.bf16.mxu0 0
        %1771 = vmatpush2.bf16.msra.mxu0 0
        %1772 = vmatprep.subr.bf16.mxu0 0
        %1773 = vmatpush2.bf16.msra.mxu0 0
        %1774 = vmatprep.subr.bf16.mxu0 0
        %1775 = vmatpush2.bf16.msra.mxu0 0
        %1776 = vmatprep.subr.bf16.mxu0 0
        %1777 = vmatpush2.bf16.msra.mxu0 0
        %1778 = vmatprep.subr.bf16.mxu0 0
        %1779 = vmatpush2.bf16.msra.mxu0 0
        %1780 = vmatprep.subr.bf16.mxu0 0
        %1781 = vmatpush2.bf16.msra.mxu0 0
        %1782 = vmatprep.mubr.bf16.mxu0 0
        %1783 = vmatmul.mubr.bf16.gmra.mxu0 %v1748
        %v1784 = vpop.f32.mrf.mxu0
        %v1785 = vadd.f32 %v1729, %v1784
        %v1786 = vpop.f32.mrf.mxu0
        %v1787 = vpop.f32.mrf.mxu0
        %v1788 = vadd.f32 %v1732, %v1787
        %v1789 = vpop.f32.mrf.mxu0
        %1790 = vdwg.mxu0
        %v1791 = vrot.slane %v1658, 1
        %v1792 = vrot.slane %v1659, 1
        %v1793 = vsel %vm1559, %v1791, %v1792
        %v1794 = vsel %vm1559, %v1792, %v1791
        %v1795 = vsel %vm1572, %v1793, 0.0
        %v1796 = vsel %vm1573, %v1794, 0.0
        %v1797 = vpack.c.bf16 %v1796, %v1795
        %s1798 = scalar_lea.vmem %s13, 32
        %v1799 = vld [vmem:[%s1798] sm:$0xf]
        %v1800 = vld [vmem:[%s1798 + $0x4] sm:$0xf]
        %v1801 = vld [vmem:[%s1798 + $0x8] sm:$0xf]
        %v1802 = vld [vmem:[%s1798 + $0xc] sm:$0xf]
        %v1807 = vunpack.c.l.b16 %v1799
        %v1808 = vunpack.c.l.b16 %v1800
        %v1809 = vunpack.c.l.b16 %v1801
        %v1810 = vunpack.c.l.b16 %v1802
        %v1811 = vpack.c.b16 %v1808, %v1807
        %v1812 = vpack.c.b16 %v1810, %v1809
        %v1816 = vsel %vm1690, %v1797, 0
        %1818 = vmatprep.subr.bf16.mxu0 0
        %1819 = vmatpush1.bf16.msra.mxu0 0
        %1820 = vmatprep.subr.bf16.mxu0 0
        %1821 = vmatpush1.bf16.msra.mxu0 0
        %1822 = vmatprep.subr.bf16.mxu0 0
        %1823 = vmatpush1.bf16.msra.mxu0 0
        %1824 = vmatprep.subr.bf16.mxu0 0
        %1825 = vmatpush1.bf16.msra.mxu0 0
        %1826 = vmatprep.subr.bf16.mxu0 0
        %1827 = vmatpush1.bf16.msra.mxu0 0
        %1828 = vmatprep.subr.bf16.mxu0 0
        %1829 = vmatpush1.bf16.msra.mxu0 0
        %1830 = vmatprep.subr.bf16.mxu0 0
        %1831 = vmatpush1.bf16.msra.mxu0 %v1812
        %1832 = vmatprep.subr.bf16.mxu0 0
        %1833 = vmatpush1.bf16.msra.mxu0 %v1811
        %1834 = vmatprep.subr.bf16.mxu0 0
        %1835 = vmatpush2.bf16.msra.mxu0 0
        %1836 = vmatprep.subr.bf16.mxu0 0
        %1837 = vmatpush2.bf16.msra.mxu0 0
        %1838 = vmatprep.subr.bf16.mxu0 0
        %1839 = vmatpush2.bf16.msra.mxu0 0
        %1840 = vmatprep.subr.bf16.mxu0 0
        %1841 = vmatpush2.bf16.msra.mxu0 0
        %1842 = vmatprep.subr.bf16.mxu0 0
        %1843 = vmatpush2.bf16.msra.mxu0 0
        %1844 = vmatprep.subr.bf16.mxu0 0
        %1845 = vmatpush2.bf16.msra.mxu0 0
        %1846 = vmatprep.subr.bf16.mxu0 0
        %1847 = vmatpush2.bf16.msra.mxu0 0
        %1848 = vmatprep.subr.bf16.mxu0 0
        %1849 = vmatpush2.bf16.msra.mxu0 0
        %1850 = vmatprep.mubr.bf16.mxu0 0
        %1851 = vmatmul.mubr.bf16.gmra.mxu0 %v1816
        %v1852 = vpop.f32.mrf.mxu0
        %v1853 = vadd.f32 0.0, %v1852
        %v1854 = vpop.f32.mrf.mxu0
        %v1855 = vpop.f32.mrf.mxu0
        %v1856 = vadd.f32 0.0, %v1855
        %v1857 = vpop.f32.mrf.mxu0
        %1858 = vdwg.mxu0
        %v1859 = vadd.f32 %v1785, %v1853
        %v1860 = vadd.f32 %v1788, %v1856
        %v1862 = vlaneseq
        %v1863 = vshrl.u32 %v1862, 7
        %v1864 = vsub.s32 0, %v1863
        %v1865 = vrot.slane %v1660, %v1864
        %v1867 = vadd.f32 %v1859, %v1865
        %v1868 = vadd.f32 %v1860, %v1865
        %v1869 = vmax.f32 %v1867, 0.0
        %v1870 = vmax.f32 %v1868, 0.0
        %v1871 = vmul.f32 %v1869, %v1388
        %v1872 = vmul.f32 %v1870, %v1393
        %v1873 = vld [vmem:[%s7] sm:$0xff]
        %v1874 = vld [vmem:[%s7 + $0x8] sm:$0xff]
        %v1875 = vadd.f32 %v1871, %v1873
        %v1876 = vadd.f32 %v1872, %v1874
        %v1877 = vmul.f32 %v1875, %v1388
        %v1878 = vmul.f32 %v1876, %v1393
        %vm1879 = vcmp.gt.f32.partialorder %v1379, 0.0
        %v1880 = vld [vmem:[%s17] sm:$0x1]
        %v1881 = vld [vmem:[%s19] sm:$0x1]
        %v1882 = vsel %vm1690, %v1877, 0.0
        %1883 = vadd.xlane.f32.xlu0 %v1882
        %v1884 = vpop.xlane.xlu0 %1883
        %v1885 = vsel %vm1690, %v1878, 0.0
        %1886 = vadd.xlane.f32.xlu0 %v1885
        %v1887 = vpop.xlane.xlu0 %1886
        %v1888 = vrcp.pop 32.0
        %v1889 = vmul.f32 %v1884, %v1888
        %v1890 = vmul.f32 %v1887, %v1888
        %v1891 = vsub.f32 %v1877, %v1889
        %v1892 = vsub.f32 %v1878, %v1890
        %v1893 = vmul.f32 %v1891, %v1891
        %v1894 = vmul.f32 %v1892, %v1892
        %v1895 = vsel %vm1690, %v1893, 0.0
        %1896 = vadd.xlane.f32.xlu0 %v1895
        %v1897 = vpop.xlane.xlu0 %1896
        %v1898 = vsel %vm1690, %v1894, 0.0
        %1899 = vadd.xlane.f32.xlu0 %v1898
        %v1900 = vpop.xlane.xlu0 %1899
        %v1901 = vmul.f32 %v1897, %v1888
        %v1902 = vmul.f32 %v1900, %v1888
        %v1903 = vadd.f32 %v1901, 1e-05
        %v1904 = vadd.f32 %v1902, 1e-05
        %v1905 = vrsqrt.pop %v1903
        %v1906 = vrsqrt.pop %v1904
        %v1907 = vmul.f32 %v1891, %v1905
        %v1908 = vmul.f32 %v1892, %v1906
        %v1910 = vlaneseq
        %v1911 = vshrl.u32 %v1910, 7
        %v1912 = vsub.s32 0, %v1911
        %v1913 = vrot.slane %v1880, %v1912
        %v1915 = vmul.f32 %v1907, %v1913
        %v1916 = vmul.f32 %v1908, %v1913
        %v1918 = vlaneseq
        %v1919 = vshrl.u32 %v1918, 7
        %v1920 = vsub.s32 0, %v1919
        %v1921 = vrot.slane %v1881, %v1920
        %v1923 = vadd.f32 %v1915, %v1921
        %v1924 = vadd.f32 %v1916, %v1921
        %v1925 = vpack.c.bf16 %v1924, %v1923
        %v1926 = vld [vmem:[%s21] sm:$0xf]
        %v1927 = vld [vmem:[%s21 + $0x4] sm:$0xf]
        %v1928 = vld [vmem:[%s21 + $0x8] sm:$0xf]
        %v1929 = vld [vmem:[%s21 + $0xc] sm:$0xf]
        %v1930 = vld [vmem:[%s23] sm:$0x1]
        %v1932 = vlaneseq
        %v1933 = vshrl.u32 %v1932, 7
        %v1934 = vsub.s32 0, %v1933
        %v1935 = vrot.slane %v1930, %v1934
        %v1941 = vunpack.c.l.b16 %v1926
        %v1942 = vunpack.c.l.b16 %v1927
        %v1943 = vunpack.c.l.b16 %v1928
        %v1944 = vunpack.c.l.b16 %v1929
        %v1945 = vpack.c.b16 %v1942, %v1941
        %v1946 = vpack.c.b16 %v1944, %v1943
        %v1950 = vsel %vm1690, %v1925, 0
        %1952 = vmatprep.subr.bf16.mxu0 0
        %1953 = vmatpush1.bf16.msra.mxu0 0
        %1954 = vmatprep.subr.bf16.mxu0 0
        %1955 = vmatpush1.bf16.msra.mxu0 0
        %1956 = vmatprep.subr.bf16.mxu0 0
        %1957 = vmatpush1.bf16.msra.mxu0 0
        %1958 = vmatprep.subr.bf16.mxu0 0
        %1959 = vmatpush1.bf16.msra.mxu0 0
        %1960 = vmatprep.subr.bf16.mxu0 0
        %1961 = vmatpush1.bf16.msra.mxu0 0
        %1962 = vmatprep.subr.bf16.mxu0 0
        %1963 = vmatpush1.bf16.msra.mxu0 0
        %1964 = vmatprep.subr.bf16.mxu0 0
        %1965 = vmatpush1.bf16.msra.mxu0 %v1946
        %1966 = vmatprep.subr.bf16.mxu0 0
        %1967 = vmatpush1.bf16.msra.mxu0 %v1945
        %1968 = vmatprep.subr.bf16.mxu0 0
        %1969 = vmatpush2.bf16.msra.mxu0 0
        %1970 = vmatprep.subr.bf16.mxu0 0
        %1971 = vmatpush2.bf16.msra.mxu0 0
        %1972 = vmatprep.subr.bf16.mxu0 0
        %1973 = vmatpush2.bf16.msra.mxu0 0
        %1974 = vmatprep.subr.bf16.mxu0 0
        %1975 = vmatpush2.bf16.msra.mxu0 0
        %1976 = vmatprep.subr.bf16.mxu0 0
        %1977 = vmatpush2.bf16.msra.mxu0 0
        %1978 = vmatprep.subr.bf16.mxu0 0
        %1979 = vmatpush2.bf16.msra.mxu0 0
        %1980 = vmatprep.subr.bf16.mxu0 0
        %1981 = vmatpush2.bf16.msra.mxu0 0
        %1982 = vmatprep.subr.bf16.mxu0 0
        %1983 = vmatpush2.bf16.msra.mxu0 0
        %1984 = vmatprep.mubr.bf16.mxu0 0
        %1985 = vmatmul.mubr.bf16.gmra.mxu0 %v1950
        %v1986 = vpop.f32.mrf.mxu0
        %v1987 = vadd.f32 %v1935, %v1986
        %v1988 = vpop.f32.mrf.mxu0
        %v1989 = vpop.f32.mrf.mxu0
        %v1990 = vadd.f32 %v1935, %v1989
        %v1991 = vpop.f32.mrf.mxu0
        %1992 = vdwg.mxu0
        %v1993 = vld [vmem:[%s25] sm:$0xf]
        %v1994 = vld [vmem:[%s25 + $0x4] sm:$0xf]
        %v1995 = vld [vmem:[%s25 + $0x8] sm:$0xf]
        %v1996 = vld [vmem:[%s25 + $0xc] sm:$0xf]
        %v1997 = vpack.c.bf16 %v1990, %v1987
        %1999 = vrot.lane.b32.xlu0 %v1997, 96
        %v2000 = vpop.permute.xlu0 %1999
        %vm2001 = vcmask 64512
        %v2003 = vsel %vm2001, %v1997, 0
        %v2006 = vsel %vm2001, %v2000, 0
        %2008 = vmatprep.subr.bf16.mxu0 0
        %2009 = vmatpush1.bf16.xpose.msra.mxu0 0
        %2010 = vmatprep.subr.bf16.mxu0 0
        %2011 = vmatpush1.bf16.xpose.msra.mxu0 0
        %2012 = vmatprep.subr.bf16.mxu0 0
        %2013 = vmatpush1.bf16.xpose.msra.mxu0 0
        %2014 = vmatprep.subr.bf16.mxu0 0
        %2015 = vmatpush1.bf16.xpose.msra.mxu0 0
        %2016 = vmatprep.subr.bf16.mxu0 0
        %2017 = vmatpush1.bf16.xpose.msra.mxu0 0
        %2018 = vmatprep.subr.bf16.mxu0 0
        %2019 = vmatpush1.bf16.xpose.msra.mxu0 0
        %2020 = vmatprep.subr.bf16.mxu0 0
        %2021 = vmatpush1.bf16.xpose.msra.mxu0 0
        %2022 = vmatprep.subr.bf16.mxu0 0
        %2023 = vmatpush1.bf16.xpose.msra.mxu0 %v2006
        %2024 = vmatprep.subr.bf16.mxu0 0
        %2025 = vmatpush2.bf16.xpose.msra.mxu0 0
        %2026 = vmatprep.subr.bf16.mxu0 0
        %2027 = vmatpush2.bf16.xpose.msra.mxu0 0
        %2028 = vmatprep.subr.bf16.mxu0 0
        %2029 = vmatpush2.bf16.xpose.msra.mxu0 0
        %2030 = vmatprep.subr.bf16.mxu0 0
        %2031 = vmatpush2.bf16.xpose.msra.mxu0 0
        %2032 = vmatprep.subr.bf16.mxu0 0
        %2033 = vmatpush2.bf16.xpose.msra.mxu0 0
        %2034 = vmatprep.subr.bf16.mxu0 0
        %2035 = vmatpush2.bf16.xpose.msra.mxu0 0
        %2036 = vmatprep.subr.bf16.mxu0 0
        %2037 = vmatpush2.bf16.xpose.msra.mxu0 0
        %2038 = vmatprep.subr.bf16.mxu0 0
        %2039 = vmatpush2.bf16.xpose.msra.mxu0 0
        %2040 = vmatprep.mubr.bf16.mxu0 0
        %2041 = vmatmul.mubr.bf16.gmra.mxu0 %v2003
        %v2042 = vpop.f32.mrf.mxu0
        %v2043 = vadd.f32 0.0, %v2042
        %v2044 = vpop.f32.mrf.mxu0
        %v2045 = vpop.f32.mrf.mxu0
        %v2046 = vadd.f32 0.0, %v2045
        %v2047 = vpop.f32.mrf.mxu0
        %2048 = vdwg.mxu0
        %v2049 = vmul.f32 %v2043, 0.35355338
        %v2050 = vmul.f32 %v2046, 0.35355338
        %v2051 = vsel %vm1879, 1, 0
        %v2052 = vlaneseq
        %v2053 = vshrl.u32 %v2052, 7
        %v2054 = vsub.s32 0, %v2053
        %v2055 = vrot.slane %v2051, %v2054
        %vm2056 = vcmp.eq.s32.totalorder %v2055, 1
        %v2057 = vsel %vm2056, %v2049, -1e+30
        %v2058 = vsel %vm2056, %v2050, -1e+30
        %vm2059 = vcmask 130048
        %v2060 = vsel %vm2059, %v2057, -inf
        %2061 = vmax.xlane.f32.xlu0 %v2060
        %v2062 = vpop.xlane.xlu0 %2061
        %v2063 = vsel %vm2059, %v2058, -inf
        %2064 = vmax.xlane.f32.xlu0 %v2063
        %v2065 = vpop.xlane.xlu0 %2064
        %v2066 = vsub.f32 %v2057, %v2062
        %v2067 = vsub.f32 %v2058, %v2065
        %v2068 = vmul.f32 %v2066, 1.442695
        %v2069 = vpow.pop %v2068
        %v2070 = vmul.f32 %v2067, 1.442695
        %v2071 = vpow.pop %v2070
        %v2072 = vsel %vm2059, %v2069, 0.0
        %2073 = vadd.xlane.f32.xlu0 %v2072
        %v2074 = vpop.xlane.xlu0 %2073
        %v2075 = vsel %vm2059, %v2071, 0.0
        %2076 = vadd.xlane.f32.xlu0 %v2075
        %v2077 = vpop.xlane.xlu0 %2076
        %v2078 = vrcp.pop %v2074
        %v2079 = vrcp.pop %v2077
        %v2080 = vpack.c.bf16 %v2071, %v2069
        %2081 = vrot.lane.b32.xlu0 %v1997, 64
        %v2082 = vpop.permute.xlu0 %2081
        %v2085 = vsel %vm2059, %v2080, 0
        %2087 = vmatprep.subr.bf16.mxu0 0
        %2088 = vmatpush1.bf16.msra.mxu0 0
        %2089 = vmatprep.subr.bf16.mxu0 0
        %2090 = vmatpush1.bf16.msra.mxu0 0
        %2091 = vmatprep.subr.bf16.mxu0 0
        %2092 = vmatpush1.bf16.msra.mxu0 0
        %2093 = vmatprep.subr.bf16.mxu0 0
        %2094 = vmatpush1.bf16.msra.mxu0 0
        %2095 = vmatprep.subr.bf16.mxu0 0
        %2096 = vmatpush1.bf16.msra.mxu0 0
        %2097 = vmatprep.subr.bf16.mxu0 0
        %2098 = vmatpush1.bf16.msra.mxu0 0
        %2099 = vmatprep.subr.bf16.mxu0 0
        %2100 = vmatpush1.bf16.msra.mxu0 0
        %2101 = vmatprep.subr.bf16.mxu0 0
        %2102 = vmatpush1.bf16.msra.mxu0 %v2082
        %2103 = vmatprep.subr.bf16.mxu0 0
        %2104 = vmatpush2.bf16.msra.mxu0 0
        %2105 = vmatprep.subr.bf16.mxu0 0
        %2106 = vmatpush2.bf16.msra.mxu0 0
        %2107 = vmatprep.subr.bf16.mxu0 0
        %2108 = vmatpush2.bf16.msra.mxu0 0
        %2109 = vmatprep.subr.bf16.mxu0 0
        %2110 = vmatpush2.bf16.msra.mxu0 0
        %2111 = vmatprep.subr.bf16.mxu0 0
        %2112 = vmatpush2.bf16.msra.mxu0 0
        %2113 = vmatprep.subr.bf16.mxu0 0
        %2114 = vmatpush2.bf16.msra.mxu0 0
        %2115 = vmatprep.subr.bf16.mxu0 0
        %2116 = vmatpush2.bf16.msra.mxu0 0
        %2117 = vmatprep.subr.bf16.mxu0 0
        %2118 = vmatpush2.bf16.msra.mxu0 0
        %2119 = vmatprep.mubr.bf16.mxu0 0
        %2120 = vmatmul.mubr.bf16.gmra.mxu0 %v2085
        %v2121 = vpop.f32.mrf.mxu0
        %v2122 = vadd.f32 0.0, %v2121
        %v2123 = vpop.f32.mrf.mxu0
        %v2124 = vpop.f32.mrf.mxu0
        %v2125 = vadd.f32 0.0, %v2124
        %v2126 = vpop.f32.mrf.mxu0
        %2127 = vdwg.mxu0
        %v2128 = vmul.f32 %v2122, %v2078
        %v2129 = vmul.f32 %v2125, %v2079
        %v2130 = vpack.c.bf16 %v2129, %v2128
        %2131 = vrot.lane.b32.xlu0 %v1997, 120
        %v2132 = vpop.permute.xlu0 %2131
        %2133 = vrot.lane.b32.xlu0 %v1997, 88
        %v2134 = vpop.permute.xlu0 %2133
        %v2136 = vsel %vm2001, %v2132, 0
        %v2139 = vsel %vm2001, %v2134, 0
        %2141 = vmatprep.subr.bf16.mxu0 0
        %2142 = vmatpush1.bf16.xpose.msra.mxu0 0
        %2143 = vmatprep.subr.bf16.mxu0 0
        %2144 = vmatpush1.bf16.xpose.msra.mxu0 0
        %2145 = vmatprep.subr.bf16.mxu0 0
        %2146 = vmatpush1.bf16.xpose.msra.mxu0 0
        %2147 = vmatprep.subr.bf16.mxu0 0
        %2148 = vmatpush1.bf16.xpose.msra.mxu0 0
        %2149 = vmatprep.subr.bf16.mxu0 0
        %2150 = vmatpush1.bf16.xpose.msra.mxu0 0
        %2151 = vmatprep.subr.bf16.mxu0 0
        %2152 = vmatpush1.bf16.xpose.msra.mxu0 0
        %2153 = vmatprep.subr.bf16.mxu0 0
        %2154 = vmatpush1.bf16.xpose.msra.mxu0 0
        %2155 = vmatprep.subr.bf16.mxu0 0
        %2156 = vmatpush1.bf16.xpose.msra.mxu0 %v2139
        %2157 = vmatprep.subr.bf16.mxu0 0
        %2158 = vmatpush2.bf16.xpose.msra.mxu0 0
        %2159 = vmatprep.subr.bf16.mxu0 0
        %2160 = vmatpush2.bf16.xpose.msra.mxu0 0
        %2161 = vmatprep.subr.bf16.mxu0 0
        %2162 = vmatpush2.bf16.xpose.msra.mxu0 0
        %2163 = vmatprep.subr.bf16.mxu0 0
        %2164 = vmatpush2.bf16.xpose.msra.mxu0 0
        %2165 = vmatprep.subr.bf16.mxu0 0
        %2166 = vmatpush2.bf16.xpose.msra.mxu0 0
        %2167 = vmatprep.subr.bf16.mxu0 0
        %2168 = vmatpush2.bf16.xpose.msra.mxu0 0
        %2169 = vmatprep.subr.bf16.mxu0 0
        %2170 = vmatpush2.bf16.xpose.msra.mxu0 0
        %2171 = vmatprep.subr.bf16.mxu0 0
        %2172 = vmatpush2.bf16.xpose.msra.mxu0 0
        %2173 = vmatprep.mubr.bf16.mxu0 0
        %2174 = vmatmul.mubr.bf16.gmra.mxu0 %v2136
        %v2175 = vpop.f32.mrf.mxu0
        %v2176 = vadd.f32 0.0, %v2175
        %v2177 = vpop.f32.mrf.mxu0
        %v2178 = vpop.f32.mrf.mxu0
        %v2179 = vadd.f32 0.0, %v2178
        %v2180 = vpop.f32.mrf.mxu0
        %2181 = vdwg.mxu0
        %v2182 = vmul.f32 %v2176, 0.35355338
        %v2183 = vmul.f32 %v2179, 0.35355338
        %v2184 = vsel %vm2056, %v2182, -1e+30
        %v2185 = vsel %vm2056, %v2183, -1e+30
        %v2186 = vsel %vm2059, %v2184, -inf
        %2187 = vmax.xlane.f32.xlu0 %v2186
        %v2188 = vpop.xlane.xlu0 %2187
        %v2189 = vsel %vm2059, %v2185, -inf
        %2190 = vmax.xlane.f32.xlu0 %v2189
        %v2191 = vpop.xlane.xlu0 %2190
        %v2192 = vsub.f32 %v2184, %v2188
        %v2193 = vsub.f32 %v2185, %v2191
        %v2194 = vmul.f32 %v2192, 1.442695
        %v2195 = vpow.pop %v2194
        %v2196 = vmul.f32 %v2193, 1.442695
        %v2197 = vpow.pop %v2196
        %v2198 = vsel %vm2059, %v2195, 0.0
        %2199 = vadd.xlane.f32.xlu0 %v2198
        %v2200 = vpop.xlane.xlu0 %2199
        %v2201 = vsel %vm2059, %v2197, 0.0
        %2202 = vadd.xlane.f32.xlu0 %v2201
        %v2203 = vpop.xlane.xlu0 %2202
        %v2204 = vrcp.pop %v2200
        %v2205 = vrcp.pop %v2203
        %v2206 = vpack.c.bf16 %v2197, %v2195
        %2207 = vrot.lane.b32.xlu0 %v1997, 56
        %v2208 = vpop.permute.xlu0 %2207
        %v2211 = vsel %vm2059, %v2206, 0
        %2213 = vmatprep.subr.bf16.mxu0 0
        %2214 = vmatpush1.bf16.msra.mxu0 0
        %2215 = vmatprep.subr.bf16.mxu0 0
        %2216 = vmatpush1.bf16.msra.mxu0 0
        %2217 = vmatprep.subr.bf16.mxu0 0
        %2218 = vmatpush1.bf16.msra.mxu0 0
        %2219 = vmatprep.subr.bf16.mxu0 0
        %2220 = vmatpush1.bf16.msra.mxu0 0
        %2221 = vmatprep.subr.bf16.mxu0 0
        %2222 = vmatpush1.bf16.msra.mxu0 0
        %2223 = vmatprep.subr.bf16.mxu0 0
        %2224 = vmatpush1.bf16.msra.mxu0 0
        %2225 = vmatprep.subr.bf16.mxu0 0
        %2226 = vmatpush1.bf16.msra.mxu0 0
        %2227 = vmatprep.subr.bf16.mxu0 0
        %2228 = vmatpush1.bf16.msra.mxu0 %v2208
        %2229 = vmatprep.subr.bf16.mxu0 0
        %2230 = vmatpush2.bf16.msra.mxu0 0
        %2231 = vmatprep.subr.bf16.mxu0 0
        %2232 = vmatpush2.bf16.msra.mxu0 0
        %2233 = vmatprep.subr.bf16.mxu0 0
        %2234 = vmatpush2.bf16.msra.mxu0 0
        %2235 = vmatprep.subr.bf16.mxu0 0
        %2236 = vmatpush2.bf16.msra.mxu0 0
        %2237 = vmatprep.subr.bf16.mxu0 0
        %2238 = vmatpush2.bf16.msra.mxu0 0
        %2239 = vmatprep.subr.bf16.mxu0 0
        %2240 = vmatpush2.bf16.msra.mxu0 0
        %2241 = vmatprep.subr.bf16.mxu0 0
        %2242 = vmatpush2.bf16.msra.mxu0 0
        %2243 = vmatprep.subr.bf16.mxu0 0
        %2244 = vmatpush2.bf16.msra.mxu0 0
        %2245 = vmatprep.mubr.bf16.mxu0 0
        %2246 = vmatmul.mubr.bf16.gmra.mxu0 %v2211
        %v2247 = vpop.f32.mrf.mxu0
        %v2248 = vadd.f32 0.0, %v2247
        %v2249 = vpop.f32.mrf.mxu0
        %v2250 = vpop.f32.mrf.mxu0
        %v2251 = vadd.f32 0.0, %v2250
        %v2252 = vpop.f32.mrf.mxu0
        %2253 = vdwg.mxu0
        %v2254 = vmul.f32 %v2248, %v2204
        %v2255 = vmul.f32 %v2251, %v2205
        %v2256 = vpack.c.bf16 %v2255, %v2254
        %v2258 = vsel %vm2001, %v2256, 0
        %vm2260 = vcmask 1043456
        %v2262 = vsel %vm2260, %v1994, 0
        %2264 = vmatprep.subr.bf16.mxu0 0
        %2265 = vmatpush1.bf16.msra.mxu0 0
        %2266 = vmatprep.subr.bf16.mxu0 0
        %2267 = vmatpush1.bf16.msra.mxu0 0
        %2268 = vmatprep.subr.bf16.mxu0 0
        %2269 = vmatpush1.bf16.msra.mxu0 0
        %2270 = vmatprep.subr.bf16.mxu0 0
        %2271 = vmatpush1.bf16.msra.mxu0 0
        %2272 = vmatprep.subr.bf16.mxu0 0
        %2273 = vmatpush1.bf16.msra.mxu0 0
        %2274 = vmatprep.subr.bf16.mxu0 0
        %2275 = vmatpush1.bf16.msra.mxu0 0
        %2276 = vmatprep.subr.bf16.mxu0 0
        %2277 = vmatpush1.bf16.msra.mxu0 0
        %2278 = vmatprep.subr.bf16.mxu0 0
        %2279 = vmatpush1.bf16.msra.mxu0 %v2262
        %2280 = vmatprep.subr.bf16.mxu0 0
        %2281 = vmatpush2.bf16.msra.mxu0 0
        %2282 = vmatprep.subr.bf16.mxu0 0
        %2283 = vmatpush2.bf16.msra.mxu0 0
        %2284 = vmatprep.subr.bf16.mxu0 0
        %2285 = vmatpush2.bf16.msra.mxu0 0
        %2286 = vmatprep.subr.bf16.mxu0 0
        %2287 = vmatpush2.bf16.msra.mxu0 0
        %2288 = vmatprep.subr.bf16.mxu0 0
        %2289 = vmatpush2.bf16.msra.mxu0 0
        %2290 = vmatprep.subr.bf16.mxu0 0
        %2291 = vmatpush2.bf16.msra.mxu0 0
        %2292 = vmatprep.subr.bf16.mxu0 0
        %2293 = vmatpush2.bf16.msra.mxu0 0
        %2294 = vmatprep.subr.bf16.mxu0 0
        %2295 = vmatpush2.bf16.msra.mxu0 0
        %2296 = vmatprep.mubr.bf16.mxu0 0
        %2297 = vmatmul.mubr.bf16.gmra.mxu0 %v2258
        %v2298 = vpop.f32.mrf.mxu0
        %v2299 = vadd.f32 0.0, %v2298
        %v2300 = vpop.f32.mrf.mxu0
        %v2301 = vpop.f32.mrf.mxu0
        %v2302 = vadd.f32 0.0, %v2301
        %v2303 = vpop.f32.mrf.mxu0
        %2304 = vdwg.mxu0
        %v2306 = vsel %vm2001, %v2130, 0
        %v2309 = vsel %vm2260, %v1993, 0
        %2311 = vmatprep.subr.bf16.mxu0 0
        %2312 = vmatpush1.bf16.msra.mxu0 0
        %2313 = vmatprep.subr.bf16.mxu0 0
        %2314 = vmatpush1.bf16.msra.mxu0 0
        %2315 = vmatprep.subr.bf16.mxu0 0
        %2316 = vmatpush1.bf16.msra.mxu0 0
        %2317 = vmatprep.subr.bf16.mxu0 0
        %2318 = vmatpush1.bf16.msra.mxu0 0
        %2319 = vmatprep.subr.bf16.mxu0 0
        %2320 = vmatpush1.bf16.msra.mxu0 0
        %2321 = vmatprep.subr.bf16.mxu0 0
        %2322 = vmatpush1.bf16.msra.mxu0 0
        %2323 = vmatprep.subr.bf16.mxu0 0
        %2324 = vmatpush1.bf16.msra.mxu0 0
        %2325 = vmatprep.subr.bf16.mxu0 0
        %2326 = vmatpush1.bf16.msra.mxu0 %v2309
        %2327 = vmatprep.subr.bf16.mxu0 0
        %2328 = vmatpush2.bf16.msra.mxu0 0
        %2329 = vmatprep.subr.bf16.mxu0 0
        %2330 = vmatpush2.bf16.msra.mxu0 0
        %2331 = vmatprep.subr.bf16.mxu0 0
        %2332 = vmatpush2.bf16.msra.mxu0 0
        %2333 = vmatprep.subr.bf16.mxu0 0
        %2334 = vmatpush2.bf16.msra.mxu0 0
        %2335 = vmatprep.subr.bf16.mxu0 0
        %2336 = vmatpush2.bf16.msra.mxu0 0
        %2337 = vmatprep.subr.bf16.mxu0 0
        %2338 = vmatpush2.bf16.msra.mxu0 0
        %2339 = vmatprep.subr.bf16.mxu0 0
        %2340 = vmatpush2.bf16.msra.mxu0 0
        %2341 = vmatprep.subr.bf16.mxu0 0
        %2342 = vmatpush2.bf16.msra.mxu0 0
        %2343 = vmatprep.mubr.bf16.mxu0 0
        %2344 = vmatmul.mubr.bf16.gmra.mxu0 %v2306
        %v2345 = vpop.f32.mrf.mxu0
        %v2346 = vadd.f32 %v2299, %v2345
        %v2347 = vpop.f32.mrf.mxu0
        %v2348 = vpop.f32.mrf.mxu0
        %v2349 = vadd.f32 %v2302, %v2348
        %v2350 = vpop.f32.mrf.mxu0
        %2351 = vdwg.mxu0
        %2352 = vrot.lane.b32.xlu0 %v1997, 112
        %v2353 = vpop.permute.xlu0 %2352
        %2354 = vrot.lane.b32.xlu0 %v1997, 80
        %v2355 = vpop.permute.xlu0 %2354
        %v2357 = vsel %vm2001, %v2353, 0
        %v2360 = vsel %vm2001, %v2355, 0
        %2362 = vmatprep.subr.bf16.mxu0 0
        %2363 = vmatpush1.bf16.xpose.msra.mxu0 0
        %2364 = vmatprep.subr.bf16.mxu0 0
        %2365 = vmatpush1.bf16.xpose.msra.mxu0 0
        %2366 = vmatprep.subr.bf16.mxu0 0
        %2367 = vmatpush1.bf16.xpose.msra.mxu0 0
        %2368 = vmatprep.subr.bf16.mxu0 0
        %2369 = vmatpush1.bf16.xpose.msra.mxu0 0
        %2370 = vmatprep.subr.bf16.mxu0 0
        %2371 = vmatpush1.bf16.xpose.msra.mxu0 0
        %2372 = vmatprep.subr.bf16.mxu0 0
        %2373 = vmatpush1.bf16.xpose.msra.mxu0 0
        %2374 = vmatprep.subr.bf16.mxu0 0
        %2375 = vmatpush1.bf16.xpose.msra.mxu0 0
        %2376 = vmatprep.subr.bf16.mxu0 0
        %2377 = vmatpush1.bf16.xpose.msra.mxu0 %v2360
        %2378 = vmatprep.subr.bf16.mxu0 0
        %2379 = vmatpush2.bf16.xpose.msra.mxu0 0
        %2380 = vmatprep.subr.bf16.mxu0 0
        %2381 = vmatpush2.bf16.xpose.msra.mxu0 0
        %2382 = vmatprep.subr.bf16.mxu0 0
        %2383 = vmatpush2.bf16.xpose.msra.mxu0 0
        %2384 = vmatprep.subr.bf16.mxu0 0
        %2385 = vmatpush2.bf16.xpose.msra.mxu0 0
        %2386 = vmatprep.subr.bf16.mxu0 0
        %2387 = vmatpush2.bf16.xpose.msra.mxu0 0
        %2388 = vmatprep.subr.bf16.mxu0 0
        %2389 = vmatpush2.bf16.xpose.msra.mxu0 0
        %2390 = vmatprep.subr.bf16.mxu0 0
        %2391 = vmatpush2.bf16.xpose.msra.mxu0 0
        %2392 = vmatprep.subr.bf16.mxu0 0
        %2393 = vmatpush2.bf16.xpose.msra.mxu0 0
        %2394 = vmatprep.mubr.bf16.mxu0 0
        %2395 = vmatmul.mubr.bf16.gmra.mxu0 %v2357
        %v2396 = vpop.f32.mrf.mxu0
        %v2397 = vadd.f32 0.0, %v2396
        %v2398 = vpop.f32.mrf.mxu0
        %v2399 = vpop.f32.mrf.mxu0
        %v2400 = vadd.f32 0.0, %v2399
        %v2401 = vpop.f32.mrf.mxu0
        %2402 = vdwg.mxu0
        %v2403 = vmul.f32 %v2397, 0.35355338
        %v2404 = vmul.f32 %v2400, 0.35355338
        %v2405 = vsel %vm2056, %v2403, -1e+30
        %v2406 = vsel %vm2056, %v2404, -1e+30
        %v2407 = vsel %vm2059, %v2405, -inf
        %2408 = vmax.xlane.f32.xlu0 %v2407
        %v2409 = vpop.xlane.xlu0 %2408
        %v2410 = vsel %vm2059, %v2406, -inf
        %2411 = vmax.xlane.f32.xlu0 %v2410
        %v2412 = vpop.xlane.xlu0 %2411
        %v2413 = vsub.f32 %v2405, %v2409
        %v2414 = vsub.f32 %v2406, %v2412
        %v2415 = vmul.f32 %v2413, 1.442695
        %v2416 = vpow.pop %v2415
        %v2417 = vmul.f32 %v2414, 1.442695
        %v2418 = vpow.pop %v2417
        %v2419 = vsel %vm2059, %v2416, 0.0
        %2420 = vadd.xlane.f32.xlu0 %v2419
        %v2421 = vpop.xlane.xlu0 %2420
        %v2422 = vsel %vm2059, %v2418, 0.0
        %2423 = vadd.xlane.f32.xlu0 %v2422
        %v2424 = vpop.xlane.xlu0 %2423
        %v2425 = vrcp.pop %v2421
        %v2426 = vrcp.pop %v2424
        %v2427 = vpack.c.bf16 %v2418, %v2416
        %2428 = vrot.lane.b32.xlu0 %v1997, 48
        %v2429 = vpop.permute.xlu0 %2428
        %v2432 = vsel %vm2059, %v2427, 0
        %2434 = vmatprep.subr.bf16.mxu0 0
        %2435 = vmatpush1.bf16.msra.mxu0 0
        %2436 = vmatprep.subr.bf16.mxu0 0
        %2437 = vmatpush1.bf16.msra.mxu0 0
        %2438 = vmatprep.subr.bf16.mxu0 0
        %2439 = vmatpush1.bf16.msra.mxu0 0
        %2440 = vmatprep.subr.bf16.mxu0 0
        %2441 = vmatpush1.bf16.msra.mxu0 0
        %2442 = vmatprep.subr.bf16.mxu0 0
        %2443 = vmatpush1.bf16.msra.mxu0 0
        %2444 = vmatprep.subr.bf16.mxu0 0
        %2445 = vmatpush1.bf16.msra.mxu0 0
        %2446 = vmatprep.subr.bf16.mxu0 0
        %2447 = vmatpush1.bf16.msra.mxu0 0
        %2448 = vmatprep.subr.bf16.mxu0 0
        %2449 = vmatpush1.bf16.msra.mxu0 %v2429
        %2450 = vmatprep.subr.bf16.mxu0 0
        %2451 = vmatpush2.bf16.msra.mxu0 0
        %2452 = vmatprep.subr.bf16.mxu0 0
        %2453 = vmatpush2.bf16.msra.mxu0 0
        %2454 = vmatprep.subr.bf16.mxu0 0
        %2455 = vmatpush2.bf16.msra.mxu0 0
        %2456 = vmatprep.subr.bf16.mxu0 0
        %2457 = vmatpush2.bf16.msra.mxu0 0
        %2458 = vmatprep.subr.bf16.mxu0 0
        %2459 = vmatpush2.bf16.msra.mxu0 0
        %2460 = vmatprep.subr.bf16.mxu0 0
        %2461 = vmatpush2.bf16.msra.mxu0 0
        %2462 = vmatprep.subr.bf16.mxu0 0
        %2463 = vmatpush2.bf16.msra.mxu0 0
        %2464 = vmatprep.subr.bf16.mxu0 0
        %2465 = vmatpush2.bf16.msra.mxu0 0
        %2466 = vmatprep.mubr.bf16.mxu0 0
        %2467 = vmatmul.mubr.bf16.gmra.mxu0 %v2432
        %v2468 = vpop.f32.mrf.mxu0
        %v2469 = vadd.f32 0.0, %v2468
        %v2470 = vpop.f32.mrf.mxu0
        %v2471 = vpop.f32.mrf.mxu0
        %v2472 = vadd.f32 0.0, %v2471
        %v2473 = vpop.f32.mrf.mxu0
        %2474 = vdwg.mxu0
        %v2475 = vmul.f32 %v2469, %v2425
        %v2476 = vmul.f32 %v2472, %v2426
        %v2477 = vpack.c.bf16 %v2476, %v2475
        %v2479 = vsel %vm2001, %v2477, 0
        %v2482 = vsel %vm2260, %v1995, 0
        %2484 = vmatprep.subr.bf16.mxu0 0
        %2485 = vmatpush1.bf16.msra.mxu0 0
        %2486 = vmatprep.subr.bf16.mxu0 0
        %2487 = vmatpush1.bf16.msra.mxu0 0
        %2488 = vmatprep.subr.bf16.mxu0 0
        %2489 = vmatpush1.bf16.msra.mxu0 0
        %2490 = vmatprep.subr.bf16.mxu0 0
        %2491 = vmatpush1.bf16.msra.mxu0 0
        %2492 = vmatprep.subr.bf16.mxu0 0
        %2493 = vmatpush1.bf16.msra.mxu0 0
        %2494 = vmatprep.subr.bf16.mxu0 0
        %2495 = vmatpush1.bf16.msra.mxu0 0
        %2496 = vmatprep.subr.bf16.mxu0 0
        %2497 = vmatpush1.bf16.msra.mxu0 0
        %2498 = vmatprep.subr.bf16.mxu0 0
        %2499 = vmatpush1.bf16.msra.mxu0 %v2482
        %2500 = vmatprep.subr.bf16.mxu0 0
        %2501 = vmatpush2.bf16.msra.mxu0 0
        %2502 = vmatprep.subr.bf16.mxu0 0
        %2503 = vmatpush2.bf16.msra.mxu0 0
        %2504 = vmatprep.subr.bf16.mxu0 0
        %2505 = vmatpush2.bf16.msra.mxu0 0
        %2506 = vmatprep.subr.bf16.mxu0 0
        %2507 = vmatpush2.bf16.msra.mxu0 0
        %2508 = vmatprep.subr.bf16.mxu0 0
        %2509 = vmatpush2.bf16.msra.mxu0 0
        %2510 = vmatprep.subr.bf16.mxu0 0
        %2511 = vmatpush2.bf16.msra.mxu0 0
        %2512 = vmatprep.subr.bf16.mxu0 0
        %2513 = vmatpush2.bf16.msra.mxu0 0
        %2514 = vmatprep.subr.bf16.mxu0 0
        %2515 = vmatpush2.bf16.msra.mxu0 0
        %2516 = vmatprep.mubr.bf16.mxu0 0
        %2517 = vmatmul.mubr.bf16.gmra.mxu0 %v2479
        %v2518 = vpop.f32.mrf.mxu0
        %v2519 = vadd.f32 0.0, %v2518
        %v2520 = vpop.f32.mrf.mxu0
        %v2521 = vpop.f32.mrf.mxu0
        %v2522 = vadd.f32 0.0, %v2521
        %v2523 = vpop.f32.mrf.mxu0
        %2524 = vdwg.mxu0
        %v2525 = vadd.f32 %v2346, %v2519
        %v2526 = vadd.f32 %v2349, %v2522
        %2527 = vrot.lane.b32.xlu0 %v1997, 104
        %v2528 = vpop.permute.xlu0 %2527
        %2529 = vrot.lane.b32.xlu0 %v1997, 72
        %v2530 = vpop.permute.xlu0 %2529
        %v2532 = vsel %vm2001, %v2528, 0
        %v2535 = vsel %vm2001, %v2530, 0
        %2537 = vmatprep.subr.bf16.mxu0 0
        %2538 = vmatpush1.bf16.xpose.msra.mxu0 0
        %2539 = vmatprep.subr.bf16.mxu0 0
        %2540 = vmatpush1.bf16.xpose.msra.mxu0 0
        %2541 = vmatprep.subr.bf16.mxu0 0
        %2542 = vmatpush1.bf16.xpose.msra.mxu0 0
        %2543 = vmatprep.subr.bf16.mxu0 0
        %2544 = vmatpush1.bf16.xpose.msra.mxu0 0
        %2545 = vmatprep.subr.bf16.mxu0 0
        %2546 = vmatpush1.bf16.xpose.msra.mxu0 0
        %2547 = vmatprep.subr.bf16.mxu0 0
        %2548 = vmatpush1.bf16.xpose.msra.mxu0 0
        %2549 = vmatprep.subr.bf16.mxu0 0
        %2550 = vmatpush1.bf16.xpose.msra.mxu0 0
        %2551 = vmatprep.subr.bf16.mxu0 0
        %2552 = vmatpush1.bf16.xpose.msra.mxu0 %v2535
        %2553 = vmatprep.subr.bf16.mxu0 0
        %2554 = vmatpush2.bf16.xpose.msra.mxu0 0
        %2555 = vmatprep.subr.bf16.mxu0 0
        %2556 = vmatpush2.bf16.xpose.msra.mxu0 0
        %2557 = vmatprep.subr.bf16.mxu0 0
        %2558 = vmatpush2.bf16.xpose.msra.mxu0 0
        %2559 = vmatprep.subr.bf16.mxu0 0
        %2560 = vmatpush2.bf16.xpose.msra.mxu0 0
        %2561 = vmatprep.subr.bf16.mxu0 0
        %2562 = vmatpush2.bf16.xpose.msra.mxu0 0
        %2563 = vmatprep.subr.bf16.mxu0 0
        %2564 = vmatpush2.bf16.xpose.msra.mxu0 0
        %2565 = vmatprep.subr.bf16.mxu0 0
        %2566 = vmatpush2.bf16.xpose.msra.mxu0 0
        %2567 = vmatprep.subr.bf16.mxu0 0
        %2568 = vmatpush2.bf16.xpose.msra.mxu0 0
        %2569 = vmatprep.mubr.bf16.mxu0 0
        %2570 = vmatmul.mubr.bf16.gmra.mxu0 %v2532
        %v2571 = vpop.f32.mrf.mxu0
        %v2572 = vadd.f32 0.0, %v2571
        %v2573 = vpop.f32.mrf.mxu0
        %v2574 = vpop.f32.mrf.mxu0
        %v2575 = vadd.f32 0.0, %v2574
        %v2576 = vpop.f32.mrf.mxu0
        %2577 = vdwg.mxu0
        %v2578 = vmul.f32 %v2572, 0.35355338
        %v2579 = vmul.f32 %v2575, 0.35355338
        %v2580 = vsel %vm2056, %v2578, -1e+30
        %v2581 = vsel %vm2056, %v2579, -1e+30
        %v2582 = vsel %vm2059, %v2580, -inf
        %2583 = vmax.xlane.f32.xlu0 %v2582
        %v2584 = vpop.xlane.xlu0 %2583
        %v2585 = vsel %vm2059, %v2581, -inf
        %2586 = vmax.xlane.f32.xlu0 %v2585
        %v2587 = vpop.xlane.xlu0 %2586
        %v2588 = vsub.f32 %v2580, %v2584
        %v2589 = vsub.f32 %v2581, %v2587
        %v2590 = vmul.f32 %v2588, 1.442695
        %v2591 = vpow.pop %v2590
        %v2592 = vmul.f32 %v2589, 1.442695
        %v2593 = vpow.pop %v2592
        %v2594 = vsel %vm2059, %v2591, 0.0
        %2595 = vadd.xlane.f32.xlu0 %v2594
        %v2596 = vpop.xlane.xlu0 %2595
        %v2597 = vsel %vm2059, %v2593, 0.0
        %2598 = vadd.xlane.f32.xlu0 %v2597
        %v2599 = vpop.xlane.xlu0 %2598
        %v2600 = vrcp.pop %v2596
        %v2601 = vrcp.pop %v2599
        %v2602 = vpack.c.bf16 %v2593, %v2591
        %2603 = vrot.lane.b32.xlu0 %v1997, 40
        %v2604 = vpop.permute.xlu0 %2603
        %v2607 = vsel %vm2059, %v2602, 0
        %2609 = vmatprep.subr.bf16.mxu0 0
        %2610 = vmatpush1.bf16.msra.mxu0 0
        %2611 = vmatprep.subr.bf16.mxu0 0
        %2612 = vmatpush1.bf16.msra.mxu0 0
        %2613 = vmatprep.subr.bf16.mxu0 0
        %2614 = vmatpush1.bf16.msra.mxu0 0
        %2615 = vmatprep.subr.bf16.mxu0 0
        %2616 = vmatpush1.bf16.msra.mxu0 0
        %2617 = vmatprep.subr.bf16.mxu0 0
        %2618 = vmatpush1.bf16.msra.mxu0 0
        %2619 = vmatprep.subr.bf16.mxu0 0
        %2620 = vmatpush1.bf16.msra.mxu0 0
        %2621 = vmatprep.subr.bf16.mxu0 0
        %2622 = vmatpush1.bf16.msra.mxu0 0
        %2623 = vmatprep.subr.bf16.mxu0 0
        %2624 = vmatpush1.bf16.msra.mxu0 %v2604
        %2625 = vmatprep.subr.bf16.mxu0 0
        %2626 = vmatpush2.bf16.msra.mxu0 0
        %2627 = vmatprep.subr.bf16.mxu0 0
        %2628 = vmatpush2.bf16.msra.mxu0 0
        %2629 = vmatprep.subr.bf16.mxu0 0
        %2630 = vmatpush2.bf16.msra.mxu0 0
        %2631 = vmatprep.subr.bf16.mxu0 0
        %2632 = vmatpush2.bf16.msra.mxu0 0
        %2633 = vmatprep.subr.bf16.mxu0 0
        %2634 = vmatpush2.bf16.msra.mxu0 0
        %2635 = vmatprep.subr.bf16.mxu0 0
        %2636 = vmatpush2.bf16.msra.mxu0 0
        %2637 = vmatprep.subr.bf16.mxu0 0
        %2638 = vmatpush2.bf16.msra.mxu0 0
        %2639 = vmatprep.subr.bf16.mxu0 0
        %2640 = vmatpush2.bf16.msra.mxu0 0
        %2641 = vmatprep.mubr.bf16.mxu0 0
        %2642 = vmatmul.mubr.bf16.gmra.mxu0 %v2607
        %v2643 = vpop.f32.mrf.mxu0
        %v2644 = vadd.f32 0.0, %v2643
        %v2645 = vpop.f32.mrf.mxu0
        %v2646 = vpop.f32.mrf.mxu0
        %v2647 = vadd.f32 0.0, %v2646
        %v2648 = vpop.f32.mrf.mxu0
        %2649 = vdwg.mxu0
        %v2650 = vmul.f32 %v2644, %v2600
        %v2651 = vmul.f32 %v2647, %v2601
        %v2652 = vpack.c.bf16 %v2651, %v2650
        %v2654 = vsel %vm2001, %v2652, 0
        %v2657 = vsel %vm2260, %v1996, 0
        %2659 = vmatprep.subr.bf16.mxu0 0
        %2660 = vmatpush1.bf16.msra.mxu0 0
        %2661 = vmatprep.subr.bf16.mxu0 0
        %2662 = vmatpush1.bf16.msra.mxu0 0
        %2663 = vmatprep.subr.bf16.mxu0 0
        %2664 = vmatpush1.bf16.msra.mxu0 0
        %2665 = vmatprep.subr.bf16.mxu0 0
        %2666 = vmatpush1.bf16.msra.mxu0 0
        %2667 = vmatprep.subr.bf16.mxu0 0
        %2668 = vmatpush1.bf16.msra.mxu0 0
        %2669 = vmatprep.subr.bf16.mxu0 0
        %2670 = vmatpush1.bf16.msra.mxu0 0
        %2671 = vmatprep.subr.bf16.mxu0 0
        %2672 = vmatpush1.bf16.msra.mxu0 0
        %2673 = vmatprep.subr.bf16.mxu0 0
        %2674 = vmatpush1.bf16.msra.mxu0 %v2657
        %2675 = vmatprep.subr.bf16.mxu0 0
        %2676 = vmatpush2.bf16.msra.mxu0 0
        %2677 = vmatprep.subr.bf16.mxu0 0
        %2678 = vmatpush2.bf16.msra.mxu0 0
        %2679 = vmatprep.subr.bf16.mxu0 0
        %2680 = vmatpush2.bf16.msra.mxu0 0
        %2681 = vmatprep.subr.bf16.mxu0 0
        %2682 = vmatpush2.bf16.msra.mxu0 0
        %2683 = vmatprep.subr.bf16.mxu0 0
        %2684 = vmatpush2.bf16.msra.mxu0 0
        %2685 = vmatprep.subr.bf16.mxu0 0
        %2686 = vmatpush2.bf16.msra.mxu0 0
        %2687 = vmatprep.subr.bf16.mxu0 0
        %2688 = vmatpush2.bf16.msra.mxu0 0
        %2689 = vmatprep.subr.bf16.mxu0 0
        %2690 = vmatpush2.bf16.msra.mxu0 0
        %2691 = vmatprep.mubr.bf16.mxu0 0
        %2692 = vmatmul.mubr.bf16.gmra.mxu0 %v2654
        %v2693 = vpop.f32.mrf.mxu0
        %v2694 = vadd.f32 0.0, %v2693
        %v2695 = vpop.f32.mrf.mxu0
        %v2696 = vpop.f32.mrf.mxu0
        %v2697 = vadd.f32 0.0, %v2696
        %v2698 = vpop.f32.mrf.mxu0
        %2699 = vdwg.mxu0
        %v2700 = vadd.f32 %v2525, %v2694
        %v2701 = vadd.f32 %v2526, %v2697
        %v2702 = vld [vmem:[%s27] sm:$0x1]
        %v2704 = vlaneseq
        %v2705 = vshrl.u32 %v2704, 7
        %v2706 = vsub.s32 0, %v2705
        %v2707 = vrot.slane %v2702, %v2706
        %v2709 = vadd.f32 %v2700, %v2707
        %v2710 = vadd.f32 %v2701, %v2707
        %v2711 = vmul.f32 %v2709, %v1388
        %v2712 = vmul.f32 %v2710, %v1393
        %v2713 = vadd.f32 %v1877, %v2711
        %v2714 = vadd.f32 %v1878, %v2712
        %v2715 = vld [vmem:[%s29] sm:$0x1]
        %v2716 = vld [vmem:[%s31] sm:$0x1]
        %v2717 = vsel %vm1690, %v2713, 0.0
        %2718 = vadd.xlane.f32.xlu0 %v2717
        %v2719 = vpop.xlane.xlu0 %2718
        %v2720 = vsel %vm1690, %v2714, 0.0
        %2721 = vadd.xlane.f32.xlu0 %v2720
        %v2722 = vpop.xlane.xlu0 %2721
        %v2723 = vmul.f32 %v2719, %v1888
        %v2724 = vmul.f32 %v2722, %v1888
        %v2725 = vsub.f32 %v2713, %v2723
        %v2726 = vsub.f32 %v2714, %v2724
        %v2727 = vmul.f32 %v2725, %v2725
        %v2728 = vmul.f32 %v2726, %v2726
        %v2729 = vsel %vm1690, %v2727, 0.0
        %2730 = vadd.xlane.f32.xlu0 %v2729
        %v2731 = vpop.xlane.xlu0 %2730
        %v2732 = vsel %vm1690, %v2728, 0.0
        %2733 = vadd.xlane.f32.xlu0 %v2732
        %v2734 = vpop.xlane.xlu0 %2733
        %v2735 = vmul.f32 %v2731, %v1888
        %v2736 = vmul.f32 %v2734, %v1888
        %v2737 = vadd.f32 %v2735, 1e-05
        %v2738 = vadd.f32 %v2736, 1e-05
        %v2739 = vrsqrt.pop %v2737
        %v2740 = vrsqrt.pop %v2738
        %v2741 = vmul.f32 %v2725, %v2739
        %v2742 = vmul.f32 %v2726, %v2740
        %v2744 = vlaneseq
        %v2745 = vshrl.u32 %v2744, 7
        %v2746 = vsub.s32 0, %v2745
        %v2747 = vrot.slane %v2715, %v2746
        %v2749 = vmul.f32 %v2741, %v2747
        %v2750 = vmul.f32 %v2742, %v2747
        %v2752 = vlaneseq
        %v2753 = vshrl.u32 %v2752, 7
        %v2754 = vsub.s32 0, %v2753
        %v2755 = vrot.slane %v2716, %v2754
        %v2757 = vadd.f32 %v2749, %v2755
        %v2758 = vadd.f32 %v2750, %v2755
        %v2759 = vpack.c.bf16 %v2758, %v2757
        %v2760 = vld [vmem:[%s33] sm:$0xf]
        %v2761 = vld [vmem:[%s33 + $0x4] sm:$0xf]
        %v2762 = vld [vmem:[%s33 + $0x8] sm:$0xf]
        %v2763 = vld [vmem:[%s33 + $0xc] sm:$0xf]
        %v2764 = vld [vmem:[%s35] sm:$0x1]
        %v2766 = vlaneseq
        %v2767 = vshrl.u32 %v2766, 7
        %v2768 = vsub.s32 0, %v2767
        %v2769 = vrot.slane %v2764, %v2768
        %v2775 = vunpack.c.l.b16 %v2760
        %v2776 = vunpack.c.l.b16 %v2761
        %v2777 = vunpack.c.l.b16 %v2762
        %v2778 = vunpack.c.l.b16 %v2763
        %v2779 = vpack.c.b16 %v2776, %v2775
        %v2780 = vpack.c.b16 %v2778, %v2777
        %v2784 = vsel %vm1690, %v2759, 0
        %2786 = vmatprep.subr.bf16.mxu0 0
        %2787 = vmatpush1.bf16.msra.mxu0 0
        %2788 = vmatprep.subr.bf16.mxu0 0
        %2789 = vmatpush1.bf16.msra.mxu0 0
        %2790 = vmatprep.subr.bf16.mxu0 0
        %2791 = vmatpush1.bf16.msra.mxu0 0
        %2792 = vmatprep.subr.bf16.mxu0 0
        %2793 = vmatpush1.bf16.msra.mxu0 0
        %2794 = vmatprep.subr.bf16.mxu0 0
        %2795 = vmatpush1.bf16.msra.mxu0 0
        %2796 = vmatprep.subr.bf16.mxu0 0
        %2797 = vmatpush1.bf16.msra.mxu0 0
        %2798 = vmatprep.subr.bf16.mxu0 0
        %2799 = vmatpush1.bf16.msra.mxu0 %v2780
        %2800 = vmatprep.subr.bf16.mxu0 0
        %2801 = vmatpush1.bf16.msra.mxu0 %v2779
        %2802 = vmatprep.subr.bf16.mxu0 0
        %2803 = vmatpush2.bf16.msra.mxu0 0
        %2804 = vmatprep.subr.bf16.mxu0 0
        %2805 = vmatpush2.bf16.msra.mxu0 0
        %2806 = vmatprep.subr.bf16.mxu0 0
        %2807 = vmatpush2.bf16.msra.mxu0 0
        %2808 = vmatprep.subr.bf16.mxu0 0
        %2809 = vmatpush2.bf16.msra.mxu0 0
        %2810 = vmatprep.subr.bf16.mxu0 0
        %2811 = vmatpush2.bf16.msra.mxu0 0
        %2812 = vmatprep.subr.bf16.mxu0 0
        %2813 = vmatpush2.bf16.msra.mxu0 0
        %2814 = vmatprep.subr.bf16.mxu0 0
        %2815 = vmatpush2.bf16.msra.mxu0 0
        %2816 = vmatprep.subr.bf16.mxu0 0
        %2817 = vmatpush2.bf16.msra.mxu0 0
        %2818 = vmatprep.mubr.bf16.mxu0 0
        %2819 = vmatmul.mubr.bf16.gmra.mxu0 %v2784
        %v2820 = vpop.f32.mrf.mxu0
        %v2821 = vadd.f32 %v2769, %v2820
        %v2822 = vpop.f32.mrf.mxu0
        %v2823 = vpop.f32.mrf.mxu0
        %v2824 = vadd.f32 %v2769, %v2823
        %v2825 = vpop.f32.mrf.mxu0
        %2826 = vdwg.mxu0
        %v2827 = vmul.f32 %v2821, 0.5
        %v2828 = vmul.f32 %v2824, 0.5
        %v2829 = vmul.f32 %v2821, 0.70710677
        %v2830 = vmul.f32 %v2824, 0.70710677
        %vm2831 = vcmp.ge.f32.partialorder %v2829, 0.0
        %vm2832 = vcmp.ge.f32.partialorder %v2830, 0.0
        %v2833 = vsel %vm2831, 1.0, -1.0
        %v2834 = vsel %vm2832, 1.0, -1.0
        %v2835 = vand.u32 2147483647, %v2829
        %v2836 = vand.u32 2147483647, %v2830
        %v2837 = vmul.f32 %v2835, 0.3275911
        %v2838 = vmul.f32 %v2836, 0.3275911
        %v2839 = vadd.f32 %v2837, 1.0
        %v2840 = vadd.f32 %v2838, 1.0
        %v2841 = vrcp.pop %v2839
        %v2842 = vmul.f32 1.0, %v2841
        %v2843 = vrcp.pop %v2840
        %v2844 = vmul.f32 1.0, %v2843
        %v2845 = vmul.f32 %v2842, 1.0614054
        %v2846 = vmul.f32 %v2844, 1.0614054
        %v2847 = vadd.f32 %v2845, -1.4531521
        %v2848 = vadd.f32 %v2846, -1.4531521
        %v2849 = vmul.f32 %v2847, %v2842
        %v2850 = vmul.f32 %v2848, %v2844
        %v2851 = vadd.f32 %v2849, 1.4214138
        %v2852 = vadd.f32 %v2850, 1.4214138
        %v2853 = vmul.f32 %v2851, %v2842
        %v2854 = vmul.f32 %v2852, %v2844
        %v2855 = vadd.f32 %v2853, -0.28449672
        %v2856 = vadd.f32 %v2854, -0.28449672
        %v2857 = vmul.f32 %v2855, %v2842
        %v2858 = vmul.f32 %v2856, %v2844
        %v2859 = vadd.f32 %v2857, 0.2548296
        %v2860 = vadd.f32 %v2858, 0.2548296
        %v2861 = vmul.f32 %v2859, %v2842
        %v2862 = vmul.f32 %v2860, %v2844
        %v2863 = vsub.f32 0.0, %v2835
        %v2864 = vsub.f32 0.0, %v2836
        %v2865 = vmul.f32 %v2863, %v2835
        %v2866 = vmul.f32 %v2864, %v2836
        %v2867 = vmul.f32 %v2865, 1.442695
        %v2868 = vpow.pop %v2867
        %v2869 = vmul.f32 %v2866, 1.442695
        %v2870 = vpow.pop %v2869
        %v2871 = vmul.f32 %v2861, %v2868
        %v2872 = vmul.f32 %v2862, %v2870
        %v2873 = vsub.f32 1.0, %v2871
        %v2874 = vsub.f32 1.0, %v2872
        %v2875 = vmul.f32 %v2833, %v2873
        %v2876 = vmul.f32 %v2834, %v2874
        %v2877 = vadd.f32 %v2875, 1.0
        %v2878 = vadd.f32 %v2876, 1.0
        %v2879 = vmul.f32 %v2827, %v2877
        %v2880 = vmul.f32 %v2828, %v2878
        %v2881 = vpack.c.bf16 %v2880, %v2879
        %v2882 = vld [vmem:[%s37] sm:$0xf]
        %v2883 = vld [vmem:[%s37 + $0x4] sm:$0xf]
        %v2884 = vld [vmem:[%s37 + $0x8] sm:$0xf]
        %v2885 = vld [vmem:[%s37 + $0xc] sm:$0xf]
        %v2886 = vld [vmem:[%s37 + $0x10] sm:$0xf]
        %v2887 = vld [vmem:[%s37 + $0x14] sm:$0xf]
        %v2888 = vld [vmem:[%s37 + $0x18] sm:$0xf]
        %v2889 = vld [vmem:[%s37 + $0x1c] sm:$0xf]
        %v2890 = vld [vmem:[%s37 + $0x20] sm:$0xf]
        %v2891 = vld [vmem:[%s37 + $0x24] sm:$0xf]
        %v2892 = vld [vmem:[%s37 + $0x28] sm:$0xf]
        %v2893 = vld [vmem:[%s37 + $0x2c] sm:$0xf]
        %v2894 = vld [vmem:[%s37 + $0x30] sm:$0xf]
        %v2895 = vld [vmem:[%s37 + $0x34] sm:$0xf]
        %v2896 = vld [vmem:[%s37 + $0x38] sm:$0xf]
        %v2897 = vld [vmem:[%s37 + $0x3c] sm:$0xf]
        %v2898 = vld [vmem:[%s39] sm:$0x1]
        %v2900 = vlaneseq
        %v2901 = vshrl.u32 %v2900, 7
        %v2902 = vsub.s32 0, %v2901
        %v2903 = vrot.slane %v2898, %v2902
        %v2921 = vunpack.c.l.b16 %v2882
        %v2922 = vunpack.c.l.b16 %v2883
        %v2923 = vunpack.c.l.b16 %v2884
        %v2924 = vunpack.c.l.b16 %v2885
        %v2925 = vunpack.c.l.b16 %v2886
        %v2926 = vunpack.c.l.b16 %v2887
        %v2927 = vunpack.c.l.b16 %v2888
        %v2928 = vunpack.c.l.b16 %v2889
        %v2929 = vunpack.c.l.b16 %v2890
        %v2930 = vunpack.c.l.b16 %v2891
        %v2931 = vunpack.c.l.b16 %v2892
        %v2932 = vunpack.c.l.b16 %v2893
        %v2933 = vunpack.c.l.b16 %v2894
        %v2934 = vunpack.c.l.b16 %v2895
        %v2935 = vunpack.c.l.b16 %v2896
        %v2936 = vunpack.c.l.b16 %v2897
        %v2937 = vpack.c.b16 %v2922, %v2921
        %v2938 = vpack.c.b16 %v2924, %v2923
        %v2939 = vpack.c.b16 %v2926, %v2925
        %v2940 = vpack.c.b16 %v2928, %v2927
        %v2941 = vpack.c.b16 %v2930, %v2929
        %v2942 = vpack.c.b16 %v2932, %v2931
        %v2943 = vpack.c.b16 %v2934, %v2933
        %v2944 = vpack.c.b16 %v2936, %v2935
        %2953 = vmatprep.subr.bf16.mxu0 0
        %2954 = vmatpush1.bf16.msra.mxu0 %v2944
        %2955 = vmatprep.subr.bf16.mxu0 0
        %2956 = vmatpush1.bf16.msra.mxu0 %v2943
        %2957 = vmatprep.subr.bf16.mxu0 0
        %2958 = vmatpush1.bf16.msra.mxu0 %v2942
        %2959 = vmatprep.subr.bf16.mxu0 0
        %2960 = vmatpush1.bf16.msra.mxu0 %v2941
        %2961 = vmatprep.subr.bf16.mxu0 0
        %2962 = vmatpush1.bf16.msra.mxu0 %v2940
        %2963 = vmatprep.subr.bf16.mxu0 0
        %2964 = vmatpush1.bf16.msra.mxu0 %v2939
        %2965 = vmatprep.subr.bf16.mxu0 0
        %2966 = vmatpush1.bf16.msra.mxu0 %v2938
        %2967 = vmatprep.subr.bf16.mxu0 0
        %2968 = vmatpush1.bf16.msra.mxu0 %v2937
        %2969 = vmatprep.subr.bf16.mxu0 0
        %2970 = vmatpush2.bf16.msra.mxu0 0
        %2971 = vmatprep.subr.bf16.mxu0 0
        %2972 = vmatpush2.bf16.msra.mxu0 0
        %2973 = vmatprep.subr.bf16.mxu0 0
        %2974 = vmatpush2.bf16.msra.mxu0 0
        %2975 = vmatprep.subr.bf16.mxu0 0
        %2976 = vmatpush2.bf16.msra.mxu0 0
        %2977 = vmatprep.subr.bf16.mxu0 0
        %2978 = vmatpush2.bf16.msra.mxu0 0
        %2979 = vmatprep.subr.bf16.mxu0 0
        %2980 = vmatpush2.bf16.msra.mxu0 0
        %2981 = vmatprep.subr.bf16.mxu0 0
        %2982 = vmatpush2.bf16.msra.mxu0 0
        %2983 = vmatprep.subr.bf16.mxu0 0
        %2984 = vmatpush2.bf16.msra.mxu0 0
        %2985 = vmatprep.mubr.bf16.mxu0 0
        %2986 = vmatmul.mubr.bf16.gmra.mxu0 %v2881
        %v2987 = vpop.f32.mrf.mxu0
        %v2988 = vadd.f32 %v2903, %v2987
        %v2989 = vpop.f32.mrf.mxu0
        %v2990 = vpop.f32.mrf.mxu0
        %v2991 = vadd.f32 %v2903, %v2990
        %v2992 = vpop.f32.mrf.mxu0
        %2993 = vdwg.mxu0
        %v2994 = vmul.f32 %v2988, %v1388
        %v2995 = vmul.f32 %v2991, %v1393
        %v2996 = vadd.f32 %v2713, %v2994
        %v2997 = vadd.f32 %v2714, %v2995
        %v2998 = vld [vmem:[%s41] sm:$0x1]
        %v2999 = vld [vmem:[%s43] sm:$0x1]
        %v3000 = vsel %vm1690, %v2996, 0.0
        %3001 = vadd.xlane.f32.xlu0 %v3000
        %v3002 = vpop.xlane.xlu0 %3001
        %v3003 = vsel %vm1690, %v2997, 0.0
        %3004 = vadd.xlane.f32.xlu0 %v3003
        %v3005 = vpop.xlane.xlu0 %3004
        %v3006 = vmul.f32 %v3002, %v1888
        %v3007 = vmul.f32 %v3005, %v1888
        %v3008 = vsub.f32 %v2996, %v3006
        %v3009 = vsub.f32 %v2997, %v3007
        %v3010 = vmul.f32 %v3008, %v3008
        %v3011 = vmul.f32 %v3009, %v3009
        %v3012 = vsel %vm1690, %v3010, 0.0
        %3013 = vadd.xlane.f32.xlu0 %v3012
        %v3014 = vpop.xlane.xlu0 %3013
        %v3015 = vsel %vm1690, %v3011, 0.0
        %3016 = vadd.xlane.f32.xlu0 %v3015
        %v3017 = vpop.xlane.xlu0 %3016
        %v3018 = vmul.f32 %v3014, %v1888
        %v3019 = vmul.f32 %v3017, %v1888
        %v3020 = vadd.f32 %v3018, 1e-05
        %v3021 = vadd.f32 %v3019, 1e-05
        %v3022 = vrsqrt.pop %v3020
        %v3023 = vrsqrt.pop %v3021
        %v3024 = vmul.f32 %v3008, %v3022
        %v3025 = vmul.f32 %v3009, %v3023
        %v3027 = vlaneseq
        %v3028 = vshrl.u32 %v3027, 7
        %v3029 = vsub.s32 0, %v3028
        %v3030 = vrot.slane %v2998, %v3029
        %v3032 = vmul.f32 %v3024, %v3030
        %v3033 = vmul.f32 %v3025, %v3030
        %v3035 = vlaneseq
        %v3036 = vshrl.u32 %v3035, 7
        %v3037 = vsub.s32 0, %v3036
        %v3038 = vrot.slane %v2999, %v3037
        %v3040 = vadd.f32 %v3032, %v3038
        %v3041 = vadd.f32 %v3033, %v3038
        %v3042 = vpack.c.bf16 %v3041, %v3040
        %v3043 = vld [vmem:[%s45] sm:$0xf]
        %v3044 = vld [vmem:[%s45 + $0x4] sm:$0xf]
        %v3045 = vld [vmem:[%s45 + $0x8] sm:$0xf]
        %v3046 = vld [vmem:[%s45 + $0xc] sm:$0xf]
        %v3047 = vld [vmem:[%s47] sm:$0x1]
        %v3049 = vlaneseq
        %v3050 = vshrl.u32 %v3049, 7
        %v3051 = vsub.s32 0, %v3050
        %v3052 = vrot.slane %v3047, %v3051
        %v3058 = vunpack.c.l.b16 %v3043
        %v3059 = vunpack.c.l.b16 %v3044
        %v3060 = vunpack.c.l.b16 %v3045
        %v3061 = vunpack.c.l.b16 %v3046
        %v3062 = vpack.c.b16 %v3059, %v3058
        %v3063 = vpack.c.b16 %v3061, %v3060
        %v3067 = vsel %vm1690, %v3042, 0
        %3069 = vmatprep.subr.bf16.mxu0 0
        %3070 = vmatpush1.bf16.msra.mxu0 0
        %3071 = vmatprep.subr.bf16.mxu0 0
        %3072 = vmatpush1.bf16.msra.mxu0 0
        %3073 = vmatprep.subr.bf16.mxu0 0
        %3074 = vmatpush1.bf16.msra.mxu0 0
        %3075 = vmatprep.subr.bf16.mxu0 0
        %3076 = vmatpush1.bf16.msra.mxu0 0
        %3077 = vmatprep.subr.bf16.mxu0 0
        %3078 = vmatpush1.bf16.msra.mxu0 0
        %3079 = vmatprep.subr.bf16.mxu0 0
        %3080 = vmatpush1.bf16.msra.mxu0 0
        %3081 = vmatprep.subr.bf16.mxu0 0
        %3082 = vmatpush1.bf16.msra.mxu0 %v3063
        %3083 = vmatprep.subr.bf16.mxu0 0
        %3084 = vmatpush1.bf16.msra.mxu0 %v3062
        %3085 = vmatprep.subr.bf16.mxu0 0
        %3086 = vmatpush2.bf16.msra.mxu0 0
        %3087 = vmatprep.subr.bf16.mxu0 0
        %3088 = vmatpush2.bf16.msra.mxu0 0
        %3089 = vmatprep.subr.bf16.mxu0 0
        %3090 = vmatpush2.bf16.msra.mxu0 0
        %3091 = vmatprep.subr.bf16.mxu0 0
        %3092 = vmatpush2.bf16.msra.mxu0 0
        %3093 = vmatprep.subr.bf16.mxu0 0
        %3094 = vmatpush2.bf16.msra.mxu0 0
        %3095 = vmatprep.subr.bf16.mxu0 0
        %3096 = vmatpush2.bf16.msra.mxu0 0
        %3097 = vmatprep.subr.bf16.mxu0 0
        %3098 = vmatpush2.bf16.msra.mxu0 0
        %3099 = vmatprep.subr.bf16.mxu0 0
        %3100 = vmatpush2.bf16.msra.mxu0 0
        %3101 = vmatprep.mubr.bf16.mxu0 0
        %3102 = vmatmul.mubr.bf16.gmra.mxu0 %v3067
        %v3103 = vpop.f32.mrf.mxu0
        %v3104 = vadd.f32 %v3052, %v3103
        %v3105 = vpop.f32.mrf.mxu0
        %v3106 = vpop.f32.mrf.mxu0
        %v3107 = vadd.f32 %v3052, %v3106
        %v3108 = vpop.f32.mrf.mxu0
        %3109 = vdwg.mxu0
        %v3110 = vld [vmem:[%s49] sm:$0xf]
        %v3111 = vld [vmem:[%s49 + $0x4] sm:$0xf]
        %v3112 = vld [vmem:[%s49 + $0x8] sm:$0xf]
        %v3113 = vld [vmem:[%s49 + $0xc] sm:$0xf]
        %v3114 = vpack.c.bf16 %v3107, %v3104
        %3116 = vrot.lane.b32.xlu0 %v3114, 96
        %v3117 = vpop.permute.xlu0 %3116
        %v3119 = vsel %vm2001, %v3114, 0
        %v3122 = vsel %vm2001, %v3117, 0
        %3124 = vmatprep.subr.bf16.mxu0 0
        %3125 = vmatpush1.bf16.xpose.msra.mxu0 0
        %3126 = vmatprep.subr.bf16.mxu0 0
        %3127 = vmatpush1.bf16.xpose.msra.mxu0 0
        %3128 = vmatprep.subr.bf16.mxu0 0
        %3129 = vmatpush1.bf16.xpose.msra.mxu0 0
        %3130 = vmatprep.subr.bf16.mxu0 0
        %3131 = vmatpush1.bf16.xpose.msra.mxu0 0
        %3132 = vmatprep.subr.bf16.mxu0 0
        %3133 = vmatpush1.bf16.xpose.msra.mxu0 0
        %3134 = vmatprep.subr.bf16.mxu0 0
        %3135 = vmatpush1.bf16.xpose.msra.mxu0 0
        %3136 = vmatprep.subr.bf16.mxu0 0
        %3137 = vmatpush1.bf16.xpose.msra.mxu0 0
        %3138 = vmatprep.subr.bf16.mxu0 0
        %3139 = vmatpush1.bf16.xpose.msra.mxu0 %v3122
        %3140 = vmatprep.subr.bf16.mxu0 0
        %3141 = vmatpush2.bf16.xpose.msra.mxu0 0
        %3142 = vmatprep.subr.bf16.mxu0 0
        %3143 = vmatpush2.bf16.xpose.msra.mxu0 0
        %3144 = vmatprep.subr.bf16.mxu0 0
        %3145 = vmatpush2.bf16.xpose.msra.mxu0 0
        %3146 = vmatprep.subr.bf16.mxu0 0
        %3147 = vmatpush2.bf16.xpose.msra.mxu0 0
        %3148 = vmatprep.subr.bf16.mxu0 0
        %3149 = vmatpush2.bf16.xpose.msra.mxu0 0
        %3150 = vmatprep.subr.bf16.mxu0 0
        %3151 = vmatpush2.bf16.xpose.msra.mxu0 0
        %3152 = vmatprep.subr.bf16.mxu0 0
        %3153 = vmatpush2.bf16.xpose.msra.mxu0 0
        %3154 = vmatprep.subr.bf16.mxu0 0
        %3155 = vmatpush2.bf16.xpose.msra.mxu0 0
        %3156 = vmatprep.mubr.bf16.mxu0 0
        %3157 = vmatmul.mubr.bf16.gmra.mxu0 %v3119
        %v3158 = vpop.f32.mrf.mxu0
        %v3159 = vadd.f32 0.0, %v3158
        %v3160 = vpop.f32.mrf.mxu0
        %v3161 = vpop.f32.mrf.mxu0
        %v3162 = vadd.f32 0.0, %v3161
        %v3163 = vpop.f32.mrf.mxu0
        %3164 = vdwg.mxu0
        %v3165 = vmul.f32 %v3159, 0.35355338
        %v3166 = vmul.f32 %v3162, 0.35355338
        %v3167 = vsel %vm2056, %v3165, -1e+30
        %v3168 = vsel %vm2056, %v3166, -1e+30
        %v3169 = vsel %vm2059, %v3167, -inf
        %3170 = vmax.xlane.f32.xlu0 %v3169
        %v3171 = vpop.xlane.xlu0 %3170
        %v3172 = vsel %vm2059, %v3168, -inf
        %3173 = vmax.xlane.f32.xlu0 %v3172
        %v3174 = vpop.xlane.xlu0 %3173
        %v3175 = vsub.f32 %v3167, %v3171
        %v3176 = vsub.f32 %v3168, %v3174
        %v3177 = vmul.f32 %v3175, 1.442695
        %v3178 = vpow.pop %v3177
        %v3179 = vmul.f32 %v3176, 1.442695
        %v3180 = vpow.pop %v3179
        %v3181 = vsel %vm2059, %v3178, 0.0
        %3182 = vadd.xlane.f32.xlu0 %v3181
        %v3183 = vpop.xlane.xlu0 %3182
        %v3184 = vsel %vm2059, %v3180, 0.0
        %3185 = vadd.xlane.f32.xlu0 %v3184
        %v3186 = vpop.xlane.xlu0 %3185
        %v3187 = vrcp.pop %v3183
        %v3188 = vrcp.pop %v3186
        %v3189 = vpack.c.bf16 %v3180, %v3178
        %3190 = vrot.lane.b32.xlu0 %v3114, 64
        %v3191 = vpop.permute.xlu0 %3190
        %v3194 = vsel %vm2059, %v3189, 0
        %3196 = vmatprep.subr.bf16.mxu0 0
        %3197 = vmatpush1.bf16.msra.mxu0 0
        %3198 = vmatprep.subr.bf16.mxu0 0
        %3199 = vmatpush1.bf16.msra.mxu0 0
        %3200 = vmatprep.subr.bf16.mxu0 0
        %3201 = vmatpush1.bf16.msra.mxu0 0
        %3202 = vmatprep.subr.bf16.mxu0 0
        %3203 = vmatpush1.bf16.msra.mxu0 0
        %3204 = vmatprep.subr.bf16.mxu0 0
        %3205 = vmatpush1.bf16.msra.mxu0 0
        %3206 = vmatprep.subr.bf16.mxu0 0
        %3207 = vmatpush1.bf16.msra.mxu0 0
        %3208 = vmatprep.subr.bf16.mxu0 0
        %3209 = vmatpush1.bf16.msra.mxu0 0
        %3210 = vmatprep.subr.bf16.mxu0 0
        %3211 = vmatpush1.bf16.msra.mxu0 %v3191
        %3212 = vmatprep.subr.bf16.mxu0 0
        %3213 = vmatpush2.bf16.msra.mxu0 0
        %3214 = vmatprep.subr.bf16.mxu0 0
        %3215 = vmatpush2.bf16.msra.mxu0 0
        %3216 = vmatprep.subr.bf16.mxu0 0
        %3217 = vmatpush2.bf16.msra.mxu0 0
        %3218 = vmatprep.subr.bf16.mxu0 0
        %3219 = vmatpush2.bf16.msra.mxu0 0
        %3220 = vmatprep.subr.bf16.mxu0 0
        %3221 = vmatpush2.bf16.msra.mxu0 0
        %3222 = vmatprep.subr.bf16.mxu0 0
        %3223 = vmatpush2.bf16.msra.mxu0 0
        %3224 = vmatprep.subr.bf16.mxu0 0
        %3225 = vmatpush2.bf16.msra.mxu0 0
        %3226 = vmatprep.subr.bf16.mxu0 0
        %3227 = vmatpush2.bf16.msra.mxu0 0
        %3228 = vmatprep.mubr.bf16.mxu0 0
        %3229 = vmatmul.mubr.bf16.gmra.mxu0 %v3194
        %v3230 = vpop.f32.mrf.mxu0
        %v3231 = vadd.f32 0.0, %v3230
        %v3232 = vpop.f32.mrf.mxu0
        %v3233 = vpop.f32.mrf.mxu0
        %v3234 = vadd.f32 0.0, %v3233
        %v3235 = vpop.f32.mrf.mxu0
        %3236 = vdwg.mxu0
        %v3237 = vmul.f32 %v3231, %v3187
        %v3238 = vmul.f32 %v3234, %v3188
        %v3239 = vpack.c.bf16 %v3238, %v3237
        %3240 = vrot.lane.b32.xlu0 %v3114, 120
        %v3241 = vpop.permute.xlu0 %3240
        %3242 = vrot.lane.b32.xlu0 %v3114, 88
        %v3243 = vpop.permute.xlu0 %3242
        %v3245 = vsel %vm2001, %v3241, 0
        %v3248 = vsel %vm2001, %v3243, 0
        %3250 = vmatprep.subr.bf16.mxu0 0
        %3251 = vmatpush1.bf16.xpose.msra.mxu0 0
        %3252 = vmatprep.subr.bf16.mxu0 0
        %3253 = vmatpush1.bf16.xpose.msra.mxu0 0
        %3254 = vmatprep.subr.bf16.mxu0 0
        %3255 = vmatpush1.bf16.xpose.msra.mxu0 0
        %3256 = vmatprep.subr.bf16.mxu0 0
        %3257 = vmatpush1.bf16.xpose.msra.mxu0 0
        %3258 = vmatprep.subr.bf16.mxu0 0
        %3259 = vmatpush1.bf16.xpose.msra.mxu0 0
        %3260 = vmatprep.subr.bf16.mxu0 0
        %3261 = vmatpush1.bf16.xpose.msra.mxu0 0
        %3262 = vmatprep.subr.bf16.mxu0 0
        %3263 = vmatpush1.bf16.xpose.msra.mxu0 0
        %3264 = vmatprep.subr.bf16.mxu0 0
        %3265 = vmatpush1.bf16.xpose.msra.mxu0 %v3248
        %3266 = vmatprep.subr.bf16.mxu0 0
        %3267 = vmatpush2.bf16.xpose.msra.mxu0 0
        %3268 = vmatprep.subr.bf16.mxu0 0
        %3269 = vmatpush2.bf16.xpose.msra.mxu0 0
        %3270 = vmatprep.subr.bf16.mxu0 0
        %3271 = vmatpush2.bf16.xpose.msra.mxu0 0
        %3272 = vmatprep.subr.bf16.mxu0 0
        %3273 = vmatpush2.bf16.xpose.msra.mxu0 0
        %3274 = vmatprep.subr.bf16.mxu0 0
        %3275 = vmatpush2.bf16.xpose.msra.mxu0 0
        %3276 = vmatprep.subr.bf16.mxu0 0
        %3277 = vmatpush2.bf16.xpose.msra.mxu0 0
        %3278 = vmatprep.subr.bf16.mxu0 0
        %3279 = vmatpush2.bf16.xpose.msra.mxu0 0
        %3280 = vmatprep.subr.bf16.mxu0 0
        %3281 = vmatpush2.bf16.xpose.msra.mxu0 0
        %3282 = vmatprep.mubr.bf16.mxu0 0
        %3283 = vmatmul.mubr.bf16.gmra.mxu0 %v3245
        %v3284 = vpop.f32.mrf.mxu0
        %v3285 = vadd.f32 0.0, %v3284
        %v3286 = vpop.f32.mrf.mxu0
        %v3287 = vpop.f32.mrf.mxu0
        %v3288 = vadd.f32 0.0, %v3287
        %v3289 = vpop.f32.mrf.mxu0
        %3290 = vdwg.mxu0
        %v3291 = vmul.f32 %v3285, 0.35355338
        %v3292 = vmul.f32 %v3288, 0.35355338
        %v3293 = vsel %vm2056, %v3291, -1e+30
        %v3294 = vsel %vm2056, %v3292, -1e+30
        %v3295 = vsel %vm2059, %v3293, -inf
        %3296 = vmax.xlane.f32.xlu0 %v3295
        %v3297 = vpop.xlane.xlu0 %3296
        %v3298 = vsel %vm2059, %v3294, -inf
        %3299 = vmax.xlane.f32.xlu0 %v3298
        %v3300 = vpop.xlane.xlu0 %3299
        %v3301 = vsub.f32 %v3293, %v3297
        %v3302 = vsub.f32 %v3294, %v3300
        %v3303 = vmul.f32 %v3301, 1.442695
        %v3304 = vpow.pop %v3303
        %v3305 = vmul.f32 %v3302, 1.442695
        %v3306 = vpow.pop %v3305
        %v3307 = vsel %vm2059, %v3304, 0.0
        %3308 = vadd.xlane.f32.xlu0 %v3307
        %v3309 = vpop.xlane.xlu0 %3308
        %v3310 = vsel %vm2059, %v3306, 0.0
        %3311 = vadd.xlane.f32.xlu0 %v3310
        %v3312 = vpop.xlane.xlu0 %3311
        %v3313 = vrcp.pop %v3309
        %v3314 = vrcp.pop %v3312
        %v3315 = vpack.c.bf16 %v3306, %v3304
        %3316 = vrot.lane.b32.xlu0 %v3114, 56
        %v3317 = vpop.permute.xlu0 %3316
        %v3320 = vsel %vm2059, %v3315, 0
        %3322 = vmatprep.subr.bf16.mxu0 0
        %3323 = vmatpush1.bf16.msra.mxu0 0
        %3324 = vmatprep.subr.bf16.mxu0 0
        %3325 = vmatpush1.bf16.msra.mxu0 0
        %3326 = vmatprep.subr.bf16.mxu0 0
        %3327 = vmatpush1.bf16.msra.mxu0 0
        %3328 = vmatprep.subr.bf16.mxu0 0
        %3329 = vmatpush1.bf16.msra.mxu0 0
        %3330 = vmatprep.subr.bf16.mxu0 0
        %3331 = vmatpush1.bf16.msra.mxu0 0
        %3332 = vmatprep.subr.bf16.mxu0 0
        %3333 = vmatpush1.bf16.msra.mxu0 0
        %3334 = vmatprep.subr.bf16.mxu0 0
        %3335 = vmatpush1.bf16.msra.mxu0 0
        %3336 = vmatprep.subr.bf16.mxu0 0
        %3337 = vmatpush1.bf16.msra.mxu0 %v3317
        %3338 = vmatprep.subr.bf16.mxu0 0
        %3339 = vmatpush2.bf16.msra.mxu0 0
        %3340 = vmatprep.subr.bf16.mxu0 0
        %3341 = vmatpush2.bf16.msra.mxu0 0
        %3342 = vmatprep.subr.bf16.mxu0 0
        %3343 = vmatpush2.bf16.msra.mxu0 0
        %3344 = vmatprep.subr.bf16.mxu0 0
        %3345 = vmatpush2.bf16.msra.mxu0 0
        %3346 = vmatprep.subr.bf16.mxu0 0
        %3347 = vmatpush2.bf16.msra.mxu0 0
        %3348 = vmatprep.subr.bf16.mxu0 0
        %3349 = vmatpush2.bf16.msra.mxu0 0
        %3350 = vmatprep.subr.bf16.mxu0 0
        %3351 = vmatpush2.bf16.msra.mxu0 0
        %3352 = vmatprep.subr.bf16.mxu0 0
        %3353 = vmatpush2.bf16.msra.mxu0 0
        %3354 = vmatprep.mubr.bf16.mxu0 0
        %3355 = vmatmul.mubr.bf16.gmra.mxu0 %v3320
        %v3356 = vpop.f32.mrf.mxu0
        %v3357 = vadd.f32 0.0, %v3356
        %v3358 = vpop.f32.mrf.mxu0
        %v3359 = vpop.f32.mrf.mxu0
        %v3360 = vadd.f32 0.0, %v3359
        %v3361 = vpop.f32.mrf.mxu0
        %3362 = vdwg.mxu0
        %v3363 = vmul.f32 %v3357, %v3313
        %v3364 = vmul.f32 %v3360, %v3314
        %v3365 = vpack.c.bf16 %v3364, %v3363
        %v3367 = vsel %vm2001, %v3365, 0
        %v3370 = vsel %vm2260, %v3111, 0
        %3372 = vmatprep.subr.bf16.mxu0 0
        %3373 = vmatpush1.bf16.msra.mxu0 0
        %3374 = vmatprep.subr.bf16.mxu0 0
        %3375 = vmatpush1.bf16.msra.mxu0 0
        %3376 = vmatprep.subr.bf16.mxu0 0
        %3377 = vmatpush1.bf16.msra.mxu0 0
        %3378 = vmatprep.subr.bf16.mxu0 0
        %3379 = vmatpush1.bf16.msra.mxu0 0
        %3380 = vmatprep.subr.bf16.mxu0 0
        %3381 = vmatpush1.bf16.msra.mxu0 0
        %3382 = vmatprep.subr.bf16.mxu0 0
        %3383 = vmatpush1.bf16.msra.mxu0 0
        %3384 = vmatprep.subr.bf16.mxu0 0
        %3385 = vmatpush1.bf16.msra.mxu0 0
        %3386 = vmatprep.subr.bf16.mxu0 0
        %3387 = vmatpush1.bf16.msra.mxu0 %v3370
        %3388 = vmatprep.subr.bf16.mxu0 0
        %3389 = vmatpush2.bf16.msra.mxu0 0
        %3390 = vmatprep.subr.bf16.mxu0 0
        %3391 = vmatpush2.bf16.msra.mxu0 0
        %3392 = vmatprep.subr.bf16.mxu0 0
        %3393 = vmatpush2.bf16.msra.mxu0 0
        %3394 = vmatprep.subr.bf16.mxu0 0
        %3395 = vmatpush2.bf16.msra.mxu0 0
        %3396 = vmatprep.subr.bf16.mxu0 0
        %3397 = vmatpush2.bf16.msra.mxu0 0
        %3398 = vmatprep.subr.bf16.mxu0 0
        %3399 = vmatpush2.bf16.msra.mxu0 0
        %3400 = vmatprep.subr.bf16.mxu0 0
        %3401 = vmatpush2.bf16.msra.mxu0 0
        %3402 = vmatprep.subr.bf16.mxu0 0
        %3403 = vmatpush2.bf16.msra.mxu0 0
        %3404 = vmatprep.mubr.bf16.mxu0 0
        %3405 = vmatmul.mubr.bf16.gmra.mxu0 %v3367
        %v3406 = vpop.f32.mrf.mxu0
        %v3407 = vadd.f32 0.0, %v3406
        %v3408 = vpop.f32.mrf.mxu0
        %v3409 = vpop.f32.mrf.mxu0
        %v3410 = vadd.f32 0.0, %v3409
        %v3411 = vpop.f32.mrf.mxu0
        %3412 = vdwg.mxu0
        %v3414 = vsel %vm2001, %v3239, 0
        %v3417 = vsel %vm2260, %v3110, 0
        %3419 = vmatprep.subr.bf16.mxu0 0
        %3420 = vmatpush1.bf16.msra.mxu0 0
        %3421 = vmatprep.subr.bf16.mxu0 0
        %3422 = vmatpush1.bf16.msra.mxu0 0
        %3423 = vmatprep.subr.bf16.mxu0 0
        %3424 = vmatpush1.bf16.msra.mxu0 0
        %3425 = vmatprep.subr.bf16.mxu0 0
        %3426 = vmatpush1.bf16.msra.mxu0 0
        %3427 = vmatprep.subr.bf16.mxu0 0
        %3428 = vmatpush1.bf16.msra.mxu0 0
        %3429 = vmatprep.subr.bf16.mxu0 0
        %3430 = vmatpush1.bf16.msra.mxu0 0
        %3431 = vmatprep.subr.bf16.mxu0 0
        %3432 = vmatpush1.bf16.msra.mxu0 0
        %3433 = vmatprep.subr.bf16.mxu0 0
        %3434 = vmatpush1.bf16.msra.mxu0 %v3417
        %3435 = vmatprep.subr.bf16.mxu0 0
        %3436 = vmatpush2.bf16.msra.mxu0 0
        %3437 = vmatprep.subr.bf16.mxu0 0
        %3438 = vmatpush2.bf16.msra.mxu0 0
        %3439 = vmatprep.subr.bf16.mxu0 0
        %3440 = vmatpush2.bf16.msra.mxu0 0
        %3441 = vmatprep.subr.bf16.mxu0 0
        %3442 = vmatpush2.bf16.msra.mxu0 0
        %3443 = vmatprep.subr.bf16.mxu0 0
        %3444 = vmatpush2.bf16.msra.mxu0 0
        %3445 = vmatprep.subr.bf16.mxu0 0
        %3446 = vmatpush2.bf16.msra.mxu0 0
        %3447 = vmatprep.subr.bf16.mxu0 0
        %3448 = vmatpush2.bf16.msra.mxu0 0
        %3449 = vmatprep.subr.bf16.mxu0 0
        %3450 = vmatpush2.bf16.msra.mxu0 0
        %3451 = vmatprep.mubr.bf16.mxu0 0
        %3452 = vmatmul.mubr.bf16.gmra.mxu0 %v3414
        %v3453 = vpop.f32.mrf.mxu0
        %v3454 = vadd.f32 %v3407, %v3453
        %v3455 = vpop.f32.mrf.mxu0
        %v3456 = vpop.f32.mrf.mxu0
        %v3457 = vadd.f32 %v3410, %v3456
        %v3458 = vpop.f32.mrf.mxu0
        %3459 = vdwg.mxu0
        %3460 = vrot.lane.b32.xlu0 %v3114, 112
        %v3461 = vpop.permute.xlu0 %3460
        %3462 = vrot.lane.b32.xlu0 %v3114, 80
        %v3463 = vpop.permute.xlu0 %3462
        %v3465 = vsel %vm2001, %v3461, 0
        %v3468 = vsel %vm2001, %v3463, 0
        %3470 = vmatprep.subr.bf16.mxu0 0
        %3471 = vmatpush1.bf16.xpose.msra.mxu0 0
        %3472 = vmatprep.subr.bf16.mxu0 0
        %3473 = vmatpush1.bf16.xpose.msra.mxu0 0
        %3474 = vmatprep.subr.bf16.mxu0 0
        %3475 = vmatpush1.bf16.xpose.msra.mxu0 0
        %3476 = vmatprep.subr.bf16.mxu0 0
        %3477 = vmatpush1.bf16.xpose.msra.mxu0 0
        %3478 = vmatprep.subr.bf16.mxu0 0
        %3479 = vmatpush1.bf16.xpose.msra.mxu0 0
        %3480 = vmatprep.subr.bf16.mxu0 0
        %3481 = vmatpush1.bf16.xpose.msra.mxu0 0
        %3482 = vmatprep.subr.bf16.mxu0 0
        %3483 = vmatpush1.bf16.xpose.msra.mxu0 0
        %3484 = vmatprep.subr.bf16.mxu0 0
        %3485 = vmatpush1.bf16.xpose.msra.mxu0 %v3468
        %3486 = vmatprep.subr.bf16.mxu0 0
        %3487 = vmatpush2.bf16.xpose.msra.mxu0 0
        %3488 = vmatprep.subr.bf16.mxu0 0
        %3489 = vmatpush2.bf16.xpose.msra.mxu0 0
        %3490 = vmatprep.subr.bf16.mxu0 0
        %3491 = vmatpush2.bf16.xpose.msra.mxu0 0
        %3492 = vmatprep.subr.bf16.mxu0 0
        %3493 = vmatpush2.bf16.xpose.msra.mxu0 0
        %3494 = vmatprep.subr.bf16.mxu0 0
        %3495 = vmatpush2.bf16.xpose.msra.mxu0 0
        %3496 = vmatprep.subr.bf16.mxu0 0
        %3497 = vmatpush2.bf16.xpose.msra.mxu0 0
        %3498 = vmatprep.subr.bf16.mxu0 0
        %3499 = vmatpush2.bf16.xpose.msra.mxu0 0
        %3500 = vmatprep.subr.bf16.mxu0 0
        %3501 = vmatpush2.bf16.xpose.msra.mxu0 0
        %3502 = vmatprep.mubr.bf16.mxu0 0
        %3503 = vmatmul.mubr.bf16.gmra.mxu0 %v3465
        %v3504 = vpop.f32.mrf.mxu0
        %v3505 = vadd.f32 0.0, %v3504
        %v3506 = vpop.f32.mrf.mxu0
        %v3507 = vpop.f32.mrf.mxu0
        %v3508 = vadd.f32 0.0, %v3507
        %v3509 = vpop.f32.mrf.mxu0
        %3510 = vdwg.mxu0
        %v3511 = vmul.f32 %v3505, 0.35355338
        %v3512 = vmul.f32 %v3508, 0.35355338
        %v3513 = vsel %vm2056, %v3511, -1e+30
        %v3514 = vsel %vm2056, %v3512, -1e+30
        %v3515 = vsel %vm2059, %v3513, -inf
        %3516 = vmax.xlane.f32.xlu0 %v3515
        %v3517 = vpop.xlane.xlu0 %3516
        %v3518 = vsel %vm2059, %v3514, -inf
        %3519 = vmax.xlane.f32.xlu0 %v3518
        %v3520 = vpop.xlane.xlu0 %3519
        %v3521 = vsub.f32 %v3513, %v3517
        %v3522 = vsub.f32 %v3514, %v3520
        %v3523 = vmul.f32 %v3521, 1.442695
        %v3524 = vpow.pop %v3523
        %v3525 = vmul.f32 %v3522, 1.442695
        %v3526 = vpow.pop %v3525
        %v3527 = vsel %vm2059, %v3524, 0.0
        %3528 = vadd.xlane.f32.xlu0 %v3527
        %v3529 = vpop.xlane.xlu0 %3528
        %v3530 = vsel %vm2059, %v3526, 0.0
        %3531 = vadd.xlane.f32.xlu0 %v3530
        %v3532 = vpop.xlane.xlu0 %3531
        %v3533 = vrcp.pop %v3529
        %v3534 = vrcp.pop %v3532
        %v3535 = vpack.c.bf16 %v3526, %v3524
        %3536 = vrot.lane.b32.xlu0 %v3114, 48
        %v3537 = vpop.permute.xlu0 %3536
        %v3540 = vsel %vm2059, %v3535, 0
        %3542 = vmatprep.subr.bf16.mxu0 0
        %3543 = vmatpush1.bf16.msra.mxu0 0
        %3544 = vmatprep.subr.bf16.mxu0 0
        %3545 = vmatpush1.bf16.msra.mxu0 0
        %3546 = vmatprep.subr.bf16.mxu0 0
        %3547 = vmatpush1.bf16.msra.mxu0 0
        %3548 = vmatprep.subr.bf16.mxu0 0
        %3549 = vmatpush1.bf16.msra.mxu0 0
        %3550 = vmatprep.subr.bf16.mxu0 0
        %3551 = vmatpush1.bf16.msra.mxu0 0
        %3552 = vmatprep.subr.bf16.mxu0 0
        %3553 = vmatpush1.bf16.msra.mxu0 0
        %3554 = vmatprep.subr.bf16.mxu0 0
        %3555 = vmatpush1.bf16.msra.mxu0 0
        %3556 = vmatprep.subr.bf16.mxu0 0
        %3557 = vmatpush1.bf16.msra.mxu0 %v3537
        %3558 = vmatprep.subr.bf16.mxu0 0
        %3559 = vmatpush2.bf16.msra.mxu0 0
        %3560 = vmatprep.subr.bf16.mxu0 0
        %3561 = vmatpush2.bf16.msra.mxu0 0
        %3562 = vmatprep.subr.bf16.mxu0 0
        %3563 = vmatpush2.bf16.msra.mxu0 0
        %3564 = vmatprep.subr.bf16.mxu0 0
        %3565 = vmatpush2.bf16.msra.mxu0 0
        %3566 = vmatprep.subr.bf16.mxu0 0
        %3567 = vmatpush2.bf16.msra.mxu0 0
        %3568 = vmatprep.subr.bf16.mxu0 0
        %3569 = vmatpush2.bf16.msra.mxu0 0
        %3570 = vmatprep.subr.bf16.mxu0 0
        %3571 = vmatpush2.bf16.msra.mxu0 0
        %3572 = vmatprep.subr.bf16.mxu0 0
        %3573 = vmatpush2.bf16.msra.mxu0 0
        %3574 = vmatprep.mubr.bf16.mxu0 0
        %3575 = vmatmul.mubr.bf16.gmra.mxu0 %v3540
        %v3576 = vpop.f32.mrf.mxu0
        %v3577 = vadd.f32 0.0, %v3576
        %v3578 = vpop.f32.mrf.mxu0
        %v3579 = vpop.f32.mrf.mxu0
        %v3580 = vadd.f32 0.0, %v3579
        %v3581 = vpop.f32.mrf.mxu0
        %3582 = vdwg.mxu0
        %v3583 = vmul.f32 %v3577, %v3533
        %v3584 = vmul.f32 %v3580, %v3534
        %v3585 = vpack.c.bf16 %v3584, %v3583
        %v3587 = vsel %vm2001, %v3585, 0
        %v3590 = vsel %vm2260, %v3112, 0
        %3592 = vmatprep.subr.bf16.mxu0 0
        %3593 = vmatpush1.bf16.msra.mxu0 0
        %3594 = vmatprep.subr.bf16.mxu0 0
        %3595 = vmatpush1.bf16.msra.mxu0 0
        %3596 = vmatprep.subr.bf16.mxu0 0
        %3597 = vmatpush1.bf16.msra.mxu0 0
        %3598 = vmatprep.subr.bf16.mxu0 0
        %3599 = vmatpush1.bf16.msra.mxu0 0
        %3600 = vmatprep.subr.bf16.mxu0 0
        %3601 = vmatpush1.bf16.msra.mxu0 0
        %3602 = vmatprep.subr.bf16.mxu0 0
        %3603 = vmatpush1.bf16.msra.mxu0 0
        %3604 = vmatprep.subr.bf16.mxu0 0
        %3605 = vmatpush1.bf16.msra.mxu0 0
        %3606 = vmatprep.subr.bf16.mxu0 0
        %3607 = vmatpush1.bf16.msra.mxu0 %v3590
        %3608 = vmatprep.subr.bf16.mxu0 0
        %3609 = vmatpush2.bf16.msra.mxu0 0
        %3610 = vmatprep.subr.bf16.mxu0 0
        %3611 = vmatpush2.bf16.msra.mxu0 0
        %3612 = vmatprep.subr.bf16.mxu0 0
        %3613 = vmatpush2.bf16.msra.mxu0 0
        %3614 = vmatprep.subr.bf16.mxu0 0
        %3615 = vmatpush2.bf16.msra.mxu0 0
        %3616 = vmatprep.subr.bf16.mxu0 0
        %3617 = vmatpush2.bf16.msra.mxu0 0
        %3618 = vmatprep.subr.bf16.mxu0 0
        %3619 = vmatpush2.bf16.msra.mxu0 0
        %3620 = vmatprep.subr.bf16.mxu0 0
        %3621 = vmatpush2.bf16.msra.mxu0 0
        %3622 = vmatprep.subr.bf16.mxu0 0
        %3623 = vmatpush2.bf16.msra.mxu0 0
        %3624 = vmatprep.mubr.bf16.mxu0 0
        %3625 = vmatmul.mubr.bf16.gmra.mxu0 %v3587
        %v3626 = vpop.f32.mrf.mxu0
        %v3627 = vadd.f32 0.0, %v3626
        %v3628 = vpop.f32.mrf.mxu0
        %v3629 = vpop.f32.mrf.mxu0
        %v3630 = vadd.f32 0.0, %v3629
        %v3631 = vpop.f32.mrf.mxu0
        %3632 = vdwg.mxu0
        %v3633 = vadd.f32 %v3454, %v3627
        %v3634 = vadd.f32 %v3457, %v3630
        %3635 = vrot.lane.b32.xlu0 %v3114, 104
        %v3636 = vpop.permute.xlu0 %3635
        %3637 = vrot.lane.b32.xlu0 %v3114, 72
        %v3638 = vpop.permute.xlu0 %3637
        %v3640 = vsel %vm2001, %v3636, 0
        %v3643 = vsel %vm2001, %v3638, 0
        %3645 = vmatprep.subr.bf16.mxu0 0
        %3646 = vmatpush1.bf16.xpose.msra.mxu0 0
        %3647 = vmatprep.subr.bf16.mxu0 0
        %3648 = vmatpush1.bf16.xpose.msra.mxu0 0
        %3649 = vmatprep.subr.bf16.mxu0 0
        %3650 = vmatpush1.bf16.xpose.msra.mxu0 0
        %3651 = vmatprep.subr.bf16.mxu0 0
        %3652 = vmatpush1.bf16.xpose.msra.mxu0 0
        %3653 = vmatprep.subr.bf16.mxu0 0
        %3654 = vmatpush1.bf16.xpose.msra.mxu0 0
        %3655 = vmatprep.subr.bf16.mxu0 0
        %3656 = vmatpush1.bf16.xpose.msra.mxu0 0
        %3657 = vmatprep.subr.bf16.mxu0 0
        %3658 = vmatpush1.bf16.xpose.msra.mxu0 0
        %3659 = vmatprep.subr.bf16.mxu0 0
        %3660 = vmatpush1.bf16.xpose.msra.mxu0 %v3643
        %3661 = vmatprep.subr.bf16.mxu0 0
        %3662 = vmatpush2.bf16.xpose.msra.mxu0 0
        %3663 = vmatprep.subr.bf16.mxu0 0
        %3664 = vmatpush2.bf16.xpose.msra.mxu0 0
        %3665 = vmatprep.subr.bf16.mxu0 0
        %3666 = vmatpush2.bf16.xpose.msra.mxu0 0
        %3667 = vmatprep.subr.bf16.mxu0 0
        %3668 = vmatpush2.bf16.xpose.msra.mxu0 0
        %3669 = vmatprep.subr.bf16.mxu0 0
        %3670 = vmatpush2.bf16.xpose.msra.mxu0 0
        %3671 = vmatprep.subr.bf16.mxu0 0
        %3672 = vmatpush2.bf16.xpose.msra.mxu0 0
        %3673 = vmatprep.subr.bf16.mxu0 0
        %3674 = vmatpush2.bf16.xpose.msra.mxu0 0
        %3675 = vmatprep.subr.bf16.mxu0 0
        %3676 = vmatpush2.bf16.xpose.msra.mxu0 0
        %3677 = vmatprep.mubr.bf16.mxu0 0
        %3678 = vmatmul.mubr.bf16.gmra.mxu0 %v3640
        %v3679 = vpop.f32.mrf.mxu0
        %v3680 = vadd.f32 0.0, %v3679
        %v3681 = vpop.f32.mrf.mxu0
        %v3682 = vpop.f32.mrf.mxu0
        %v3683 = vadd.f32 0.0, %v3682
        %v3684 = vpop.f32.mrf.mxu0
        %3685 = vdwg.mxu0
        %v3686 = vmul.f32 %v3680, 0.35355338
        %v3687 = vmul.f32 %v3683, 0.35355338
        %v3688 = vsel %vm2056, %v3686, -1e+30
        %v3689 = vsel %vm2056, %v3687, -1e+30
        %v3690 = vsel %vm2059, %v3688, -inf
        %3691 = vmax.xlane.f32.xlu0 %v3690
        %v3692 = vpop.xlane.xlu0 %3691
        %v3693 = vsel %vm2059, %v3689, -inf
        %3694 = vmax.xlane.f32.xlu0 %v3693
        %v3695 = vpop.xlane.xlu0 %3694
        %v3696 = vsub.f32 %v3688, %v3692
        %v3697 = vsub.f32 %v3689, %v3695
        %v3698 = vmul.f32 %v3696, 1.442695
        %v3699 = vpow.pop %v3698
        %v3700 = vmul.f32 %v3697, 1.442695
        %v3701 = vpow.pop %v3700
        %v3702 = vsel %vm2059, %v3699, 0.0
        %3703 = vadd.xlane.f32.xlu0 %v3702
        %v3704 = vpop.xlane.xlu0 %3703
        %v3705 = vsel %vm2059, %v3701, 0.0
        %3706 = vadd.xlane.f32.xlu0 %v3705
        %v3707 = vpop.xlane.xlu0 %3706
        %v3708 = vrcp.pop %v3704
        %v3709 = vrcp.pop %v3707
        %v3710 = vpack.c.bf16 %v3701, %v3699
        %3711 = vrot.lane.b32.xlu0 %v3114, 40
        %v3712 = vpop.permute.xlu0 %3711
        %v3715 = vsel %vm2059, %v3710, 0
        %3717 = vmatprep.subr.bf16.mxu0 0
        %3718 = vmatpush1.bf16.msra.mxu0 0
        %3719 = vmatprep.subr.bf16.mxu0 0
        %3720 = vmatpush1.bf16.msra.mxu0 0
        %3721 = vmatprep.subr.bf16.mxu0 0
        %3722 = vmatpush1.bf16.msra.mxu0 0
        %3723 = vmatprep.subr.bf16.mxu0 0
        %3724 = vmatpush1.bf16.msra.mxu0 0
        %3725 = vmatprep.subr.bf16.mxu0 0
        %3726 = vmatpush1.bf16.msra.mxu0 0
        %3727 = vmatprep.subr.bf16.mxu0 0
        %3728 = vmatpush1.bf16.msra.mxu0 0
        %3729 = vmatprep.subr.bf16.mxu0 0
        %3730 = vmatpush1.bf16.msra.mxu0 0
        %3731 = vmatprep.subr.bf16.mxu0 0
        %3732 = vmatpush1.bf16.msra.mxu0 %v3712
        %3733 = vmatprep.subr.bf16.mxu0 0
        %3734 = vmatpush2.bf16.msra.mxu0 0
        %3735 = vmatprep.subr.bf16.mxu0 0
        %3736 = vmatpush2.bf16.msra.mxu0 0
        %3737 = vmatprep.subr.bf16.mxu0 0
        %3738 = vmatpush2.bf16.msra.mxu0 0
        %3739 = vmatprep.subr.bf16.mxu0 0
        %3740 = vmatpush2.bf16.msra.mxu0 0
        %3741 = vmatprep.subr.bf16.mxu0 0
        %3742 = vmatpush2.bf16.msra.mxu0 0
        %3743 = vmatprep.subr.bf16.mxu0 0
        %3744 = vmatpush2.bf16.msra.mxu0 0
        %3745 = vmatprep.subr.bf16.mxu0 0
        %3746 = vmatpush2.bf16.msra.mxu0 0
        %3747 = vmatprep.subr.bf16.mxu0 0
        %3748 = vmatpush2.bf16.msra.mxu0 0
        %3749 = vmatprep.mubr.bf16.mxu0 0
        %3750 = vmatmul.mubr.bf16.gmra.mxu0 %v3715
        %v3751 = vpop.f32.mrf.mxu0
        %v3752 = vadd.f32 0.0, %v3751
        %v3753 = vpop.f32.mrf.mxu0
        %v3754 = vpop.f32.mrf.mxu0
        %v3755 = vadd.f32 0.0, %v3754
        %v3756 = vpop.f32.mrf.mxu0
        %3757 = vdwg.mxu0
        %v3758 = vmul.f32 %v3752, %v3708
        %v3759 = vmul.f32 %v3755, %v3709
        %v3760 = vpack.c.bf16 %v3759, %v3758
        %v3762 = vsel %vm2001, %v3760, 0
        %v3765 = vsel %vm2260, %v3113, 0
        %3767 = vmatprep.subr.bf16.mxu0 0
        %3768 = vmatpush1.bf16.msra.mxu0 0
        %3769 = vmatprep.subr.bf16.mxu0 0
        %3770 = vmatpush1.bf16.msra.mxu0 0
        %3771 = vmatprep.subr.bf16.mxu0 0
        %3772 = vmatpush1.bf16.msra.mxu0 0
        %3773 = vmatprep.subr.bf16.mxu0 0
        %3774 = vmatpush1.bf16.msra.mxu0 0
        %3775 = vmatprep.subr.bf16.mxu0 0
        %3776 = vmatpush1.bf16.msra.mxu0 0
        %3777 = vmatprep.subr.bf16.mxu0 0
        %3778 = vmatpush1.bf16.msra.mxu0 0
        %3779 = vmatprep.subr.bf16.mxu0 0
        %3780 = vmatpush1.bf16.msra.mxu0 0
        %3781 = vmatprep.subr.bf16.mxu0 0
        %3782 = vmatpush1.bf16.msra.mxu0 %v3765
        %3783 = vmatprep.subr.bf16.mxu0 0
        %3784 = vmatpush2.bf16.msra.mxu0 0
        %3785 = vmatprep.subr.bf16.mxu0 0
        %3786 = vmatpush2.bf16.msra.mxu0 0
        %3787 = vmatprep.subr.bf16.mxu0 0
        %3788 = vmatpush2.bf16.msra.mxu0 0
        %3789 = vmatprep.subr.bf16.mxu0 0
        %3790 = vmatpush2.bf16.msra.mxu0 0
        %3791 = vmatprep.subr.bf16.mxu0 0
        %3792 = vmatpush2.bf16.msra.mxu0 0
        %3793 = vmatprep.subr.bf16.mxu0 0
        %3794 = vmatpush2.bf16.msra.mxu0 0
        %3795 = vmatprep.subr.bf16.mxu0 0
        %3796 = vmatpush2.bf16.msra.mxu0 0
        %3797 = vmatprep.subr.bf16.mxu0 0
        %3798 = vmatpush2.bf16.msra.mxu0 0
        %3799 = vmatprep.mubr.bf16.mxu0 0
        %3800 = vmatmul.mubr.bf16.gmra.mxu0 %v3762
        %v3801 = vpop.f32.mrf.mxu0
        %v3802 = vadd.f32 0.0, %v3801
        %v3803 = vpop.f32.mrf.mxu0
        %v3804 = vpop.f32.mrf.mxu0
        %v3805 = vadd.f32 0.0, %v3804
        %v3806 = vpop.f32.mrf.mxu0
        %3807 = vdwg.mxu0
        %v3808 = vadd.f32 %v3633, %v3802
        %v3809 = vadd.f32 %v3634, %v3805
        %v3810 = vld [vmem:[%s51] sm:$0x1]
        %v3812 = vlaneseq
        %v3813 = vshrl.u32 %v3812, 7
        %v3814 = vsub.s32 0, %v3813
        %v3815 = vrot.slane %v3810, %v3814
        %v3817 = vadd.f32 %v3808, %v3815
        %v3818 = vadd.f32 %v3809, %v3815
        %v3819 = vmul.f32 %v3817, %v1388
        %v3820 = vmul.f32 %v3818, %v1393
        %v3821 = vadd.f32 %v2996, %v3819
        %v3822 = vadd.f32 %v2997, %v3820
        %v3823 = vld [vmem:[%s53] sm:$0x1]
        %v3824 = vld [vmem:[%s55] sm:$0x1]
        %v3825 = vsel %vm1690, %v3821, 0.0
        %3826 = vadd.xlane.f32.xlu0 %v3825
        %v3827 = vpop.xlane.xlu0 %3826
        %v3828 = vsel %vm1690, %v3822, 0.0
        %3829 = vadd.xlane.f32.xlu0 %v3828
        %v3830 = vpop.xlane.xlu0 %3829
        %v3831 = vmul.f32 %v3827, %v1888
        %v3832 = vmul.f32 %v3830, %v1888
        %v3833 = vsub.f32 %v3821, %v3831
        %v3834 = vsub.f32 %v3822, %v3832
        %v3835 = vmul.f32 %v3833, %v3833
        %v3836 = vmul.f32 %v3834, %v3834
        %v3837 = vsel %vm1690, %v3835, 0.0
        %3838 = vadd.xlane.f32.xlu0 %v3837
        %v3839 = vpop.xlane.xlu0 %3838
        %v3840 = vsel %vm1690, %v3836, 0.0
        %3841 = vadd.xlane.f32.xlu0 %v3840
        %v3842 = vpop.xlane.xlu0 %3841
        %v3843 = vmul.f32 %v3839, %v1888
        %v3844 = vmul.f32 %v3842, %v1888
        %v3845 = vadd.f32 %v3843, 1e-05
        %v3846 = vadd.f32 %v3844, 1e-05
        %v3847 = vrsqrt.pop %v3845
        %v3848 = vrsqrt.pop %v3846
        %v3849 = vmul.f32 %v3833, %v3847
        %v3850 = vmul.f32 %v3834, %v3848
        %v3852 = vlaneseq
        %v3853 = vshrl.u32 %v3852, 7
        %v3854 = vsub.s32 0, %v3853
        %v3855 = vrot.slane %v3823, %v3854
        %v3857 = vmul.f32 %v3849, %v3855
        %v3858 = vmul.f32 %v3850, %v3855
        %v3860 = vlaneseq
        %v3861 = vshrl.u32 %v3860, 7
        %v3862 = vsub.s32 0, %v3861
        %v3863 = vrot.slane %v3824, %v3862
        %v3865 = vadd.f32 %v3857, %v3863
        %v3866 = vadd.f32 %v3858, %v3863
        %v3867 = vpack.c.bf16 %v3866, %v3865
        %v3868 = vld [vmem:[%s57] sm:$0xf]
        %v3869 = vld [vmem:[%s57 + $0x4] sm:$0xf]
        %v3870 = vld [vmem:[%s57 + $0x8] sm:$0xf]
        %v3871 = vld [vmem:[%s57 + $0xc] sm:$0xf]
        %v3872 = vld [vmem:[%s59] sm:$0x1]
        %v3874 = vlaneseq
        %v3875 = vshrl.u32 %v3874, 7
        %v3876 = vsub.s32 0, %v3875
        %v3877 = vrot.slane %v3872, %v3876
        %v3883 = vunpack.c.l.b16 %v3868
        %v3884 = vunpack.c.l.b16 %v3869
        %v3885 = vunpack.c.l.b16 %v3870
        %v3886 = vunpack.c.l.b16 %v3871
        %v3887 = vpack.c.b16 %v3884, %v3883
        %v3888 = vpack.c.b16 %v3886, %v3885
        %v3892 = vsel %vm1690, %v3867, 0
        %3894 = vmatprep.subr.bf16.mxu0 0
        %3895 = vmatpush1.bf16.msra.mxu0 0
        %3896 = vmatprep.subr.bf16.mxu0 0
        %3897 = vmatpush1.bf16.msra.mxu0 0
        %3898 = vmatprep.subr.bf16.mxu0 0
        %3899 = vmatpush1.bf16.msra.mxu0 0
        %3900 = vmatprep.subr.bf16.mxu0 0
        %3901 = vmatpush1.bf16.msra.mxu0 0
        %3902 = vmatprep.subr.bf16.mxu0 0
        %3903 = vmatpush1.bf16.msra.mxu0 0
        %3904 = vmatprep.subr.bf16.mxu0 0
        %3905 = vmatpush1.bf16.msra.mxu0 0
        %3906 = vmatprep.subr.bf16.mxu0 0
        %3907 = vmatpush1.bf16.msra.mxu0 %v3888
        %3908 = vmatprep.subr.bf16.mxu0 0
        %3909 = vmatpush1.bf16.msra.mxu0 %v3887
        %3910 = vmatprep.subr.bf16.mxu0 0
        %3911 = vmatpush2.bf16.msra.mxu0 0
        %3912 = vmatprep.subr.bf16.mxu0 0
        %3913 = vmatpush2.bf16.msra.mxu0 0
        %3914 = vmatprep.subr.bf16.mxu0 0
        %3915 = vmatpush2.bf16.msra.mxu0 0
        %3916 = vmatprep.subr.bf16.mxu0 0
        %3917 = vmatpush2.bf16.msra.mxu0 0
        %3918 = vmatprep.subr.bf16.mxu0 0
        %3919 = vmatpush2.bf16.msra.mxu0 0
        %3920 = vmatprep.subr.bf16.mxu0 0
        %3921 = vmatpush2.bf16.msra.mxu0 0
        %3922 = vmatprep.subr.bf16.mxu0 0
        %3923 = vmatpush2.bf16.msra.mxu0 0
        %3924 = vmatprep.subr.bf16.mxu0 0
        %3925 = vmatpush2.bf16.msra.mxu0 0
        %3926 = vmatprep.mubr.bf16.mxu0 0
        %3927 = vmatmul.mubr.bf16.gmra.mxu0 %v3892
        %v3928 = vpop.f32.mrf.mxu0
        %v3929 = vadd.f32 %v3877, %v3928
        %v3930 = vpop.f32.mrf.mxu0
        %v3931 = vpop.f32.mrf.mxu0
        %v3932 = vadd.f32 %v3877, %v3931
        %v3933 = vpop.f32.mrf.mxu0
        %3934 = vdwg.mxu0
        %v3935 = vmul.f32 %v3929, 0.5
        %v3936 = vmul.f32 %v3932, 0.5
        %v3937 = vmul.f32 %v3929, 0.70710677
        %v3938 = vmul.f32 %v3932, 0.70710677
        %vm3939 = vcmp.ge.f32.partialorder %v3937, 0.0
        %vm3940 = vcmp.ge.f32.partialorder %v3938, 0.0
        %v3941 = vsel %vm3939, 1.0, -1.0
        %v3942 = vsel %vm3940, 1.0, -1.0
        %v3943 = vand.u32 2147483647, %v3937
        %v3944 = vand.u32 2147483647, %v3938
        %v3945 = vmul.f32 %v3943, 0.3275911
        %v3946 = vmul.f32 %v3944, 0.3275911
        %v3947 = vadd.f32 %v3945, 1.0
        %v3948 = vadd.f32 %v3946, 1.0
        %v3949 = vrcp.pop %v3947
        %v3950 = vmul.f32 1.0, %v3949
        %v3951 = vrcp.pop %v3948
        %v3952 = vmul.f32 1.0, %v3951
        %v3953 = vmul.f32 %v3950, 1.0614054
        %v3954 = vmul.f32 %v3952, 1.0614054
        %v3955 = vadd.f32 %v3953, -1.4531521
        %v3956 = vadd.f32 %v3954, -1.4531521
        %v3957 = vmul.f32 %v3955, %v3950
        %v3958 = vmul.f32 %v3956, %v3952
        %v3959 = vadd.f32 %v3957, 1.4214138
        %v3960 = vadd.f32 %v3958, 1.4214138
        %v3961 = vmul.f32 %v3959, %v3950
        %v3962 = vmul.f32 %v3960, %v3952
        %v3963 = vadd.f32 %v3961, -0.28449672
        %v3964 = vadd.f32 %v3962, -0.28449672
        %v3965 = vmul.f32 %v3963, %v3950
        %v3966 = vmul.f32 %v3964, %v3952
        %v3967 = vadd.f32 %v3965, 0.2548296
        %v3968 = vadd.f32 %v3966, 0.2548296
        %v3969 = vmul.f32 %v3967, %v3950
        %v3970 = vmul.f32 %v3968, %v3952
        %v3971 = vsub.f32 0.0, %v3943
        %v3972 = vsub.f32 0.0, %v3944
        %v3973 = vmul.f32 %v3971, %v3943
        %v3974 = vmul.f32 %v3972, %v3944
        %v3975 = vmul.f32 %v3973, 1.442695
        %v3976 = vpow.pop %v3975
        %v3977 = vmul.f32 %v3974, 1.442695
        %v3978 = vpow.pop %v3977
        %v3979 = vmul.f32 %v3969, %v3976
        %v3980 = vmul.f32 %v3970, %v3978
        %v3981 = vsub.f32 1.0, %v3979
        %v3982 = vsub.f32 1.0, %v3980
        %v3983 = vmul.f32 %v3941, %v3981
        %v3984 = vmul.f32 %v3942, %v3982
        %v3985 = vadd.f32 %v3983, 1.0
        %v3986 = vadd.f32 %v3984, 1.0
        %v3987 = vmul.f32 %v3935, %v3985
        %v3988 = vmul.f32 %v3936, %v3986
        %v3989 = vpack.c.bf16 %v3988, %v3987
        %v3990 = vld [vmem:[%s61] sm:$0xf]
        %v3991 = vld [vmem:[%s61 + $0x4] sm:$0xf]
        %v3992 = vld [vmem:[%s61 + $0x8] sm:$0xf]
        %v3993 = vld [vmem:[%s61 + $0xc] sm:$0xf]
        %v3994 = vld [vmem:[%s61 + $0x10] sm:$0xf]
        %v3995 = vld [vmem:[%s61 + $0x14] sm:$0xf]
        %v3996 = vld [vmem:[%s61 + $0x18] sm:$0xf]
        %v3997 = vld [vmem:[%s61 + $0x1c] sm:$0xf]
        %v3998 = vld [vmem:[%s61 + $0x20] sm:$0xf]
        %v3999 = vld [vmem:[%s61 + $0x24] sm:$0xf]
        %v4000 = vld [vmem:[%s61 + $0x28] sm:$0xf]
        %v4001 = vld [vmem:[%s61 + $0x2c] sm:$0xf]
        %v4002 = vld [vmem:[%s61 + $0x30] sm:$0xf]
        %v4003 = vld [vmem:[%s61 + $0x34] sm:$0xf]
        %v4004 = vld [vmem:[%s61 + $0x38] sm:$0xf]
        %v4005 = vld [vmem:[%s61 + $0x3c] sm:$0xf]
        %v4006 = vld [vmem:[%s63] sm:$0x1]
        %v4008 = vlaneseq
        %v4009 = vshrl.u32 %v4008, 7
        %v4010 = vsub.s32 0, %v4009
        %v4011 = vrot.slane %v4006, %v4010
        %v4029 = vunpack.c.l.b16 %v3990
        %v4030 = vunpack.c.l.b16 %v3991
        %v4031 = vunpack.c.l.b16 %v3992
        %v4032 = vunpack.c.l.b16 %v3993
        %v4033 = vunpack.c.l.b16 %v3994
        %v4034 = vunpack.c.l.b16 %v3995
        %v4035 = vunpack.c.l.b16 %v3996
        %v4036 = vunpack.c.l.b16 %v3997
        %v4037 = vunpack.c.l.b16 %v3998
        %v4038 = vunpack.c.l.b16 %v3999
        %v4039 = vunpack.c.l.b16 %v4000
        %v4040 = vunpack.c.l.b16 %v4001
        %v4041 = vunpack.c.l.b16 %v4002
        %v4042 = vunpack.c.l.b16 %v4003
        %v4043 = vunpack.c.l.b16 %v4004
        %v4044 = vunpack.c.l.b16 %v4005
        %v4045 = vpack.c.b16 %v4030, %v4029
        %v4046 = vpack.c.b16 %v4032, %v4031
        %v4047 = vpack.c.b16 %v4034, %v4033
        %v4048 = vpack.c.b16 %v4036, %v4035
        %v4049 = vpack.c.b16 %v4038, %v4037
        %v4050 = vpack.c.b16 %v4040, %v4039
        %v4051 = vpack.c.b16 %v4042, %v4041
        %v4052 = vpack.c.b16 %v4044, %v4043
        %4061 = vmatprep.subr.bf16.mxu0 0
        %4062 = vmatpush1.bf16.msra.mxu0 %v4052
        %4063 = vmatprep.subr.bf16.mxu0 0
        %4064 = vmatpush1.bf16.msra.mxu0 %v4051
        %4065 = vmatprep.subr.bf16.mxu0 0
        %4066 = vmatpush1.bf16.msra.mxu0 %v4050
        %4067 = vmatprep.subr.bf16.mxu0 0
        %4068 = vmatpush1.bf16.msra.mxu0 %v4049
        %4069 = vmatprep.subr.bf16.mxu0 0
        %4070 = vmatpush1.bf16.msra.mxu0 %v4048
        %4071 = vmatprep.subr.bf16.mxu0 0
        %4072 = vmatpush1.bf16.msra.mxu0 %v4047
        %4073 = vmatprep.subr.bf16.mxu0 0
        %4074 = vmatpush1.bf16.msra.mxu0 %v4046
        %4075 = vmatprep.subr.bf16.mxu0 0
        %4076 = vmatpush1.bf16.msra.mxu0 %v4045
        %4077 = vmatprep.subr.bf16.mxu0 0
        %4078 = vmatpush2.bf16.msra.mxu0 0
        %4079 = vmatprep.subr.bf16.mxu0 0
        %4080 = vmatpush2.bf16.msra.mxu0 0
        %4081 = vmatprep.subr.bf16.mxu0 0
        %4082 = vmatpush2.bf16.msra.mxu0 0
        %4083 = vmatprep.subr.bf16.mxu0 0
        %4084 = vmatpush2.bf16.msra.mxu0 0
        %4085 = vmatprep.subr.bf16.mxu0 0
        %4086 = vmatpush2.bf16.msra.mxu0 0
        %4087 = vmatprep.subr.bf16.mxu0 0
        %4088 = vmatpush2.bf16.msra.mxu0 0
        %4089 = vmatprep.subr.bf16.mxu0 0
        %4090 = vmatpush2.bf16.msra.mxu0 0
        %4091 = vmatprep.subr.bf16.mxu0 0
        %4092 = vmatpush2.bf16.msra.mxu0 0
        %4093 = vmatprep.mubr.bf16.mxu0 0
        %4094 = vmatmul.mubr.bf16.gmra.mxu0 %v3989
        %v4095 = vpop.f32.mrf.mxu0
        %v4096 = vadd.f32 %v4011, %v4095
        %v4097 = vpop.f32.mrf.mxu0
        %v4098 = vpop.f32.mrf.mxu0
        %v4099 = vadd.f32 %v4011, %v4098
        %v4100 = vpop.f32.mrf.mxu0
        %4101 = vdwg.mxu0
        %v4102 = vmul.f32 %v4096, %v1388
        %v4103 = vmul.f32 %v4099, %v1393
        %v4104 = vadd.f32 %v3821, %v4102
        %v4105 = vadd.f32 %v3822, %v4103
        %v4106 = vpack.c.bf16 %v4105, %v4104
        %v4107 = vld [vmem:[%s65] sm:$0xf]
        %v4108 = vld [vmem:[%s65 + $0x4] sm:$0xf]
        %v4109 = vld [vmem:[%s65 + $0x8] sm:$0xf]
        %v4110 = vld [vmem:[%s65 + $0xc] sm:$0xf]
        %v4111 = vld [vmem:[%s67] sm:$0x1]
        %v4113 = vlaneseq
        %v4114 = vshrl.u32 %v4113, 7
        %v4115 = vsub.s32 0, %v4114
        %v4116 = vrot.slane %v4111, %v4115
        %v4122 = vunpack.c.l.b16 %v4107
        %v4123 = vunpack.c.l.b16 %v4108
        %v4124 = vunpack.c.l.b16 %v4109
        %v4125 = vunpack.c.l.b16 %v4110
        %v4126 = vpack.c.b16 %v4123, %v4122
        %v4127 = vpack.c.b16 %v4125, %v4124
        %v4131 = vsel %vm1690, %v4106, 0
        %4133 = vmatprep.subr.bf16.mxu0 0
        %4134 = vmatpush1.bf16.msra.mxu0 0
        %4135 = vmatprep.subr.bf16.mxu0 0
        %4136 = vmatpush1.bf16.msra.mxu0 0
        %4137 = vmatprep.subr.bf16.mxu0 0
        %4138 = vmatpush1.bf16.msra.mxu0 0
        %4139 = vmatprep.subr.bf16.mxu0 0
        %4140 = vmatpush1.bf16.msra.mxu0 0
        %4141 = vmatprep.subr.bf16.mxu0 0
        %4142 = vmatpush1.bf16.msra.mxu0 0
        %4143 = vmatprep.subr.bf16.mxu0 0
        %4144 = vmatpush1.bf16.msra.mxu0 0
        %4145 = vmatprep.subr.bf16.mxu0 0
        %4146 = vmatpush1.bf16.msra.mxu0 %v4127
        %4147 = vmatprep.subr.bf16.mxu0 0
        %4148 = vmatpush1.bf16.msra.mxu0 %v4126
        %4149 = vmatprep.subr.bf16.mxu0 0
        %4150 = vmatpush2.bf16.msra.mxu0 0
        %4151 = vmatprep.subr.bf16.mxu0 0
        %4152 = vmatpush2.bf16.msra.mxu0 0
        %4153 = vmatprep.subr.bf16.mxu0 0
        %4154 = vmatpush2.bf16.msra.mxu0 0
        %4155 = vmatprep.subr.bf16.mxu0 0
        %4156 = vmatpush2.bf16.msra.mxu0 0
        %4157 = vmatprep.subr.bf16.mxu0 0
        %4158 = vmatpush2.bf16.msra.mxu0 0
        %4159 = vmatprep.subr.bf16.mxu0 0
        %4160 = vmatpush2.bf16.msra.mxu0 0
        %4161 = vmatprep.subr.bf16.mxu0 0
        %4162 = vmatpush2.bf16.msra.mxu0 0
        %4163 = vmatprep.subr.bf16.mxu0 0
        %4164 = vmatpush2.bf16.msra.mxu0 0
        %4165 = vmatprep.mubr.bf16.mxu0 0
        %4166 = vmatmul.mubr.bf16.gmra.mxu0 %v4131
        %v4167 = vpop.f32.mrf.mxu0
        %v4168 = vadd.f32 %v4116, %v4167
        %v4169 = vpop.f32.mrf.mxu0
        %v4170 = vpop.f32.mrf.mxu0
        %v4171 = vadd.f32 %v4116, %v4170
        %v4172 = vpop.f32.mrf.mxu0
        %4173 = vdwg.mxu0
        %v4174 = vmax.f32 %v4168, 0.0
        %v4175 = vmax.f32 %v4171, 0.0
        %v4176 = vpack.c.bf16 %v4175, %v4174
        %v4177 = vld [vmem:[%s69] sm:$0xf]
        %v4178 = vld [vmem:[%s69 + $0x4] sm:$0xf]
        %v4179 = vld [vmem:[%s71] sm:$0x1]
        %v4181 = vlaneseq
        %v4182 = vshrl.u32 %v4181, 7
        %v4183 = vsub.s32 0, %v4182
        %v4184 = vrot.slane %v4179, %v4183
        %v4188 = vunpack.c.l.b16 %v4177
        %v4189 = vunpack.c.l.b16 %v4178
        %v4190 = vpack.c.b16 %v4189, %v4188
        %v4193 = vsel %vm2059, %v4176, 0
        %4195 = vmatprep.subr.bf16.mxu0 0
        %4196 = vmatpush1.bf16.msra.mxu0 0
        %4197 = vmatprep.subr.bf16.mxu0 0
        %4198 = vmatpush1.bf16.msra.mxu0 0
        %4199 = vmatprep.subr.bf16.mxu0 0
        %4200 = vmatpush1.bf16.msra.mxu0 0
        %4201 = vmatprep.subr.bf16.mxu0 0
        %4202 = vmatpush1.bf16.msra.mxu0 0
        %4203 = vmatprep.subr.bf16.mxu0 0
        %4204 = vmatpush1.bf16.msra.mxu0 0
        %4205 = vmatprep.subr.bf16.mxu0 0
        %4206 = vmatpush1.bf16.msra.mxu0 0
        %4207 = vmatprep.subr.bf16.mxu0 0
        %4208 = vmatpush1.bf16.msra.mxu0 0
        %4209 = vmatprep.subr.bf16.mxu0 0
        %4210 = vmatpush1.bf16.msra.mxu0 %v4190
        %4211 = vmatprep.subr.bf16.mxu0 0
        %4212 = vmatpush2.bf16.msra.mxu0 0
        %4213 = vmatprep.subr.bf16.mxu0 0
        %4214 = vmatpush2.bf16.msra.mxu0 0
        %4215 = vmatprep.subr.bf16.mxu0 0
        %4216 = vmatpush2.bf16.msra.mxu0 0
        %4217 = vmatprep.subr.bf16.mxu0 0
        %4218 = vmatpush2.bf16.msra.mxu0 0
        %4219 = vmatprep.subr.bf16.mxu0 0
        %4220 = vmatpush2.bf16.msra.mxu0 0
        %4221 = vmatprep.subr.bf16.mxu0 0
        %4222 = vmatpush2.bf16.msra.mxu0 0
        %4223 = vmatprep.subr.bf16.mxu0 0
        %4224 = vmatpush2.bf16.msra.mxu0 0
        %4225 = vmatprep.subr.bf16.mxu0 0
        %4226 = vmatpush2.bf16.msra.mxu0 0
        %4227 = vmatprep.mubr.bf16.mxu0 0
        %4228 = vmatmul.mubr.bf16.gmra.mxu0 %v4193
        %v4229 = vpop.f32.mrf.mxu0
        %v4230 = vadd.f32 %v4184, %v4229
        %v4231 = vpop.f32.mrf.mxu0
        %v4232 = vpop.f32.mrf.mxu0
        %v4233 = vadd.f32 %v4184, %v4232
        %v4234 = vpop.f32.mrf.mxu0
        %4235 = vdwg.mxu0
        %v4236 = vmax.f32 %v4230, 0.0
        %v4237 = vmax.f32 %v4233, 0.0
        %v4238 = vpack.c.bf16 %v4237, %v4236
        %v4239 = vld [vmem:[%s73] sm:$0xf]
        %v4240 = vld [vmem:[%s73 + $0x4] sm:$0xf]
        %v4241 = vld [vmem:[%s75] sm:$0x1]
        %v4243 = vlaneseq
        %v4244 = vshrl.u32 %v4243, 7
        %v4245 = vsub.s32 0, %v4244
        %v4246 = vrot.slane %v4241, %v4245
        %v4250 = vunpack.c.l.b16 %v4239
        %v4251 = vunpack.c.l.b16 %v4240
        %v4252 = vpack.c.b16 %v4251, %v4250
        %v4255 = vsel %vm2059, %v4238, 0
        %4257 = vmatprep.subr.bf16.mxu0 0
        %4258 = vmatpush1.bf16.msra.mxu0 0
        %4259 = vmatprep.subr.bf16.mxu0 0
        %4260 = vmatpush1.bf16.msra.mxu0 0
        %4261 = vmatprep.subr.bf16.mxu0 0
        %4262 = vmatpush1.bf16.msra.mxu0 0
        %4263 = vmatprep.subr.bf16.mxu0 0
        %4264 = vmatpush1.bf16.msra.mxu0 0
        %4265 = vmatprep.subr.bf16.mxu0 0
        %4266 = vmatpush1.bf16.msra.mxu0 0
        %4267 = vmatprep.subr.bf16.mxu0 0
        %4268 = vmatpush1.bf16.msra.mxu0 0
        %4269 = vmatprep.subr.bf16.mxu0 0
        %4270 = vmatpush1.bf16.msra.mxu0 0
        %4271 = vmatprep.subr.bf16.mxu0 0
        %4272 = vmatpush1.bf16.msra.mxu0 %v4252
        %4273 = vmatprep.subr.bf16.mxu0 0
        %4274 = vmatpush2.bf16.msra.mxu0 0
        %4275 = vmatprep.subr.bf16.mxu0 0
        %4276 = vmatpush2.bf16.msra.mxu0 0
        %4277 = vmatprep.subr.bf16.mxu0 0
        %4278 = vmatpush2.bf16.msra.mxu0 0
        %4279 = vmatprep.subr.bf16.mxu0 0
        %4280 = vmatpush2.bf16.msra.mxu0 0
        %4281 = vmatprep.subr.bf16.mxu0 0
        %4282 = vmatpush2.bf16.msra.mxu0 0
        %4283 = vmatprep.subr.bf16.mxu0 0
        %4284 = vmatpush2.bf16.msra.mxu0 0
        %4285 = vmatprep.subr.bf16.mxu0 0
        %4286 = vmatpush2.bf16.msra.mxu0 0
        %4287 = vmatprep.subr.bf16.mxu0 0
        %4288 = vmatpush2.bf16.msra.mxu0 0
        %4289 = vmatprep.mubr.bf16.mxu0 0
        %4290 = vmatmul.mubr.bf16.gmra.mxu0 %v4255
        %v4291 = vpop.f32.mrf.mxu0
        %v4292 = vadd.f32 %v4246, %v4291
        %v4293 = vpop.f32.mrf.mxu0
        %v4294 = vpop.f32.mrf.mxu0
        %v4295 = vadd.f32 %v4246, %v4294
        %v4296 = vpop.f32.mrf.mxu0
        %4297 = vdwg.mxu0
        %v4298 = vlaneseq
        %v4299 = vand.u32 %v4298, 127
        %vm4300 = vcmp.lt.s32.totalorder %v4299, 16
        %v4301 = vmul.f32 %v4292, 1.442695
        %v4302 = vpow.pop %v4301
        %v4303 = vmul.f32 %v4295, 1.442695
        %v4304 = vpow.pop %v4303
        %v4305 = vsel %vm4300, %v4292, %v4302
        %v4306 = vsel %vm4300, %v4295, %v4304
        %4307 = vst.msk [vmem:[%s1375] sm:$0xff] %vm1690, %v4305
        %4308 = vst.msk [vmem:[%s1375 + $0x8] sm:$0xff] %vm1690, %v4306
        %vm4309 = vcmask 7168
        %v4310 = vsel %vm4309, %v1377, 0.0
        %v4311 = vsel %vm4309, %v1378, 0.0
        %v4312 = vadd.f32 %v4310, %v4311
        %v4313 = vrot.slane %v4312, 4
        %v4314 = vadd.f32 %v4312, %v4313
        %v4315 = vrot.slane %v4314, 2
        %v4316 = vadd.f32 %v4314, %v4315
        %v4317 = vrot.slane %v4316, 1
        %v4318 = vadd.f32 %v4316, %v4317
        %v4319 = vmax.f32 %v4318, 1.0
        %v4320 = vmul.f32 %v4305, %v1388
        %v4321 = vmul.f32 %v4306, %v1393
        %v4322 = vsel %vm1690, %v4320, 0.0
        %v4323 = vsel %vm1690, %v4321, 0.0
        %v4324 = vadd.f32 %v4322, %v4323
        %v4325 = vrot.slane %v4324, 4
        %v4326 = vadd.f32 %v4324, %v4325
        %v4327 = vrot.slane %v4326, 2
        %v4328 = vadd.f32 %v4326, %v4327
        %v4329 = vrot.slane %v4328, 1
        %v4330 = vadd.f32 %v4328, %v4329
        %4332 = vset.pattern.permute.xlu0 0
        %4333 = vperm.xlu0 %4332, %v4319
        %v4334 = vpop.permute.xlu0 %4333
        %v4336 = vrcp.pop %v4334
        %v4337 = vmul.f32 %v4330, %v4336
        %v4338 = vrsqrt.pop %v4337
        %v4339 = vmul.f32 %v4337, %v4338
        %vm4340 = vcmp.eq.f32.partialorder %v4337, inf
        %v4341 = vsel %vm4340, %v4337, %v4339
        %vm4342 = vcmp.eq.f32.partialorder %v4337, 0.0
        %v4343 = vand.u32 %v4337, 2147483648
        %v4344 = vsel %vm4342, %v4343, %v4341
        %4346 = vrot.lane.b32.xlu0 %v4344, 112
        %v4347 = vpop.permute.xlu0 %4346
        %vm4349 = vcmask 122880
        %4350 = vst.msk [vmem:[%s1351] sm:$0x1] %vm4349, %v4347
        %v4351 = vpack.c.bf16 %v4337, %v4337
        %v4352 = vld [vmem:[%s77] sm:$0xf]
        %v4353 = vld [vmem:[%s77 + $0x4] sm:$0xf]
        %v4354 = vld [vmem:[%s79] sm:$0x1]
        %v4357 = vunpack.c.l.b16 %v4352
        %v4358 = vunpack.c.l.b16 %v4353
        %v4359 = vpack.c.b16 %v4358, %v4357
        %v4362 = vsel %vm2059, %v4351, 0
        %4364 = vmatprep.subr.bf16.mxu0 0
        %4365 = vmatpush1.bf16.msra.mxu0 0
        %4366 = vmatprep.subr.bf16.mxu0 0
        %4367 = vmatpush1.bf16.msra.mxu0 0
        %4368 = vmatprep.subr.bf16.mxu0 0
        %4369 = vmatpush1.bf16.msra.mxu0 0
        %4370 = vmatprep.subr.bf16.mxu0 0
        %4371 = vmatpush1.bf16.msra.mxu0 0
        %4372 = vmatprep.subr.bf16.mxu0 0
        %4373 = vmatpush1.bf16.msra.mxu0 0
        %4374 = vmatprep.subr.bf16.mxu0 0
        %4375 = vmatpush1.bf16.msra.mxu0 0
        %4376 = vmatprep.subr.bf16.mxu0 0
        %4377 = vmatpush1.bf16.msra.mxu0 0
        %4378 = vmatprep.subr.bf16.mxu0 0
        %4379 = vmatpush1.bf16.msra.mxu0 %v4359
        %4380 = vmatprep.subr.bf16.mxu0 0
        %4381 = vmatpush2.bf16.msra.mxu0 0
        %4382 = vmatprep.subr.bf16.mxu0 0
        %4383 = vmatpush2.bf16.msra.mxu0 0
        %4384 = vmatprep.subr.bf16.mxu0 0
        %4385 = vmatpush2.bf16.msra.mxu0 0
        %4386 = vmatprep.subr.bf16.mxu0 0
        %4387 = vmatpush2.bf16.msra.mxu0 0
        %4388 = vmatprep.subr.bf16.mxu0 0
        %4389 = vmatpush2.bf16.msra.mxu0 0
        %4390 = vmatprep.subr.bf16.mxu0 0
        %4391 = vmatpush2.bf16.msra.mxu0 0
        %4392 = vmatprep.subr.bf16.mxu0 0
        %4393 = vmatpush2.bf16.msra.mxu0 0
        %4394 = vmatprep.subr.bf16.mxu0 0
        %4395 = vmatpush2.bf16.msra.mxu0 0
        %4396 = vmatprep.mubr.bf16.mxu0 0
        %4397 = vmatmul.mubr.bf16.gmra.mxu0 %v4362
        %v4398 = vpop.f32.mrf.mxu0
        %v4399 = vadd.f32 %v4354, %v4398
        %v4400 = vpop.f32.mrf.mxu0
        %v4401 = vpop.f32.mrf.mxu0
        %v4402 = vpop.f32.mrf.mxu0
        %4403 = vdwg.mxu0
        %v4404 = vmax.f32 %v4399, 0.0
        %v4405 = vpack.c.bf16 %v4404, %v4404
        %v4406 = vld [vmem:[%s81] sm:$0xf]
        %v4407 = vld [vmem:[%s81 + $0x4] sm:$0xf]
        %v4408 = vld [vmem:[%s83] sm:$0x1]
        %v4411 = vunpack.c.l.b16 %v4406
        %v4412 = vunpack.c.l.b16 %v4407
        %v4413 = vpack.c.b16 %v4412, %v4411
        %v4416 = vsel %vm2059, %v4405, 0
        %4418 = vmatprep.subr.bf16.mxu0 0
        %4419 = vmatpush1.bf16.msra.mxu0 0
        %4420 = vmatprep.subr.bf16.mxu0 0
        %4421 = vmatpush1.bf16.msra.mxu0 0
        %4422 = vmatprep.subr.bf16.mxu0 0
        %4423 = vmatpush1.bf16.msra.mxu0 0
        %4424 = vmatprep.subr.bf16.mxu0 0
        %4425 = vmatpush1.bf16.msra.mxu0 0
        %4426 = vmatprep.subr.bf16.mxu0 0
        %4427 = vmatpush1.bf16.msra.mxu0 0
        %4428 = vmatprep.subr.bf16.mxu0 0
        %4429 = vmatpush1.bf16.msra.mxu0 0
        %4430 = vmatprep.subr.bf16.mxu0 0
        %4431 = vmatpush1.bf16.msra.mxu0 0
        %4432 = vmatprep.subr.bf16.mxu0 0
        %4433 = vmatpush1.bf16.msra.mxu0 %v4413
        %4434 = vmatprep.subr.bf16.mxu0 0
        %4435 = vmatpush2.bf16.msra.mxu0 0
        %4436 = vmatprep.subr.bf16.mxu0 0
        %4437 = vmatpush2.bf16.msra.mxu0 0
        %4438 = vmatprep.subr.bf16.mxu0 0
        %4439 = vmatpush2.bf16.msra.mxu0 0
        %4440 = vmatprep.subr.bf16.mxu0 0
        %4441 = vmatpush2.bf16.msra.mxu0 0
        %4442 = vmatprep.subr.bf16.mxu0 0
        %4443 = vmatpush2.bf16.msra.mxu0 0
        %4444 = vmatprep.subr.bf16.mxu0 0
        %4445 = vmatpush2.bf16.msra.mxu0 0
        %4446 = vmatprep.subr.bf16.mxu0 0
        %4447 = vmatpush2.bf16.msra.mxu0 0
        %4448 = vmatprep.subr.bf16.mxu0 0
        %4449 = vmatpush2.bf16.msra.mxu0 0
        %4450 = vmatprep.mubr.bf16.mxu0 0
        %4451 = vmatmul.mubr.bf16.gmra.mxu0 %v4416
        %v4452 = vpop.f32.mrf.mxu0
        %v4453 = vadd.f32 %v4408, %v4452
        %v4454 = vpop.f32.mrf.mxu0
        %v4455 = vpop.f32.mrf.mxu0
        %v4456 = vpop.f32.mrf.mxu0
        %4457 = vdwg.mxu0
        %vm4458 = vcmask 57344
        %4459 = vst.msk [vmem:[%s1357] sm:$0x1] %vm4458, %v4453
        %p4460 = scmp.lt.s32.totalorder %s107, 1
        %s4461 = scalar_select %p4460, %s107, 1
        %s4462 = smul.addr %s4461, 2
        %s4463 = smul.addr %s4462, 8
        %s4464 = scalar_lea.vmem %s85, %s4463
        %s4465 = sand.u32 %s1038, 1
        %s4466 = scalar_lea.sflag [#allocation3], %s4465
        %s4467 = sand.u32 %s1038, 1
        %s4468 = scalar_lea.vmem [#allocation2], %s4467
        %s4469 = sand.u32 %s1064, 1
        %s4470 = scalar_lea.sflag [#allocation5], %s4469
        %s4471 = sand.u32 %s1064, 1
        %s4472 = scalar_lea.vmem [#allocation4], %s4471
        // Predicated region
        $region189: #{fwd_fn.1} parent=187 // pred_check
          %p4473 = pneg %p1022
        $region190: #{fwd_fn.1} parent=187 // pred_check_branch
          %4475 = sbr.rel (%p4473) target = $region192
        $region191: #{fwd_fn.1} parent=187 // pred_region
          _
        $region192: #{fwd_fn.1} parent=187 // pred_fallthru
          _
        // Predicated region
        $region193: #{fwd_fn.1} parent=187 // pred_check
          %p4476 = pneg %p1048
        $region194: #{fwd_fn.1} parent=187 // pred_check_branch
          %4478 = sbr.rel (%p4476) target = $region196
        $region195: #{fwd_fn.1} parent=187 // pred_region
          %s4480 = ssub.s32 16, 16
          %4481 = vsyncadd %s4466, %s4480
          %s4482 = smul.addr %s107, 16
          %s4483 = scalar_lea.hbm %s87, %s4482
          %s4485 = sshll.u32 %s4468, 4
          %s4486 = int_to_ptr.vmem [resolvable:$true] %s4485
          %4488 = dma.vmem_to_hbm [thread:$0]  %s4486, 16, %s4483, %s4466
        $region196: #{fwd_fn.1} parent=187 // pred_fallthru
          _
        // Predicated region
        $region197: #{fwd_fn.1} parent=187 // pred_check
          %p4489 = pneg %p1074
        $region198: #{fwd_fn.1} parent=187 // pred_check_branch
          %4491 = sbr.rel (%p4489) target = $region200
        $region199: #{fwd_fn.1} parent=187 // pred_region
          %s4493 = ssub.s32 16, 16
          %4494 = vsyncadd %s4470, %s4493
          %s4495 = smul.addr %s107, 16
          %s4496 = scalar_lea.hbm %s89, %s4495
          %s4498 = sshll.u32 %s4472, 4
          %s4499 = int_to_ptr.vmem [resolvable:$true] %s4498
          %4501 = dma.vmem_to_hbm [thread:$0]  %s4499, 16, %s4496, %s4470
        $region200: #{fwd_fn.1} parent=187 // pred_fallthru
          _
      $region188: #{fwd_fn.1} parent=5 // pred_fallthru
        _
      %p4502 = scmp.le.s32.totalorder 2, %s102
      // Predicated region
      $region201: #{fwd_fn.1} parent=5 // pred_check
        %p4503 = pneg %p4502
      $region202: #{fwd_fn.1} parent=5 // pred_check_branch
        %4505 = sbr.rel (%p4503) target = $region204
      $region203: #{fwd_fn.1} parent=5 // pred_region
        %s4506 = ssub.s32 %s102, 2
        // Predicated region
        $region205: #{fwd_fn.1} parent=203 // pred_check
          %p4507 = pneg %p1028
        $region206: #{fwd_fn.1} parent=203 // pred_check_branch
          %4509 = sbr.rel (%p4507) target = $region208
        $region207: #{fwd_fn.1} parent=203 // pred_region
          %p4510 = scmp.lt.s32.totalorder %s108, 1
          %s4511 = scalar_select %p4510, %s108, 1
          %s4512 = smul.addr %s4511, 2
          %s4513 = smul.addr %s4512, 8
          %s4514 = scalar_lea.vmem %s85, %s4513
        $region208: #{fwd_fn.1} parent=203 // pred_fallthru
          _
        // Predicated region
        $region209: #{fwd_fn.1} parent=203 // pred_check
          %p4515 = pneg %p1054
        $region210: #{fwd_fn.1} parent=203 // pred_check_branch
          %4517 = sbr.rel (%p4515) target = $region212
        $region211: #{fwd_fn.1} parent=203 // pred_region
          %s4518 = sand.u32 %s1039, 1
          %s4519 = scalar_lea.sflag [#allocation3], %s4518
          %s4520 = sand.u32 %s1039, 1
          %s4521 = scalar_lea.vmem [#allocation2], %s4520
          %4522 = dma.done %s4519, 16
        $region212: #{fwd_fn.1} parent=203 // pred_fallthru
          _
        // Predicated region
        $region213: #{fwd_fn.1} parent=203 // pred_check
          %p4523 = pneg %p1080
        $region214: #{fwd_fn.1} parent=203 // pred_check_branch
          %4525 = sbr.rel (%p4523) target = $region216
        $region215: #{fwd_fn.1} parent=203 // pred_region
          %s4526 = sand.u32 %s1065, 1
          %s4527 = scalar_lea.sflag [#allocation5], %s4526
          %s4528 = sand.u32 %s1065, 1
          %s4529 = scalar_lea.vmem [#allocation4], %s4528
          %4530 = dma.done %s4527, 16
        $region216: #{fwd_fn.1} parent=203 // pred_fallthru
          _
      $region204: #{fwd_fn.1} parent=5 // pred_fallthru
        _
    $region6: #{fwd_fn.1} parent=1 // loop_footer
      %s106 = sadd.s32 1, %s102
    $region7: #{fwd_fn.1} parent=1 // loop_footer_branch
      %101 = sbr.rel target = $region3
    $region8: #{fwd_fn.1} parent=1 // loop_exit
      _
    %4531 = vsyncpa [#allocation3], 1
    %s4532 = scalar_lea.sflag [#allocation3], 1
    %4533 = vsyncpa %s4532, 1
    %4534 = vsyncpa [#allocation5], 1
    %s4535 = scalar_lea.sflag [#allocation5], 1
    %4536 = vsyncpa %s4535, 1

</llo_original>
